<compile_context>
chip_gen: v7x
topology: tpu7x:2x2x1
jax: 0.10.0
libtpu: 0.0.40
codegen_flags: <defaults>
</compile_context>

<pallas_src>
import functools
import math

import jax
import jax.numpy as jnp
from jax.experimental import pallas as pl
from jax.experimental.pallas import tpu as pltpu

BN_EPS = 1e-5


def _round_up(n, m):
    return ((n + m - 1) // m) * m


def _basic_block_kernel(xpf_ref, w1_ref, g1_ref, b1_ref, w2_ref, g2_ref,
                        b2_ref, m1_ref, m2_ref, out_ref, p2_ref, *, wp,
                        inv_count):
    """Fused BasicBlock forward.

    xpf_ref : (C, LE)        zero-padded input, channel-major, spatial
                             flattened, image origin shifted by 2*(wp+1) lanes
    w*_ref  : (9*Cout, Cin)  per-tap conv weight matrices stacked along sublanes
    g*/b*   : (Cout, 1)      BatchNorm gamma / beta
    m1_ref  : (1, L1)        valid-output mask for conv1 (shifted by wp+1)
    m2_ref  : (1, LOUT)      valid-output mask for conv2 / block output
    out_ref : (Cout, LOUT)   block output aligned to the padded flat grid
    p2_ref  : (Cout, L1)     VMEM scratch: zero-padded conv1 activation
    """
    cout = out_ref.shape[0]
    l1 = p2_ref.shape[1]        # conv1 output width (covers conv2's tap reach)
    lout = out_ref.shape[1]     # conv2 / block output width
    off = 2 * wp + 2            # built-in origin offset of xpf_ref
    taps = [dy * wp + dx for dy in range(3) for dx in range(3)]

    def conv_bn(src_ref, w_ref, g_ref, b_ref, mask, width):
        # 9 accumulated K=Cin matmuls over lane-shifted views (no im2col slab).
        acc = None
        for t, k in enumerate(taps):
            part = jnp.dot(w_ref[t * cout:(t + 1) * cout, :],
                           src_ref[:, k:k + width],
                           preferred_element_type=jnp.float32)
            acc = part if acc is None else acc + part
        # One-pass masked batch statistics (biased variance), per channel.
        accm = acc * mask
        s1 = jnp.sum(accm, axis=1, keepdims=True)
        s2 = jnp.sum(accm * acc, axis=1, keepdims=True)
        mean = s1 * inv_count
        var = s2 * inv_count - mean * mean
        scale = g_ref[...] * jax.lax.rsqrt(var + BN_EPS)
        shift = b_ref[...] - mean * scale
        return acc * scale + shift

    # conv1 -> bn1 -> relu1.  The mask zeroes every non-valid column so the
    # single full-width, offset-0 store below yields a correctly zero-padded
    # activation image for conv2 (no scratch zero-fill needed).
    m1 = m1_ref[...]
    y1 = jnp.maximum(conv_bn(xpf_ref, w1_ref, g1_ref, b1_ref, m1, l1), 0.0)
    p2_ref[...] = y1 * m1

    # conv2 -> bn2 -> (+ residual) -> relu2.  Residual = the padded input,
    # which lives at lane offset `off` inside xpf_ref.
    m2 = m2_ref[...]
    y2 = conv_bn(p2_ref, w2_ref, g2_ref, b2_ref, m2, lout)
    res = xpf_ref[:, off:off + lout]
    out_ref[...] = jnp.maximum(y2 + res, 0.0)


def basic_block_forward(x_nchw, params):
    """BasicBlock forward (stride=1, downsample=None, relu_type='relu')."""
    w1, g1, b1, w2, g2, b2 = params
    N, C, H, W = x_nchw.shape
    planes = w1.shape[-1]
    assert planes == C and w2.shape[-1] == planes, "residual path needs Cin==Cout"

    hp, wp = H + 2, W + 2
    sp = hp * wp
    nsp = N * sp
    off = 2 * wp + 2                      # conv origin shift folded into input
    lout = _round_up(nsp, 128)            # block-output width (lane aligned)
    l1 = _round_up(lout + off, 128)       # conv1-output / scratch width
    le = _round_up(l1 + off, 128)         # extended padded-input width

    x = x_nchw.astype(jnp.float32)
    # Channel-major, spatially zero-padded, (batch, spatial) flattened into
    # lanes, with `off` leading zero columns (the conv-origin shift) and zero
    # tail columns up to a 128-aligned width.
    xp = jnp.pad(x, ((0, 0), (0, 0), (1, 1), (1, 1)))
    xpf = jnp.transpose(xp, (1, 0, 2, 3)).reshape(C, nsp)
    xpf_ext = jnp.pad(xpf, ((0, 0), (off, le - off - nsp)))

    # Per-tap (Cout, Cin) weight matrices stacked tap-major along sublanes.
    def tapmajor(w):
        kh, kw, cin, cout = w.shape
        wt = jnp.transpose(w.reshape(kh * kw, cin, cout), (0, 2, 1))
        return wt.reshape(kh * kw * cout, cin).astype(jnp.float32)

    w1m, w2m = tapmajor(w1), tapmajor(w2)
    g1c = g1.reshape(planes, 1).astype(jnp.float32)
    b1c = b1.reshape(planes, 1).astype(jnp.float32)
    g2c = g2.reshape(planes, 1).astype(jnp.float32)
    b2c = b2.reshape(planes, 1).astype(jnp.float32)

    # Valid-output masks on the (offset) flattened padded grid.
    def interior_mask(length, offset):
        q = jnp.arange(length, dtype=jnp.int32) - offset
        jl = jnp.where(q >= 0, q, 0) % sp
        row, col = jl // wp, jl % wp
        valid = ((q >= 0) & (q < nsp) &
                 (row >= 1) & (row <= H) & (col >= 1) & (col <= W))
        return valid.astype(jnp.float32).reshape(1, length)

    mask1 = interior_mask(l1, wp + 1)     # conv1 output is shifted by wp+1
    mask2 = interior_mask(lout, 0)        # conv2 output is grid-aligned

    flops = 2 * planes * 9 * C * (l1 + lout) + 12 * planes * (l1 + lout)
    bytes_accessed = 4 * (C * le + planes * lout + 2 * 9 * planes * C
                          + 4 * planes + l1 + lout)

    out_flat = pl.pallas_call(
        functools.partial(_basic_block_kernel, wp=wp,
                          inv_count=1.0 / float(N * H * W)),
        out_shape=jax.ShapeDtypeStruct((planes, lout), jnp.float32),
        in_specs=[pl.BlockSpec(memory_space=pltpu.MemorySpace.VMEM)] * 9,
        out_specs=pl.BlockSpec(memory_space=pltpu.MemorySpace.VMEM),
        scratch_shapes=[pltpu.VMEM((planes, l1), jnp.float32)],
        cost_estimate=pl.CostEstimate(flops=flops,
                                      transcendentals=2 * planes,
                                      bytes_accessed=bytes_accessed),
    )(xpf_ext, w1m, g1c, b1c, w2m, g2c, b2c, mask1, mask2)

    # Un-flatten: the output is aligned to the padded grid, so just drop the
    # alignment tail, reshape, crop the interior, and go back to NCHW.
    of = out_flat[:, :nsp].reshape(planes, N, hp, wp)[:, :, 1:H + 1, 1:W + 1]
    return jnp.transpose(of, (1, 0, 2, 3))


def basic_block_reference(x_nchw, params):
    """Pure-JAX reference (for correctness checking)."""
    w1, g1, b1, w2, g2, b2 = params
    x = x_nchw.astype(jnp.float32)

    def conv(y, w):
        return jax.lax.conv_general_dilated(
            y, w, window_strides=(1, 1), padding=((1, 1), (1, 1)),
            dimension_numbers=("NCHW", "HWIO", "NCHW"))

    def bn(y, g, b):
        m = jnp.mean(y, axis=(0, 2, 3), keepdims=True)
        v = jnp.mean((y - m) ** 2, axis=(0, 2, 3), keepdims=True)
        yhat = (y - m) * jax.lax.rsqrt(v + BN_EPS)
        return yhat * g.reshape(1, -1, 1, 1) + b.reshape(1, -1, 1, 1)

    out = jax.nn.relu(bn(conv(x, w1), g1, b1))
    out = bn(conv(out, w2), g2, b2) + x
    return jax.nn.relu(out)


if __name__ == "__main__":
    # Shapes consistent with BasicBlock(inplanes=8, planes=8, stride=1,
    # downsample=None, relu_type='relu'); residual add requires Cin == Cout.
    N, C, H, W = 2, 8, 16, 16
    planes = C

    key = jax.random.PRNGKey(0)
    k = jax.random.split(key, 7)
    x = jax.random.normal(k[0], (N, C, H, W), jnp.float32)

    fan_in = 9 * C
    w1 = jax.random.normal(k[1], (3, 3, C, planes), jnp.float32) * math.sqrt(2.0 / fan_in)
    w2 = jax.random.normal(k[2], (3, 3, planes, planes), jnp.float32) * math.sqrt(2.0 / fan_in)
    g1 = 1.0 + 0.1 * jax.random.normal(k[3], (planes,), jnp.float32)
    b1 = 0.1 * jax.random.normal(k[4], (planes,), jnp.float32)
    g2 = 1.0 + 0.1 * jax.random.normal(k[5], (planes,), jnp.float32)
    b2 = 0.1 * jax.random.normal(k[6], (planes,), jnp.float32)
    params = (w1, g1, b1, w2, g2, b2)

    out = jax.block_until_ready(jax.jit(basic_block_forward)(x, params))
    ref = jax.block_until_ready(basic_block_reference(x, params))

    assert out.shape == (N, C, H, W)
    if not jnp.allclose(out, ref, atol=2e-4, rtol=2e-4):
        err = float(jnp.max(jnp.abs(out - ref)))
        raise AssertionError(
            f"Pallas kernel output mismatches reference (max abs err {err})")
    print("KERNEL_OK")
</pallas_src>

<mosaic_0001>
module attributes {stable_mosaic.version = 11 : i64} {
  func.func @_basic_block_kernel(%arg0: memref<8x1024xf32, #tpu.memory_space<vmem>>, %arg1: memref<72x8xf32, #tpu.memory_space<vmem>>, %arg2: memref<8x1xf32, #tpu.memory_space<vmem>>, %arg3: memref<8x1xf32, #tpu.memory_space<vmem>>, %arg4: memref<72x8xf32, #tpu.memory_space<vmem>>, %arg5: memref<8x1xf32, #tpu.memory_space<vmem>>, %arg6: memref<8x1xf32, #tpu.memory_space<vmem>>, %arg7: memref<1x896xf32, #tpu.memory_space<vmem>>, %arg8: memref<1x768xf32, #tpu.memory_space<vmem>>, %arg9: memref<8x768xf32, #tpu.memory_space<vmem>>, %arg10: memref<8x896xf32, #tpu.memory_space<vmem>>) attributes {dimension_semantics = [], scalar_prefetch = 0 : i64, scratch_operands = 1 : i64, tpu.core_type = #tpu.core_type<tc>} {
    %c0 = arith.constant 0 : index
    %c0_0 = arith.constant 0 : index
    %0 = vector.load %arg7[%c0, %c0_0] : memref<1x896xf32, #tpu.memory_space<vmem>>, vector<1x896xf32>
    %c0_1 = arith.constant 0 : index
    %c0_2 = arith.constant 0 : index
    %1 = vector.load %arg1[%c0_1, %c0_2] : memref<72x8xf32, #tpu.memory_space<vmem>>, vector<8x8xf32>
    %c0_3 = arith.constant 0 : index
    %c0_4 = arith.constant 0 : index
    %2 = vector.load %arg0[%c0_3, %c0_4] : memref<8x1024xf32, #tpu.memory_space<vmem>>, vector<8x896xf32>
    %cst = arith.constant dense<0.000000e+00> : vector<8x896xf32>
    %3 = tpu.matmul %1, %2, %cst {dimension_numbers = #tpu.dot_dimension_numbers<[1], [0], [0], [1], [0, 0, 1, 1], [], []>} : vector<8x8xf32>, vector<8x896xf32>, vector<8x896xf32> -> vector<8x896xf32>
    %c8 = arith.constant 8 : index
    %c0_5 = arith.constant 0 : index
    %4 = vector.load %arg1[%c8, %c0_5] : memref<72x8xf32, #tpu.memory_space<vmem>>, vector<8x8xf32>
    %c0_6 = arith.constant 0 : index
    %c1 = arith.constant 1 : index
    %5 = vector.load %arg0[%c0_6, %c1] : memref<8x1024xf32, #tpu.memory_space<vmem>>, vector<8x896xf32>
    %cst_7 = arith.constant dense<0.000000e+00> : vector<8x896xf32>
    %6 = tpu.matmul %4, %5, %cst_7 {dimension_numbers = #tpu.dot_dimension_numbers<[1], [0], [0], [1], [0, 0, 1, 1], [], []>} : vector<8x8xf32>, vector<8x896xf32>, vector<8x896xf32> -> vector<8x896xf32>
    %7 = arith.addf %3, %6 : vector<8x896xf32>
    %c16 = arith.constant 16 : index
    %c0_8 = arith.constant 0 : index
    %8 = vector.load %arg1[%c16, %c0_8] : memref<72x8xf32, #tpu.memory_space<vmem>>, vector<8x8xf32>
    %c0_9 = arith.constant 0 : index
    %c2 = arith.constant 2 : index
    %9 = vector.load %arg0[%c0_9, %c2] : memref<8x1024xf32, #tpu.memory_space<vmem>>, vector<8x896xf32>
    %cst_10 = arith.constant dense<0.000000e+00> : vector<8x896xf32>
    %10 = tpu.matmul %8, %9, %cst_10 {dimension_numbers = #tpu.dot_dimension_numbers<[1], [0], [0], [1], [0, 0, 1, 1], [], []>} : vector<8x8xf32>, vector<8x896xf32>, vector<8x896xf32> -> vector<8x896xf32>
    %11 = arith.addf %7, %10 : vector<8x896xf32>
    %c24 = arith.constant 24 : index
    %c0_11 = arith.constant 0 : index
    %12 = vector.load %arg1[%c24, %c0_11] : memref<72x8xf32, #tpu.memory_space<vmem>>, vector<8x8xf32>
    %c0_12 = arith.constant 0 : index
    %c18 = arith.constant 18 : index
    %13 = vector.load %arg0[%c0_12, %c18] : memref<8x1024xf32, #tpu.memory_space<vmem>>, vector<8x896xf32>
    %cst_13 = arith.constant dense<0.000000e+00> : vector<8x896xf32>
    %14 = tpu.matmul %12, %13, %cst_13 {dimension_numbers = #tpu.dot_dimension_numbers<[1], [0], [0], [1], [0, 0, 1, 1], [], []>} : vector<8x8xf32>, vector<8x896xf32>, vector<8x896xf32> -> vector<8x896xf32>
    %15 = arith.addf %11, %14 : vector<8x896xf32>
    %c32 = arith.constant 32 : index
    %c0_14 = arith.constant 0 : index
    %16 = vector.load %arg1[%c32, %c0_14] : memref<72x8xf32, #tpu.memory_space<vmem>>, vector<8x8xf32>
    %c0_15 = arith.constant 0 : index
    %c19 = arith.constant 19 : index
    %17 = vector.load %arg0[%c0_15, %c19] : memref<8x1024xf32, #tpu.memory_space<vmem>>, vector<8x896xf32>
    %cst_16 = arith.constant dense<0.000000e+00> : vector<8x896xf32>
    %18 = tpu.matmul %16, %17, %cst_16 {dimension_numbers = #tpu.dot_dimension_numbers<[1], [0], [0], [1], [0, 0, 1, 1], [], []>} : vector<8x8xf32>, vector<8x896xf32>, vector<8x896xf32> -> vector<8x896xf32>
    %19 = arith.addf %15, %18 : vector<8x896xf32>
    %c40 = arith.constant 40 : index
    %c0_17 = arith.constant 0 : index
    %20 = vector.load %arg1[%c40, %c0_17] : memref<72x8xf32, #tpu.memory_space<vmem>>, vector<8x8xf32>
    %c0_18 = arith.constant 0 : index
    %c20 = arith.constant 20 : index
    %21 = vector.load %arg0[%c0_18, %c20] : memref<8x1024xf32, #tpu.memory_space<vmem>>, vector<8x896xf32>
    %cst_19 = arith.constant dense<0.000000e+00> : vector<8x896xf32>
    %22 = tpu.matmul %20, %21, %cst_19 {dimension_numbers = #tpu.dot_dimension_numbers<[1], [0], [0], [1], [0, 0, 1, 1], [], []>} : vector<8x8xf32>, vector<8x896xf32>, vector<8x896xf32> -> vector<8x896xf32>
    %23 = arith.addf %19, %22 : vector<8x896xf32>
    %c48 = arith.constant 48 : index
    %c0_20 = arith.constant 0 : index
    %24 = vector.load %arg1[%c48, %c0_20] : memref<72x8xf32, #tpu.memory_space<vmem>>, vector<8x8xf32>
    %c0_21 = arith.constant 0 : index
    %c36 = arith.constant 36 : index
    %25 = vector.load %arg0[%c0_21, %c36] : memref<8x1024xf32, #tpu.memory_space<vmem>>, vector<8x896xf32>
    %cst_22 = arith.constant dense<0.000000e+00> : vector<8x896xf32>
    %26 = tpu.matmul %24, %25, %cst_22 {dimension_numbers = #tpu.dot_dimension_numbers<[1], [0], [0], [1], [0, 0, 1, 1], [], []>} : vector<8x8xf32>, vector<8x896xf32>, vector<8x896xf32> -> vector<8x896xf32>
    %27 = arith.addf %23, %26 : vector<8x896xf32>
    %c56 = arith.constant 56 : index
    %c0_23 = arith.constant 0 : index
    %28 = vector.load %arg1[%c56, %c0_23] : memref<72x8xf32, #tpu.memory_space<vmem>>, vector<8x8xf32>
    %c0_24 = arith.constant 0 : index
    %c37 = arith.constant 37 : index
    %29 = vector.load %arg0[%c0_24, %c37] : memref<8x1024xf32, #tpu.memory_space<vmem>>, vector<8x896xf32>
    %cst_25 = arith.constant dense<0.000000e+00> : vector<8x896xf32>
    %30 = tpu.matmul %28, %29, %cst_25 {dimension_numbers = #tpu.dot_dimension_numbers<[1], [0], [0], [1], [0, 0, 1, 1], [], []>} : vector<8x8xf32>, vector<8x896xf32>, vector<8x896xf32> -> vector<8x896xf32>
    %31 = arith.addf %27, %30 : vector<8x896xf32>
    %c64 = arith.constant 64 : index
    %c0_26 = arith.constant 0 : index
    %32 = vector.load %arg1[%c64, %c0_26] : memref<72x8xf32, #tpu.memory_space<vmem>>, vector<8x8xf32>
    %c0_27 = arith.constant 0 : index
    %c38 = arith.constant 38 : index
    %33 = vector.load %arg0[%c0_27, %c38] : memref<8x1024xf32, #tpu.memory_space<vmem>>, vector<8x896xf32>
    %cst_28 = arith.constant dense<0.000000e+00> : vector<8x896xf32>
    %34 = tpu.matmul %32, %33, %cst_28 {dimension_numbers = #tpu.dot_dimension_numbers<[1], [0], [0], [1], [0, 0, 1, 1], [], []>} : vector<8x8xf32>, vector<8x896xf32>, vector<8x896xf32> -> vector<8x896xf32>
    %35 = arith.addf %31, %34 : vector<8x896xf32>
    %36 = vector.broadcast %0 : vector<1x896xf32> to vector<8x896xf32>
    %37 = arith.mulf %35, %36 : vector<8x896xf32>
    %cst_29 = arith.constant dense<0.000000e+00> : vector<8xf32>
    %38 = vector.multi_reduction <add>, %37, %cst_29 [1] : vector<8x896xf32> to vector<8xf32>
    %39 = vector.shape_cast %38 : vector<8xf32> to vector<8x1xf32>
    %40 = arith.mulf %37, %35 : vector<8x896xf32>
    %cst_30 = arith.constant dense<0.000000e+00> : vector<8xf32>
    %41 = vector.multi_reduction <add>, %40, %cst_30 [1] : vector<8x896xf32> to vector<8xf32>
    %42 = vector.shape_cast %41 : vector<8xf32> to vector<8x1xf32>
    %cst_31 = arith.constant 0.001953125 : f32
    %43 = vector.broadcast %cst_31 : f32 to vector<8x1xf32>
    %44 = arith.mulf %39, %43 : vector<8x1xf32>
    %cst_32 = arith.constant 0.001953125 : f32
    %45 = vector.broadcast %cst_32 : f32 to vector<8x1xf32>
    %46 = arith.mulf %42, %45 : vector<8x1xf32>
    %47 = arith.mulf %44, %44 : vector<8x1xf32>
    %48 = arith.subf %46, %47 : vector<8x1xf32>
    %c0_33 = arith.constant 0 : index
    %c0_34 = arith.constant 0 : index
    %49 = vector.load %arg2[%c0_33, %c0_34] : memref<8x1xf32, #tpu.memory_space<vmem>>, vector<8x1xf32>
    %cst_35 = arith.constant 9.99999974E-6 : f32
    %50 = vector.broadcast %cst_35 : f32 to vector<8x1xf32>
    %51 = arith.addf %48, %50 : vector<8x1xf32>
    %52 = math.rsqrt %51 : vector<8x1xf32>
    %53 = arith.mulf %49, %52 : vector<8x1xf32>
    %c0_36 = arith.constant 0 : index
    %c0_37 = arith.constant 0 : index
    %54 = vector.load %arg3[%c0_36, %c0_37] : memref<8x1xf32, #tpu.memory_space<vmem>>, vector<8x1xf32>
    %55 = arith.mulf %44, %53 : vector<8x1xf32>
    %56 = arith.subf %54, %55 : vector<8x1xf32>
    %57 = vector.broadcast %53 : vector<8x1xf32> to vector<8x896xf32>
    %58 = arith.mulf %35, %57 : vector<8x896xf32>
    %59 = vector.broadcast %56 : vector<8x1xf32> to vector<8x896xf32>
    %60 = arith.addf %58, %59 : vector<8x896xf32>
    %cst_38 = arith.constant 0.000000e+00 : f32
    %61 = vector.broadcast %cst_38 : f32 to vector<8x896xf32>
    %62 = arith.maximumf %60, %61 : vector<8x896xf32>
    %63 = vector.broadcast %0 : vector<1x896xf32> to vector<8x896xf32>
    %64 = arith.mulf %62, %63 : vector<8x896xf32>
    %c0_39 = arith.constant 0 : index
    %c0_40 = arith.constant 0 : index
    %65 = vector.load %arg10[%c0_39, %c0_40] : memref<8x896xf32, #tpu.memory_space<vmem>>, vector<8x896xf32>
    tpu.vector_store %arg10[%c0_39, %c0_40], %64 {strides = array<i32>} : memref<8x896xf32, #tpu.memory_space<vmem>>, vector<8x896xf32>,
    %c0_41 = arith.constant 0 : index
    %c0_42 = arith.constant 0 : index
    %66 = vector.load %arg8[%c0_41, %c0_42] : memref<1x768xf32, #tpu.memory_space<vmem>>, vector<1x768xf32>
    %c0_43 = arith.constant 0 : index
    %c0_44 = arith.constant 0 : index
    %67 = vector.load %arg4[%c0_43, %c0_44] : memref<72x8xf32, #tpu.memory_space<vmem>>, vector<8x8xf32>
    %c0_45 = arith.constant 0 : index
    %c0_46 = arith.constant 0 : index
    %68 = vector.load %arg10[%c0_45, %c0_46] : memref<8x896xf32, #tpu.memory_space<vmem>>, vector<8x768xf32>
    %cst_47 = arith.constant dense<0.000000e+00> : vector<8x768xf32>
    %69 = tpu.matmul %67, %68, %cst_47 {dimension_numbers = #tpu.dot_dimension_numbers<[1], [0], [0], [1], [0, 0, 1, 1], [], []>} : vector<8x8xf32>, vector<8x768xf32>, vector<8x768xf32> -> vector<8x768xf32>
    %c8_48 = arith.constant 8 : index
    %c0_49 = arith.constant 0 : index
    %70 = vector.load %arg4[%c8_48, %c0_49] : memref<72x8xf32, #tpu.memory_space<vmem>>, vector<8x8xf32>
    %c0_50 = arith.constant 0 : index
    %c1_51 = arith.constant 1 : index
    %71 = vector.load %arg10[%c0_50, %c1_51] : memref<8x896xf32, #tpu.memory_space<vmem>>, vector<8x768xf32>
    %cst_52 = arith.constant dense<0.000000e+00> : vector<8x768xf32>
    %72 = tpu.matmul %70, %71, %cst_52 {dimension_numbers = #tpu.dot_dimension_numbers<[1], [0], [0], [1], [0, 0, 1, 1], [], []>} : vector<8x8xf32>, vector<8x768xf32>, vector<8x768xf32> -> vector<8x768xf32>
    %73 = arith.addf %69, %72 : vector<8x768xf32>
    %c16_53 = arith.constant 16 : index
    %c0_54 = arith.constant 0 : index
    %74 = vector.load %arg4[%c16_53, %c0_54] : memref<72x8xf32, #tpu.memory_space<vmem>>, vector<8x8xf32>
    %c0_55 = arith.constant 0 : index
    %c2_56 = arith.constant 2 : index
    %75 = vector.load %arg10[%c0_55, %c2_56] : memref<8x896xf32, #tpu.memory_space<vmem>>, vector<8x768xf32>
    %cst_57 = arith.constant dense<0.000000e+00> : vector<8x768xf32>
    %76 = tpu.matmul %74, %75, %cst_57 {dimension_numbers = #tpu.dot_dimension_numbers<[1], [0], [0], [1], [0, 0, 1, 1], [], []>} : vector<8x8xf32>, vector<8x768xf32>, vector<8x768xf32> -> vector<8x768xf32>
    %77 = arith.addf %73, %76 : vector<8x768xf32>
    %c24_58 = arith.constant 24 : index
    %c0_59 = arith.constant 0 : index
    %78 = vector.load %arg4[%c24_58, %c0_59] : memref<72x8xf32, #tpu.memory_space<vmem>>, vector<8x8xf32>
    %c0_60 = arith.constant 0 : index
    %c18_61 = arith.constant 18 : index
    %79 = vector.load %arg10[%c0_60, %c18_61] : memref<8x896xf32, #tpu.memory_space<vmem>>, vector<8x768xf32>
    %cst_62 = arith.constant dense<0.000000e+00> : vector<8x768xf32>
    %80 = tpu.matmul %78, %79, %cst_62 {dimension_numbers = #tpu.dot_dimension_numbers<[1], [0], [0], [1], [0, 0, 1, 1], [], []>} : vector<8x8xf32>, vector<8x768xf32>, vector<8x768xf32> -> vector<8x768xf32>
    %81 = arith.addf %77, %80 : vector<8x768xf32>
    %c32_63 = arith.constant 32 : index
    %c0_64 = arith.constant 0 : index
    %82 = vector.load %arg4[%c32_63, %c0_64] : memref<72x8xf32, #tpu.memory_space<vmem>>, vector<8x8xf32>
    %c0_65 = arith.constant 0 : index
    %c19_66 = arith.constant 19 : index
    %83 = vector.load %arg10[%c0_65, %c19_66] : memref<8x896xf32, #tpu.memory_space<vmem>>, vector<8x768xf32>
    %cst_67 = arith.constant dense<0.000000e+00> : vector<8x768xf32>
    %84 = tpu.matmul %82, %83, %cst_67 {dimension_numbers = #tpu.dot_dimension_numbers<[1], [0], [0], [1], [0, 0, 1, 1], [], []>} : vector<8x8xf32>, vector<8x768xf32>, vector<8x768xf32> -> vector<8x768xf32>
    %85 = arith.addf %81, %84 : vector<8x768xf32>
    %c40_68 = arith.constant 40 : index
    %c0_69 = arith.constant 0 : index
    %86 = vector.load %arg4[%c40_68, %c0_69] : memref<72x8xf32, #tpu.memory_space<vmem>>, vector<8x8xf32>
    %c0_70 = arith.constant 0 : index
    %c20_71 = arith.constant 20 : index
    %87 = vector.load %arg10[%c0_70, %c20_71] : memref<8x896xf32, #tpu.memory_space<vmem>>, vector<8x768xf32>
    %cst_72 = arith.constant dense<0.000000e+00> : vector<8x768xf32>
    %88 = tpu.matmul %86, %87, %cst_72 {dimension_numbers = #tpu.dot_dimension_numbers<[1], [0], [0], [1], [0, 0, 1, 1], [], []>} : vector<8x8xf32>, vector<8x768xf32>, vector<8x768xf32> -> vector<8x768xf32>
    %89 = arith.addf %85, %88 : vector<8x768xf32>
    %c48_73 = arith.constant 48 : index
    %c0_74 = arith.constant 0 : index
    %90 = vector.load %arg4[%c48_73, %c0_74] : memref<72x8xf32, #tpu.memory_space<vmem>>, vector<8x8xf32>
    %c0_75 = arith.constant 0 : index
    %c36_76 = arith.constant 36 : index
    %91 = vector.load %arg10[%c0_75, %c36_76] : memref<8x896xf32, #tpu.memory_space<vmem>>, vector<8x768xf32>
    %cst_77 = arith.constant dense<0.000000e+00> : vector<8x768xf32>
    %92 = tpu.matmul %90, %91, %cst_77 {dimension_numbers = #tpu.dot_dimension_numbers<[1], [0], [0], [1], [0, 0, 1, 1], [], []>} : vector<8x8xf32>, vector<8x768xf32>, vector<8x768xf32> -> vector<8x768xf32>
    %93 = arith.addf %89, %92 : vector<8x768xf32>
    %c56_78 = arith.constant 56 : index
    %c0_79 = arith.constant 0 : index
    %94 = vector.load %arg4[%c56_78, %c0_79] : memref<72x8xf32, #tpu.memory_space<vmem>>, vector<8x8xf32>
    %c0_80 = arith.constant 0 : index
    %c37_81 = arith.constant 37 : index
    %95 = vector.load %arg10[%c0_80, %c37_81] : memref<8x896xf32, #tpu.memory_space<vmem>>, vector<8x768xf32>
    %cst_82 = arith.constant dense<0.000000e+00> : vector<8x768xf32>
    %96 = tpu.matmul %94, %95, %cst_82 {dimension_numbers = #tpu.dot_dimension_numbers<[1], [0], [0], [1], [0, 0, 1, 1], [], []>} : vector<8x8xf32>, vector<8x768xf32>, vector<8x768xf32> -> vector<8x768xf32>
    %97 = arith.addf %93, %96 : vector<8x768xf32>
    %c64_83 = arith.constant 64 : index
    %c0_84 = arith.constant 0 : index
    %98 = vector.load %arg4[%c64_83, %c0_84] : memref<72x8xf32, #tpu.memory_space<vmem>>, vector<8x8xf32>
    %c0_85 = arith.constant 0 : index
    %c38_86 = arith.constant 38 : index
    %99 = vector.load %arg10[%c0_85, %c38_86] : memref<8x896xf32, #tpu.memory_space<vmem>>, vector<8x768xf32>
    %cst_87 = arith.constant dense<0.000000e+00> : vector<8x768xf32>
    %100 = tpu.matmul %98, %99, %cst_87 {dimension_numbers = #tpu.dot_dimension_numbers<[1], [0], [0], [1], [0, 0, 1, 1], [], []>} : vector<8x8xf32>, vector<8x768xf32>, vector<8x768xf32> -> vector<8x768xf32>
    %101 = arith.addf %97, %100 : vector<8x768xf32>
    %102 = vector.broadcast %66 : vector<1x768xf32> to vector<8x768xf32>
    %103 = arith.mulf %101, %102 : vector<8x768xf32>
    %cst_88 = arith.constant dense<0.000000e+00> : vector<8xf32>
    %104 = vector.multi_reduction <add>, %103, %cst_88 [1] : vector<8x768xf32> to vector<8xf32>
    %105 = vector.shape_cast %104 : vector<8xf32> to vector<8x1xf32>
    %106 = arith.mulf %103, %101 : vector<8x768xf32>
    %cst_89 = arith.constant dense<0.000000e+00> : vector<8xf32>
    %107 = vector.multi_reduction <add>, %106, %cst_89 [1] : vector<8x768xf32> to vector<8xf32>
    %108 = vector.shape_cast %107 : vector<8xf32> to vector<8x1xf32>
    %cst_90 = arith.constant 0.001953125 : f32
    %109 = vector.broadcast %cst_90 : f32 to vector<8x1xf32>
    %110 = arith.mulf %105, %109 : vector<8x1xf32>
    %cst_91 = arith.constant 0.001953125 : f32
    %111 = vector.broadcast %cst_91 : f32 to vector<8x1xf32>
    %112 = arith.mulf %108, %111 : vector<8x1xf32>
    %113 = arith.mulf %110, %110 : vector<8x1xf32>
    %114 = arith.subf %112, %113 : vector<8x1xf32>
    %c0_92 = arith.constant 0 : index
    %c0_93 = arith.constant 0 : index
    %115 = vector.load %arg5[%c0_92, %c0_93] : memref<8x1xf32, #tpu.memory_space<vmem>>, vector<8x1xf32>
    %cst_94 = arith.constant 9.99999974E-6 : f32
    %116 = vector.broadcast %cst_94 : f32 to vector<8x1xf32>
    %117 = arith.addf %114, %116 : vector<8x1xf32>
    %118 = math.rsqrt %117 : vector<8x1xf32>
    %119 = arith.mulf %115, %118 : vector<8x1xf32>
    %c0_95 = arith.constant 0 : index
    %c0_96 = arith.constant 0 : index
    %120 = vector.load %arg6[%c0_95, %c0_96] : memref<8x1xf32, #tpu.memory_space<vmem>>, vector<8x1xf32>
    %121 = arith.mulf %110, %119 : vector<8x1xf32>
    %122 = arith.subf %120, %121 : vector<8x1xf32>
    %123 = vector.broadcast %119 : vector<8x1xf32> to vector<8x768xf32>
    %124 = arith.mulf %101, %123 : vector<8x768xf32>
    %125 = vector.broadcast %122 : vector<8x1xf32> to vector<8x768xf32>
    %126 = arith.addf %124, %125 : vector<8x768xf32>
    %c0_97 = arith.constant 0 : index
    %c38_98 = arith.constant 38 : index
    %127 = vector.load %arg0[%c0_97, %c38_98] : memref<8x1024xf32, #tpu.memory_space<vmem>>, vector<8x768xf32>
    %128 = arith.addf %126, %127 : vector<8x768xf32>
    %cst_99 = arith.constant 0.000000e+00 : f32
    %129 = vector.broadcast %cst_99 : f32 to vector<8x768xf32>
    %130 = arith.maximumf %128, %129 : vector<8x768xf32>
    %c0_100 = arith.constant 0 : index
    %c0_101 = arith.constant 0 : index
    %131 = vector.load %arg9[%c0_100, %c0_101] : memref<8x768xf32, #tpu.memory_space<vmem>>, vector<8x768xf32>
    tpu.vector_store %arg9[%c0_100, %c0_101], %130 {strides = array<i32>} : memref<8x768xf32, #tpu.memory_space<vmem>>, vector<8x768xf32>,
    return
  }
}

</mosaic_0001>

<llo_original>
// kernel: basic_block_forward.1
$region0: #{basic_block_forward.1}
  #allocation0 [shape = 'u32[]', space=smem, size = 0x4, offset = 0x4, fixed_abs, tag = 'smem constant byte address 0x4 - core index']
  #allocation1 [shape = 'u32[144,128]{1,0:T(1,128)}', space=vmem, size = 0x12000, scoped, tag = 'internal scratch']
  #allocation2 [shape = 'f32[8,896]{1,0:T(8,128)}', space=vmem, size = 0x7000, scoped, tag = 'scratch operand']
  %s0 = inlined_call_operand.vmem [shape: f32[8,1024], index: 0, kind: input, shape index: {}]
  %s1 = inlined_call_operand.vmem [shape: f32[72,8], index: 1, kind: input, shape index: {}]
  %s2 = inlined_call_operand.vmem [shape: f32[8,1], index: 2, kind: input, shape index: {}]
  %s3 = inlined_call_operand.vmem [shape: f32[8,1], index: 3, kind: input, shape index: {}]
  %s4 = inlined_call_operand.vmem [shape: f32[72,8], index: 4, kind: input, shape index: {}]
  %s5 = inlined_call_operand.vmem [shape: f32[8,1], index: 5, kind: input, shape index: {}]
  %s6 = inlined_call_operand.vmem [shape: f32[8,1], index: 6, kind: input, shape index: {}]
  %s7 = inlined_call_operand.vmem [shape: f32[1,896], index: 7, kind: input, shape index: {}]
  %s8 = inlined_call_operand.vmem [shape: f32[1,768], index: 8, kind: input, shape index: {}]
  %s9 = inlined_call_operand.vmem [shape: f32[8,768], index: 9, kind: output, shape index: {}]
  %s10 = sld [smem:[#allocation0]]
  $region46: #{basic_block_forward.1} parent=0
    _
  %s12 = ssub.s32 1, %s10
  %s13 = scalar_select 0, %s12, %s10
  // Predicated region
  $region2: #{basic_block_forward.1} parent=0 // pred_check
    _
  $region3: #{basic_block_forward.1} parent=0 // pred_check_branch
    %15 = sbr.rel (0) target = $region5
  $region4: #{basic_block_forward.1} parent=0 // pred_region
    _
  $region5: #{basic_block_forward.1} parent=0 // pred_fallthru
    _
  // Predicated region
  $region6: #{basic_block_forward.1} parent=0 // pred_check
    _
  $region7: #{basic_block_forward.1} parent=0 // pred_check_branch
    %17 = sbr.rel (0) target = $region9
  $region8: #{basic_block_forward.1} parent=0 // pred_region
    _
  $region9: #{basic_block_forward.1} parent=0 // pred_fallthru
    _
  // Predicated region
  $region10: #{basic_block_forward.1} parent=0 // pred_check
    _
  $region11: #{basic_block_forward.1} parent=0 // pred_check_branch
    %19 = sbr.rel (0) target = $region13
  $region12: #{basic_block_forward.1} parent=0 // pred_region
    _
  $region13: #{basic_block_forward.1} parent=0 // pred_fallthru
    _
  // Predicated region
  $region14: #{basic_block_forward.1} parent=0 // pred_check
    _
  $region15: #{basic_block_forward.1} parent=0 // pred_check_branch
    %21 = sbr.rel (0) target = $region17
  $region16: #{basic_block_forward.1} parent=0 // pred_region
    _
  $region17: #{basic_block_forward.1} parent=0 // pred_fallthru
    _
  // Predicated region
  $region18: #{basic_block_forward.1} parent=0 // pred_check
    _
  $region19: #{basic_block_forward.1} parent=0 // pred_check_branch
    %23 = sbr.rel (0) target = $region21
  $region20: #{basic_block_forward.1} parent=0 // pred_region
    _
  $region21: #{basic_block_forward.1} parent=0 // pred_fallthru
    _
  // Predicated region
  $region22: #{basic_block_forward.1} parent=0 // pred_check
    _
  $region23: #{basic_block_forward.1} parent=0 // pred_check_branch
    %25 = sbr.rel (0) target = $region25
  $region24: #{basic_block_forward.1} parent=0 // pred_region
    _
  $region25: #{basic_block_forward.1} parent=0 // pred_fallthru
    _
  // Predicated region
  $region26: #{basic_block_forward.1} parent=0 // pred_check
    _
  $region27: #{basic_block_forward.1} parent=0 // pred_check_branch
    %27 = sbr.rel (0) target = $region29
  $region28: #{basic_block_forward.1} parent=0 // pred_region
    _
  $region29: #{basic_block_forward.1} parent=0 // pred_fallthru
    _
  // Predicated region
  $region30: #{basic_block_forward.1} parent=0 // pred_check
    _
  $region31: #{basic_block_forward.1} parent=0 // pred_check_branch
    %29 = sbr.rel (0) target = $region33
  $region32: #{basic_block_forward.1} parent=0 // pred_region
    _
  $region33: #{basic_block_forward.1} parent=0 // pred_fallthru
    _
  // Predicated region
  $region34: #{basic_block_forward.1} parent=0 // pred_check
    _
  $region35: #{basic_block_forward.1} parent=0 // pred_check_branch
    %31 = sbr.rel (0) target = $region37
  $region36: #{basic_block_forward.1} parent=0 // pred_region
    _
  $region37: #{basic_block_forward.1} parent=0 // pred_fallthru
    _
  %v32 = vld [vmem:[%s7] sm:$0xff]
  %v33 = vld [vmem:[%s1] sm:$0xff]
  %v34 = vld [vmem:[%s0] sm:$0xff]
  %v35 = vld [vmem:[%s0 + $0x8] sm:$0xff]
  %v36 = vld [vmem:[%s0 + $0x10] sm:$0xff]
  %v37 = vld [vmem:[%s0 + $0x18] sm:$0xff]
  %v38 = vld [vmem:[%s0 + $0x20] sm:$0xff]
  %v39 = vld [vmem:[%s0 + $0x28] sm:$0xff]
  %v40 = vld [vmem:[%s0 + $0x30] sm:$0xff]
  %v41 = vld [vmem:[%s1 + $0x8] sm:$0xff]
  %v42 = vld [vmem:[%s0] sm:$0xff]
  %v43 = vld [vmem:[%s0 + $0x8] sm:$0xff]
  %v44 = vld [vmem:[%s0 + $0x10] sm:$0xff]
  %v45 = vld [vmem:[%s0 + $0x18] sm:$0xff]
  %v46 = vld [vmem:[%s0 + $0x20] sm:$0xff]
  %v47 = vld [vmem:[%s0 + $0x28] sm:$0xff]
  %v48 = vld [vmem:[%s0 + $0x30] sm:$0xff]
  %v49 = vld [vmem:[%s0 + $0x38] sm:$0xff]
  %58 = vrot.lane.b32.xlu0 %v42, 127
  %v59 = vpop.permute.xlu0 %58
  %60 = vrot.lane.b32.xlu0 %v43, 127
  %v61 = vpop.permute.xlu0 %60
  %62 = vrot.lane.b32.xlu0 %v44, 127
  %v63 = vpop.permute.xlu0 %62
  %64 = vrot.lane.b32.xlu0 %v45, 127
  %v65 = vpop.permute.xlu0 %64
  %66 = vrot.lane.b32.xlu0 %v46, 127
  %v67 = vpop.permute.xlu0 %66
  %68 = vrot.lane.b32.xlu0 %v47, 127
  %v69 = vpop.permute.xlu0 %68
  %70 = vrot.lane.b32.xlu0 %v48, 127
  %v71 = vpop.permute.xlu0 %70
  %72 = vrot.lane.b32.xlu0 %v49, 127
  %v73 = vpop.permute.xlu0 %72
  %vm74 = vcmask 1039360
  %v75 = vsel %vm74, %v59, %v61
  %v76 = vsel %vm74, %v61, %v63
  %v77 = vsel %vm74, %v63, %v65
  %v78 = vsel %vm74, %v65, %v67
  %v79 = vsel %vm74, %v67, %v69
  %v80 = vsel %vm74, %v69, %v71
  %v81 = vsel %vm74, %v71, %v73
  %vm89 = vcmask 64512
  %v91 = vsel %vm89, %v41, 0
  %93 = vmatprep.subr.mxu0 %v76
  %94 = vmatpush1.msra.mxu0 %v75
  %95 = vmatprep.subr.mxu0 0.0
  %96 = vmatpush1.msra.mxu0 0.0
  %97 = vmatprep.subr.mxu0 0.0
  %98 = vmatpush1.msra.mxu0 0.0
  %99 = vmatprep.subr.mxu0 0.0
  %100 = vmatpush1.msra.mxu0 0.0
  %101 = vmatprep.subr.mxu0 0.0
  %102 = vmatpush1.msra.mxu0 0.0
  %103 = vmatprep.subr.mxu0 0.0
  %104 = vmatpush1.msra.mxu0 0.0
  %105 = vmatprep.subr.mxu0 0.0
  %106 = vmatpush1.msra.mxu0 0.0
  %107 = vmatprep.subr.mxu0 0.0
  %108 = vmatpush1.msra.mxu0 0.0
  %109 = vmatprep.subr.mxu0 0.0
  %110 = vmatpush1.msra.mxu0 0.0
  %111 = vmatprep.subr.mxu0 0.0
  %112 = vmatpush1.msra.mxu0 0.0
  %113 = vmatprep.subr.mxu0 0.0
  %114 = vmatpush1.msra.mxu0 0.0
  %115 = vmatprep.subr.mxu0 0.0
  %116 = vmatpush1.msra.mxu0 0.0
  %117 = vmatprep.subr.mxu0 0.0
  %118 = vmatpush1.msra.mxu0 0.0
  %119 = vmatprep.subr.mxu0 0.0
  %120 = vmatpush1.msra.mxu0 0.0
  %121 = vmatprep.subr.mxu0 0.0
  %122 = vmatpush1.msra.mxu0 0.0
  %123 = vmatprep.subr.mxu0 0.0
  %124 = vmatpush1.msra.mxu0 0.0
  %125 = vmatprep.subr.mxu0 0.0
  %126 = vmatpush1.msra.mxu0 0.0
  %127 = vmatprep.subr.mxu0 0.0
  %128 = vmatpush1.msra.mxu0 0.0
  %129 = vmatprep.subr.mxu0 0.0
  %130 = vmatpush1.msra.mxu0 0.0
  %131 = vmatprep.subr.mxu0 0.0
  %132 = vmatpush1.msra.mxu0 0.0
  %133 = vmatprep.subr.mxu0 0.0
  %134 = vmatpush1.msra.mxu0 0.0
  %135 = vmatprep.subr.mxu0 0.0
  %136 = vmatpush1.msra.mxu0 0.0
  %137 = vmatprep.subr.mxu0 0.0
  %138 = vmatpush1.msra.mxu0 0.0
  %139 = vmatprep.subr.mxu0 0.0
  %140 = vmatpush1.msra.mxu0 0.0
  %141 = vmatprep.subr.mxu0 0.0
  %142 = vmatpush1.msra.mxu0 0.0
  %143 = vmatprep.subr.mxu0 0.0
  %144 = vmatpush1.msra.mxu0 0.0
  %145 = vmatprep.subr.mxu0 0.0
  %146 = vmatpush1.msra.mxu0 0.0
  %147 = vmatprep.subr.mxu0 0.0
  %148 = vmatpush1.msra.mxu0 0.0
  %149 = vmatprep.subr.mxu0 0.0
  %150 = vmatpush1.msra.mxu0 0.0
  %151 = vmatprep.subr.mxu0 0.0
  %152 = vmatpush1.msra.mxu0 0.0
  %153 = vmatprep.subr.mxu0 0.0
  %154 = vmatpush1.msra.mxu0 0.0
  %155 = vmatprep.subr.mxu0 0.0
  %156 = vmatpush1.msra.mxu0 0.0
  %157 = vmatprep.mubr.f32.mxu0 0.0
  %158 = vmatmul.mubr.f32.gmra.mrb[0].mxu0 %v91
  %v159 = vpop.f32.mrb[0].mxu0
  %v160 = vadd.f32 0.0, %v159
  %v161 = vpop.f32.mrb[0].mxu0
  %v162 = vadd.f32 0.0, %v161
  %163 = vdwg.mxu0
  %164 = vmatprep.subr.mxu0 %v78
  %165 = vmatpush1.msra.mxu0 %v77
  %166 = vmatprep.subr.mxu0 0.0
  %167 = vmatpush1.msra.mxu0 0.0
  %168 = vmatprep.subr.mxu0 0.0
  %169 = vmatpush1.msra.mxu0 0.0
  %170 = vmatprep.subr.mxu0 0.0
  %171 = vmatpush1.msra.mxu0 0.0
  %172 = vmatprep.subr.mxu0 0.0
  %173 = vmatpush1.msra.mxu0 0.0
  %174 = vmatprep.subr.mxu0 0.0
  %175 = vmatpush1.msra.mxu0 0.0
  %176 = vmatprep.subr.mxu0 0.0
  %177 = vmatpush1.msra.mxu0 0.0
  %178 = vmatprep.subr.mxu0 0.0
  %179 = vmatpush1.msra.mxu0 0.0
  %180 = vmatprep.subr.mxu0 0.0
  %181 = vmatpush1.msra.mxu0 0.0
  %182 = vmatprep.subr.mxu0 0.0
  %183 = vmatpush1.msra.mxu0 0.0
  %184 = vmatprep.subr.mxu0 0.0
  %185 = vmatpush1.msra.mxu0 0.0
  %186 = vmatprep.subr.mxu0 0.0
  %187 = vmatpush1.msra.mxu0 0.0
  %188 = vmatprep.subr.mxu0 0.0
  %189 = vmatpush1.msra.mxu0 0.0
  %190 = vmatprep.subr.mxu0 0.0
  %191 = vmatpush1.msra.mxu0 0.0
  %192 = vmatprep.subr.mxu0 0.0
  %193 = vmatpush1.msra.mxu0 0.0
  %194 = vmatprep.subr.mxu0 0.0
  %195 = vmatpush1.msra.mxu0 0.0
  %196 = vmatprep.subr.mxu0 0.0
  %197 = vmatpush1.msra.mxu0 0.0
  %198 = vmatprep.subr.mxu0 0.0
  %199 = vmatpush1.msra.mxu0 0.0
  %200 = vmatprep.subr.mxu0 0.0
  %201 = vmatpush1.msra.mxu0 0.0
  %202 = vmatprep.subr.mxu0 0.0
  %203 = vmatpush1.msra.mxu0 0.0
  %204 = vmatprep.subr.mxu0 0.0
  %205 = vmatpush1.msra.mxu0 0.0
  %206 = vmatprep.subr.mxu0 0.0
  %207 = vmatpush1.msra.mxu0 0.0
  %208 = vmatprep.subr.mxu0 0.0
  %209 = vmatpush1.msra.mxu0 0.0
  %210 = vmatprep.subr.mxu0 0.0
  %211 = vmatpush1.msra.mxu0 0.0
  %212 = vmatprep.subr.mxu0 0.0
  %213 = vmatpush1.msra.mxu0 0.0
  %214 = vmatprep.subr.mxu0 0.0
  %215 = vmatpush1.msra.mxu0 0.0
  %216 = vmatprep.subr.mxu0 0.0
  %217 = vmatpush1.msra.mxu0 0.0
  %218 = vmatprep.subr.mxu0 0.0
  %219 = vmatpush1.msra.mxu0 0.0
  %220 = vmatprep.subr.mxu0 0.0
  %221 = vmatpush1.msra.mxu0 0.0
  %222 = vmatprep.subr.mxu0 0.0
  %223 = vmatpush1.msra.mxu0 0.0
  %224 = vmatprep.subr.mxu0 0.0
  %225 = vmatpush1.msra.mxu0 0.0
  %226 = vmatprep.subr.mxu0 0.0
  %227 = vmatpush1.msra.mxu0 0.0
  %228 = vmatprep.mubr.f32.mxu0 0.0
  %229 = vmatmul.mubr.f32.gmra.mrb[0].mxu0 %v91
  %v230 = vpop.f32.mrb[0].mxu0
  %v231 = vadd.f32 0.0, %v230
  %v232 = vpop.f32.mrb[0].mxu0
  %v233 = vadd.f32 0.0, %v232
  %234 = vdwg.mxu0
  %235 = vmatprep.subr.mxu0 %v80
  %236 = vmatpush1.msra.mxu0 %v79
  %237 = vmatprep.subr.mxu0 0.0
  %238 = vmatpush1.msra.mxu0 0.0
  %239 = vmatprep.subr.mxu0 0.0
  %240 = vmatpush1.msra.mxu0 0.0
  %241 = vmatprep.subr.mxu0 0.0
  %242 = vmatpush1.msra.mxu0 0.0
  %243 = vmatprep.subr.mxu0 0.0
  %244 = vmatpush1.msra.mxu0 0.0
  %245 = vmatprep.subr.mxu0 0.0
  %246 = vmatpush1.msra.mxu0 0.0
  %247 = vmatprep.subr.mxu0 0.0
  %248 = vmatpush1.msra.mxu0 0.0
  %249 = vmatprep.subr.mxu0 0.0
  %250 = vmatpush1.msra.mxu0 0.0
  %251 = vmatprep.subr.mxu0 0.0
  %252 = vmatpush1.msra.mxu0 0.0
  %253 = vmatprep.subr.mxu0 0.0
  %254 = vmatpush1.msra.mxu0 0.0
  %255 = vmatprep.subr.mxu0 0.0
  %256 = vmatpush1.msra.mxu0 0.0
  %257 = vmatprep.subr.mxu0 0.0
  %258 = vmatpush1.msra.mxu0 0.0
  %259 = vmatprep.subr.mxu0 0.0
  %260 = vmatpush1.msra.mxu0 0.0
  %261 = vmatprep.subr.mxu0 0.0
  %262 = vmatpush1.msra.mxu0 0.0
  %263 = vmatprep.subr.mxu0 0.0
  %264 = vmatpush1.msra.mxu0 0.0
  %265 = vmatprep.subr.mxu0 0.0
  %266 = vmatpush1.msra.mxu0 0.0
  %267 = vmatprep.subr.mxu0 0.0
  %268 = vmatpush1.msra.mxu0 0.0
  %269 = vmatprep.subr.mxu0 0.0
  %270 = vmatpush1.msra.mxu0 0.0
  %271 = vmatprep.subr.mxu0 0.0
  %272 = vmatpush1.msra.mxu0 0.0
  %273 = vmatprep.subr.mxu0 0.0
  %274 = vmatpush1.msra.mxu0 0.0
  %275 = vmatprep.subr.mxu0 0.0
  %276 = vmatpush1.msra.mxu0 0.0
  %277 = vmatprep.subr.mxu0 0.0
  %278 = vmatpush1.msra.mxu0 0.0
  %279 = vmatprep.subr.mxu0 0.0
  %280 = vmatpush1.msra.mxu0 0.0
  %281 = vmatprep.subr.mxu0 0.0
  %282 = vmatpush1.msra.mxu0 0.0
  %283 = vmatprep.subr.mxu0 0.0
  %284 = vmatpush1.msra.mxu0 0.0
  %285 = vmatprep.subr.mxu0 0.0
  %286 = vmatpush1.msra.mxu0 0.0
  %287 = vmatprep.subr.mxu0 0.0
  %288 = vmatpush1.msra.mxu0 0.0
  %289 = vmatprep.subr.mxu0 0.0
  %290 = vmatpush1.msra.mxu0 0.0
  %291 = vmatprep.subr.mxu0 0.0
  %292 = vmatpush1.msra.mxu0 0.0
  %293 = vmatprep.subr.mxu0 0.0
  %294 = vmatpush1.msra.mxu0 0.0
  %295 = vmatprep.subr.mxu0 0.0
  %296 = vmatpush1.msra.mxu0 0.0
  %297 = vmatprep.subr.mxu0 0.0
  %298 = vmatpush1.msra.mxu0 0.0
  %299 = vmatprep.mubr.f32.mxu0 0.0
  %300 = vmatmul.mubr.f32.gmra.mrb[0].mxu0 %v91
  %v301 = vpop.f32.mrb[0].mxu0
  %v302 = vadd.f32 0.0, %v301
  %v303 = vpop.f32.mrb[0].mxu0
  %v304 = vadd.f32 0.0, %v303
  %305 = vdwg.mxu0
  %306 = vmatprep.subr.mxu0 0.0
  %307 = vmatpush1.msra.mxu0 %v81
  %308 = vmatprep.subr.mxu0 0.0
  %309 = vmatpush1.msra.mxu0 0.0
  %310 = vmatprep.subr.mxu0 0.0
  %311 = vmatpush1.msra.mxu0 0.0
  %312 = vmatprep.subr.mxu0 0.0
  %313 = vmatpush1.msra.mxu0 0.0
  %314 = vmatprep.subr.mxu0 0.0
  %315 = vmatpush1.msra.mxu0 0.0
  %316 = vmatprep.subr.mxu0 0.0
  %317 = vmatpush1.msra.mxu0 0.0
  %318 = vmatprep.subr.mxu0 0.0
  %319 = vmatpush1.msra.mxu0 0.0
  %320 = vmatprep.subr.mxu0 0.0
  %321 = vmatpush1.msra.mxu0 0.0
  %322 = vmatprep.subr.mxu0 0.0
  %323 = vmatpush1.msra.mxu0 0.0
  %324 = vmatprep.subr.mxu0 0.0
  %325 = vmatpush1.msra.mxu0 0.0
  %326 = vmatprep.subr.mxu0 0.0
  %327 = vmatpush1.msra.mxu0 0.0
  %328 = vmatprep.subr.mxu0 0.0
  %329 = vmatpush1.msra.mxu0 0.0
  %330 = vmatprep.subr.mxu0 0.0
  %331 = vmatpush1.msra.mxu0 0.0
  %332 = vmatprep.subr.mxu0 0.0
  %333 = vmatpush1.msra.mxu0 0.0
  %334 = vmatprep.subr.mxu0 0.0
  %335 = vmatpush1.msra.mxu0 0.0
  %336 = vmatprep.subr.mxu0 0.0
  %337 = vmatpush1.msra.mxu0 0.0
  %338 = vmatprep.subr.mxu0 0.0
  %339 = vmatpush1.msra.mxu0 0.0
  %340 = vmatprep.subr.mxu0 0.0
  %341 = vmatpush1.msra.mxu0 0.0
  %342 = vmatprep.subr.mxu0 0.0
  %343 = vmatpush1.msra.mxu0 0.0
  %344 = vmatprep.subr.mxu0 0.0
  %345 = vmatpush1.msra.mxu0 0.0
  %346 = vmatprep.subr.mxu0 0.0
  %347 = vmatpush1.msra.mxu0 0.0
  %348 = vmatprep.subr.mxu0 0.0
  %349 = vmatpush1.msra.mxu0 0.0
  %350 = vmatprep.subr.mxu0 0.0
  %351 = vmatpush1.msra.mxu0 0.0
  %352 = vmatprep.subr.mxu0 0.0
  %353 = vmatpush1.msra.mxu0 0.0
  %354 = vmatprep.subr.mxu0 0.0
  %355 = vmatpush1.msra.mxu0 0.0
  %356 = vmatprep.subr.mxu0 0.0
  %357 = vmatpush1.msra.mxu0 0.0
  %358 = vmatprep.subr.mxu0 0.0
  %359 = vmatpush1.msra.mxu0 0.0
  %360 = vmatprep.subr.mxu0 0.0
  %361 = vmatpush1.msra.mxu0 0.0
  %362 = vmatprep.subr.mxu0 0.0
  %363 = vmatpush1.msra.mxu0 0.0
  %364 = vmatprep.subr.mxu0 0.0
  %365 = vmatpush1.msra.mxu0 0.0
  %366 = vmatprep.subr.mxu0 0.0
  %367 = vmatpush1.msra.mxu0 0.0
  %368 = vmatprep.subr.mxu0 0.0
  %369 = vmatpush1.msra.mxu0 0.0
  %370 = vmatprep.mubr.f32.mxu0 0.0
  %371 = vmatmul.mubr.f32.gmra.mrb[0].mxu0 %v91
  %v372 = vpop.f32.mrb[0].mxu0
  %v373 = vadd.f32 0.0, %v372
  %v374 = vpop.f32.mrb[0].mxu0
  %375 = vdwg.mxu0
  %v377 = vsel %vm89, %v33, 0
  %379 = vmatprep.subr.mxu0 %v35
  %380 = vmatpush1.msra.mxu0 %v34
  %381 = vmatprep.subr.mxu0 0.0
  %382 = vmatpush1.msra.mxu0 0.0
  %383 = vmatprep.subr.mxu0 0.0
  %384 = vmatpush1.msra.mxu0 0.0
  %385 = vmatprep.subr.mxu0 0.0
  %386 = vmatpush1.msra.mxu0 0.0
  %387 = vmatprep.subr.mxu0 0.0
  %388 = vmatpush1.msra.mxu0 0.0
  %389 = vmatprep.subr.mxu0 0.0
  %390 = vmatpush1.msra.mxu0 0.0
  %391 = vmatprep.subr.mxu0 0.0
  %392 = vmatpush1.msra.mxu0 0.0
  %393 = vmatprep.subr.mxu0 0.0
  %394 = vmatpush1.msra.mxu0 0.0
  %395 = vmatprep.subr.mxu0 0.0
  %396 = vmatpush1.msra.mxu0 0.0
  %397 = vmatprep.subr.mxu0 0.0
  %398 = vmatpush1.msra.mxu0 0.0
  %399 = vmatprep.subr.mxu0 0.0
  %400 = vmatpush1.msra.mxu0 0.0
  %401 = vmatprep.subr.mxu0 0.0
  %402 = vmatpush1.msra.mxu0 0.0
  %403 = vmatprep.subr.mxu0 0.0
  %404 = vmatpush1.msra.mxu0 0.0
  %405 = vmatprep.subr.mxu0 0.0
  %406 = vmatpush1.msra.mxu0 0.0
  %407 = vmatprep.subr.mxu0 0.0
  %408 = vmatpush1.msra.mxu0 0.0
  %409 = vmatprep.subr.mxu0 0.0
  %410 = vmatpush1.msra.mxu0 0.0
  %411 = vmatprep.subr.mxu0 0.0
  %412 = vmatpush1.msra.mxu0 0.0
  %413 = vmatprep.subr.mxu0 0.0
  %414 = vmatpush1.msra.mxu0 0.0
  %415 = vmatprep.subr.mxu0 0.0
  %416 = vmatpush1.msra.mxu0 0.0
  %417 = vmatprep.subr.mxu0 0.0
  %418 = vmatpush1.msra.mxu0 0.0
  %419 = vmatprep.subr.mxu0 0.0
  %420 = vmatpush1.msra.mxu0 0.0
  %421 = vmatprep.subr.mxu0 0.0
  %422 = vmatpush1.msra.mxu0 0.0
  %423 = vmatprep.subr.mxu0 0.0
  %424 = vmatpush1.msra.mxu0 0.0
  %425 = vmatprep.subr.mxu0 0.0
  %426 = vmatpush1.msra.mxu0 0.0
  %427 = vmatprep.subr.mxu0 0.0
  %428 = vmatpush1.msra.mxu0 0.0
  %429 = vmatprep.subr.mxu0 0.0
  %430 = vmatpush1.msra.mxu0 0.0
  %431 = vmatprep.subr.mxu0 0.0
  %432 = vmatpush1.msra.mxu0 0.0
  %433 = vmatprep.subr.mxu0 0.0
  %434 = vmatpush1.msra.mxu0 0.0
  %435 = vmatprep.subr.mxu0 0.0
  %436 = vmatpush1.msra.mxu0 0.0
  %437 = vmatprep.subr.mxu0 0.0
  %438 = vmatpush1.msra.mxu0 0.0
  %439 = vmatprep.subr.mxu0 0.0
  %440 = vmatpush1.msra.mxu0 0.0
  %441 = vmatprep.subr.mxu0 0.0
  %442 = vmatpush1.msra.mxu0 0.0
  %443 = vmatprep.mubr.f32.mxu0 0.0
  %444 = vmatmul.mubr.f32.gmra.mrb[0].mxu0 %v377
  %v445 = vpop.f32.mrb[0].mxu0
  %v446 = vadd.f32 %v160, %v445
  %v447 = vpop.f32.mrb[0].mxu0
  %v448 = vadd.f32 %v162, %v447
  %449 = vdwg.mxu0
  %450 = vmatprep.subr.mxu0 %v37
  %451 = vmatpush1.msra.mxu0 %v36
  %452 = vmatprep.subr.mxu0 0.0
  %453 = vmatpush1.msra.mxu0 0.0
  %454 = vmatprep.subr.mxu0 0.0
  %455 = vmatpush1.msra.mxu0 0.0
  %456 = vmatprep.subr.mxu0 0.0
  %457 = vmatpush1.msra.mxu0 0.0
  %458 = vmatprep.subr.mxu0 0.0
  %459 = vmatpush1.msra.mxu0 0.0
  %460 = vmatprep.subr.mxu0 0.0
  %461 = vmatpush1.msra.mxu0 0.0
  %462 = vmatprep.subr.mxu0 0.0
  %463 = vmatpush1.msra.mxu0 0.0
  %464 = vmatprep.subr.mxu0 0.0
  %465 = vmatpush1.msra.mxu0 0.0
  %466 = vmatprep.subr.mxu0 0.0
  %467 = vmatpush1.msra.mxu0 0.0
  %468 = vmatprep.subr.mxu0 0.0
  %469 = vmatpush1.msra.mxu0 0.0
  %470 = vmatprep.subr.mxu0 0.0
  %471 = vmatpush1.msra.mxu0 0.0
  %472 = vmatprep.subr.mxu0 0.0
  %473 = vmatpush1.msra.mxu0 0.0
  %474 = vmatprep.subr.mxu0 0.0
  %475 = vmatpush1.msra.mxu0 0.0
  %476 = vmatprep.subr.mxu0 0.0
  %477 = vmatpush1.msra.mxu0 0.0
  %478 = vmatprep.subr.mxu0 0.0
  %479 = vmatpush1.msra.mxu0 0.0
  %480 = vmatprep.subr.mxu0 0.0
  %481 = vmatpush1.msra.mxu0 0.0
  %482 = vmatprep.subr.mxu0 0.0
  %483 = vmatpush1.msra.mxu0 0.0
  %484 = vmatprep.subr.mxu0 0.0
  %485 = vmatpush1.msra.mxu0 0.0
  %486 = vmatprep.subr.mxu0 0.0
  %487 = vmatpush1.msra.mxu0 0.0
  %488 = vmatprep.subr.mxu0 0.0
  %489 = vmatpush1.msra.mxu0 0.0
  %490 = vmatprep.subr.mxu0 0.0
  %491 = vmatpush1.msra.mxu0 0.0
  %492 = vmatprep.subr.mxu0 0.0
  %493 = vmatpush1.msra.mxu0 0.0
  %494 = vmatprep.subr.mxu0 0.0
  %495 = vmatpush1.msra.mxu0 0.0
  %496 = vmatprep.subr.mxu0 0.0
  %497 = vmatpush1.msra.mxu0 0.0
  %498 = vmatprep.subr.mxu0 0.0
  %499 = vmatpush1.msra.mxu0 0.0
  %500 = vmatprep.subr.mxu0 0.0
  %501 = vmatpush1.msra.mxu0 0.0
  %502 = vmatprep.subr.mxu0 0.0
  %503 = vmatpush1.msra.mxu0 0.0
  %504 = vmatprep.subr.mxu0 0.0
  %505 = vmatpush1.msra.mxu0 0.0
  %506 = vmatprep.subr.mxu0 0.0
  %507 = vmatpush1.msra.mxu0 0.0
  %508 = vmatprep.subr.mxu0 0.0
  %509 = vmatpush1.msra.mxu0 0.0
  %510 = vmatprep.subr.mxu0 0.0
  %511 = vmatpush1.msra.mxu0 0.0
  %512 = vmatprep.subr.mxu0 0.0
  %513 = vmatpush1.msra.mxu0 0.0
  %514 = vmatprep.mubr.f32.mxu0 0.0
  %515 = vmatmul.mubr.f32.gmra.mrb[0].mxu0 %v377
  %v516 = vpop.f32.mrb[0].mxu0
  %v517 = vadd.f32 %v231, %v516
  %v518 = vpop.f32.mrb[0].mxu0
  %v519 = vadd.f32 %v233, %v518
  %520 = vdwg.mxu0
  %521 = vmatprep.subr.mxu0 %v39
  %522 = vmatpush1.msra.mxu0 %v38
  %523 = vmatprep.subr.mxu0 0.0
  %524 = vmatpush1.msra.mxu0 0.0
  %525 = vmatprep.subr.mxu0 0.0
  %526 = vmatpush1.msra.mxu0 0.0
  %527 = vmatprep.subr.mxu0 0.0
  %528 = vmatpush1.msra.mxu0 0.0
  %529 = vmatprep.subr.mxu0 0.0
  %530 = vmatpush1.msra.mxu0 0.0
  %531 = vmatprep.subr.mxu0 0.0
  %532 = vmatpush1.msra.mxu0 0.0
  %533 = vmatprep.subr.mxu0 0.0
  %534 = vmatpush1.msra.mxu0 0.0
  %535 = vmatprep.subr.mxu0 0.0
  %536 = vmatpush1.msra.mxu0 0.0
  %537 = vmatprep.subr.mxu0 0.0
  %538 = vmatpush1.msra.mxu0 0.0
  %539 = vmatprep.subr.mxu0 0.0
  %540 = vmatpush1.msra.mxu0 0.0
  %541 = vmatprep.subr.mxu0 0.0
  %542 = vmatpush1.msra.mxu0 0.0
  %543 = vmatprep.subr.mxu0 0.0
  %544 = vmatpush1.msra.mxu0 0.0
  %545 = vmatprep.subr.mxu0 0.0
  %546 = vmatpush1.msra.mxu0 0.0
  %547 = vmatprep.subr.mxu0 0.0
  %548 = vmatpush1.msra.mxu0 0.0
  %549 = vmatprep.subr.mxu0 0.0
  %550 = vmatpush1.msra.mxu0 0.0
  %551 = vmatprep.subr.mxu0 0.0
  %552 = vmatpush1.msra.mxu0 0.0
  %553 = vmatprep.subr.mxu0 0.0
  %554 = vmatpush1.msra.mxu0 0.0
  %555 = vmatprep.subr.mxu0 0.0
  %556 = vmatpush1.msra.mxu0 0.0
  %557 = vmatprep.subr.mxu0 0.0
  %558 = vmatpush1.msra.mxu0 0.0
  %559 = vmatprep.subr.mxu0 0.0
  %560 = vmatpush1.msra.mxu0 0.0
  %561 = vmatprep.subr.mxu0 0.0
  %562 = vmatpush1.msra.mxu0 0.0
  %563 = vmatprep.subr.mxu0 0.0
  %564 = vmatpush1.msra.mxu0 0.0
  %565 = vmatprep.subr.mxu0 0.0
  %566 = vmatpush1.msra.mxu0 0.0
  %567 = vmatprep.subr.mxu0 0.0
  %568 = vmatpush1.msra.mxu0 0.0
  %569 = vmatprep.subr.mxu0 0.0
  %570 = vmatpush1.msra.mxu0 0.0
  %571 = vmatprep.subr.mxu0 0.0
  %572 = vmatpush1.msra.mxu0 0.0
  %573 = vmatprep.subr.mxu0 0.0
  %574 = vmatpush1.msra.mxu0 0.0
  %575 = vmatprep.subr.mxu0 0.0
  %576 = vmatpush1.msra.mxu0 0.0
  %577 = vmatprep.subr.mxu0 0.0
  %578 = vmatpush1.msra.mxu0 0.0
  %579 = vmatprep.subr.mxu0 0.0
  %580 = vmatpush1.msra.mxu0 0.0
  %581 = vmatprep.subr.mxu0 0.0
  %582 = vmatpush1.msra.mxu0 0.0
  %583 = vmatprep.subr.mxu0 0.0
  %584 = vmatpush1.msra.mxu0 0.0
  %585 = vmatprep.mubr.f32.mxu0 0.0
  %586 = vmatmul.mubr.f32.gmra.mrb[0].mxu0 %v377
  %v587 = vpop.f32.mrb[0].mxu0
  %v588 = vadd.f32 %v302, %v587
  %v589 = vpop.f32.mrb[0].mxu0
  %v590 = vadd.f32 %v304, %v589
  %591 = vdwg.mxu0
  %592 = vmatprep.subr.mxu0 0.0
  %593 = vmatpush1.msra.mxu0 %v40
  %594 = vmatprep.subr.mxu0 0.0
  %595 = vmatpush1.msra.mxu0 0.0
  %596 = vmatprep.subr.mxu0 0.0
  %597 = vmatpush1.msra.mxu0 0.0
  %598 = vmatprep.subr.mxu0 0.0
  %599 = vmatpush1.msra.mxu0 0.0
  %600 = vmatprep.subr.mxu0 0.0
  %601 = vmatpush1.msra.mxu0 0.0
  %602 = vmatprep.subr.mxu0 0.0
  %603 = vmatpush1.msra.mxu0 0.0
  %604 = vmatprep.subr.mxu0 0.0
  %605 = vmatpush1.msra.mxu0 0.0
  %606 = vmatprep.subr.mxu0 0.0
  %607 = vmatpush1.msra.mxu0 0.0
  %608 = vmatprep.subr.mxu0 0.0
  %609 = vmatpush1.msra.mxu0 0.0
  %610 = vmatprep.subr.mxu0 0.0
  %611 = vmatpush1.msra.mxu0 0.0
  %612 = vmatprep.subr.mxu0 0.0
  %613 = vmatpush1.msra.mxu0 0.0
  %614 = vmatprep.subr.mxu0 0.0
  %615 = vmatpush1.msra.mxu0 0.0
  %616 = vmatprep.subr.mxu0 0.0
  %617 = vmatpush1.msra.mxu0 0.0
  %618 = vmatprep.subr.mxu0 0.0
  %619 = vmatpush1.msra.mxu0 0.0
  %620 = vmatprep.subr.mxu0 0.0
  %621 = vmatpush1.msra.mxu0 0.0
  %622 = vmatprep.subr.mxu0 0.0
  %623 = vmatpush1.msra.mxu0 0.0
  %624 = vmatprep.subr.mxu0 0.0
  %625 = vmatpush1.msra.mxu0 0.0
  %626 = vmatprep.subr.mxu0 0.0
  %627 = vmatpush1.msra.mxu0 0.0
  %628 = vmatprep.subr.mxu0 0.0
  %629 = vmatpush1.msra.mxu0 0.0
  %630 = vmatprep.subr.mxu0 0.0
  %631 = vmatpush1.msra.mxu0 0.0
  %632 = vmatprep.subr.mxu0 0.0
  %633 = vmatpush1.msra.mxu0 0.0
  %634 = vmatprep.subr.mxu0 0.0
  %635 = vmatpush1.msra.mxu0 0.0
  %636 = vmatprep.subr.mxu0 0.0
  %637 = vmatpush1.msra.mxu0 0.0
  %638 = vmatprep.subr.mxu0 0.0
  %639 = vmatpush1.msra.mxu0 0.0
  %640 = vmatprep.subr.mxu0 0.0
  %641 = vmatpush1.msra.mxu0 0.0
  %642 = vmatprep.subr.mxu0 0.0
  %643 = vmatpush1.msra.mxu0 0.0
  %644 = vmatprep.subr.mxu0 0.0
  %645 = vmatpush1.msra.mxu0 0.0
  %646 = vmatprep.subr.mxu0 0.0
  %647 = vmatpush1.msra.mxu0 0.0
  %648 = vmatprep.subr.mxu0 0.0
  %649 = vmatpush1.msra.mxu0 0.0
  %650 = vmatprep.subr.mxu0 0.0
  %651 = vmatpush1.msra.mxu0 0.0
  %652 = vmatprep.subr.mxu0 0.0
  %653 = vmatpush1.msra.mxu0 0.0
  %654 = vmatprep.subr.mxu0 0.0
  %655 = vmatpush1.msra.mxu0 0.0
  %656 = vmatprep.mubr.f32.mxu0 0.0
  %657 = vmatmul.mubr.f32.gmra.mrb[0].mxu0 %v377
  %v658 = vpop.f32.mrb[0].mxu0
  %v659 = vadd.f32 %v373, %v658
  %v660 = vpop.f32.mrb[0].mxu0
  %661 = vdwg.mxu0
  %v662 = vld [vmem:[%s1 + $0x10] sm:$0xff]
  %663 = vrot.lane.b32.xlu0 %v42, 126
  %v664 = vpop.permute.xlu0 %663
  %665 = vrot.lane.b32.xlu0 %v43, 126
  %v666 = vpop.permute.xlu0 %665
  %667 = vrot.lane.b32.xlu0 %v44, 126
  %v668 = vpop.permute.xlu0 %667
  %669 = vrot.lane.b32.xlu0 %v45, 126
  %v670 = vpop.permute.xlu0 %669
  %671 = vrot.lane.b32.xlu0 %v46, 126
  %v672 = vpop.permute.xlu0 %671
  %673 = vrot.lane.b32.xlu0 %v47, 126
  %v674 = vpop.permute.xlu0 %673
  %675 = vrot.lane.b32.xlu0 %v48, 126
  %v676 = vpop.permute.xlu0 %675
  %677 = vrot.lane.b32.xlu0 %v49, 126
  %v678 = vpop.permute.xlu0 %677
  %vm679 = vcmask 1031168
  %v680 = vsel %vm679, %v664, %v666
  %v681 = vsel %vm679, %v666, %v668
  %v682 = vsel %vm679, %v668, %v670
  %v683 = vsel %vm679, %v670, %v672
  %v684 = vsel %vm679, %v672, %v674
  %v685 = vsel %vm679, %v674, %v676
  %v686 = vsel %vm679, %v676, %v678
  %v695 = vsel %vm89, %v662, 0
  %697 = vmatprep.subr.mxu0 %v681
  %698 = vmatpush1.msra.mxu0 %v680
  %699 = vmatprep.subr.mxu0 0.0
  %700 = vmatpush1.msra.mxu0 0.0
  %701 = vmatprep.subr.mxu0 0.0
  %702 = vmatpush1.msra.mxu0 0.0
  %703 = vmatprep.subr.mxu0 0.0
  %704 = vmatpush1.msra.mxu0 0.0
  %705 = vmatprep.subr.mxu0 0.0
  %706 = vmatpush1.msra.mxu0 0.0
  %707 = vmatprep.subr.mxu0 0.0
  %708 = vmatpush1.msra.mxu0 0.0
  %709 = vmatprep.subr.mxu0 0.0
  %710 = vmatpush1.msra.mxu0 0.0
  %711 = vmatprep.subr.mxu0 0.0
  %712 = vmatpush1.msra.mxu0 0.0
  %713 = vmatprep.subr.mxu0 0.0
  %714 = vmatpush1.msra.mxu0 0.0
  %715 = vmatprep.subr.mxu0 0.0
  %716 = vmatpush1.msra.mxu0 0.0
  %717 = vmatprep.subr.mxu0 0.0
  %718 = vmatpush1.msra.mxu0 0.0
  %719 = vmatprep.subr.mxu0 0.0
  %720 = vmatpush1.msra.mxu0 0.0
  %721 = vmatprep.subr.mxu0 0.0
  %722 = vmatpush1.msra.mxu0 0.0
  %723 = vmatprep.subr.mxu0 0.0
  %724 = vmatpush1.msra.mxu0 0.0
  %725 = vmatprep.subr.mxu0 0.0
  %726 = vmatpush1.msra.mxu0 0.0
  %727 = vmatprep.subr.mxu0 0.0
  %728 = vmatpush1.msra.mxu0 0.0
  %729 = vmatprep.subr.mxu0 0.0
  %730 = vmatpush1.msra.mxu0 0.0
  %731 = vmatprep.subr.mxu0 0.0
  %732 = vmatpush1.msra.mxu0 0.0
  %733 = vmatprep.subr.mxu0 0.0
  %734 = vmatpush1.msra.mxu0 0.0
  %735 = vmatprep.subr.mxu0 0.0
  %736 = vmatpush1.msra.mxu0 0.0
  %737 = vmatprep.subr.mxu0 0.0
  %738 = vmatpush1.msra.mxu0 0.0
  %739 = vmatprep.subr.mxu0 0.0
  %740 = vmatpush1.msra.mxu0 0.0
  %741 = vmatprep.subr.mxu0 0.0
  %742 = vmatpush1.msra.mxu0 0.0
  %743 = vmatprep.subr.mxu0 0.0
  %744 = vmatpush1.msra.mxu0 0.0
  %745 = vmatprep.subr.mxu0 0.0
  %746 = vmatpush1.msra.mxu0 0.0
  %747 = vmatprep.subr.mxu0 0.0
  %748 = vmatpush1.msra.mxu0 0.0
  %749 = vmatprep.subr.mxu0 0.0
  %750 = vmatpush1.msra.mxu0 0.0
  %751 = vmatprep.subr.mxu0 0.0
  %752 = vmatpush1.msra.mxu0 0.0
  %753 = vmatprep.subr.mxu0 0.0
  %754 = vmatpush1.msra.mxu0 0.0
  %755 = vmatprep.subr.mxu0 0.0
  %756 = vmatpush1.msra.mxu0 0.0
  %757 = vmatprep.subr.mxu0 0.0
  %758 = vmatpush1.msra.mxu0 0.0
  %759 = vmatprep.subr.mxu0 0.0
  %760 = vmatpush1.msra.mxu0 0.0
  %761 = vmatprep.mubr.f32.mxu0 0.0
  %762 = vmatmul.mubr.f32.gmra.mrb[0].mxu0 %v695
  %v763 = vpop.f32.mrb[0].mxu0
  %v764 = vadd.f32 0.0, %v763
  %v765 = vpop.f32.mrb[0].mxu0
  %v766 = vadd.f32 0.0, %v765
  %767 = vdwg.mxu0
  %768 = vmatprep.subr.mxu0 %v683
  %769 = vmatpush1.msra.mxu0 %v682
  %770 = vmatprep.subr.mxu0 0.0
  %771 = vmatpush1.msra.mxu0 0.0
  %772 = vmatprep.subr.mxu0 0.0
  %773 = vmatpush1.msra.mxu0 0.0
  %774 = vmatprep.subr.mxu0 0.0
  %775 = vmatpush1.msra.mxu0 0.0
  %776 = vmatprep.subr.mxu0 0.0
  %777 = vmatpush1.msra.mxu0 0.0
  %778 = vmatprep.subr.mxu0 0.0
  %779 = vmatpush1.msra.mxu0 0.0
  %780 = vmatprep.subr.mxu0 0.0
  %781 = vmatpush1.msra.mxu0 0.0
  %782 = vmatprep.subr.mxu0 0.0
  %783 = vmatpush1.msra.mxu0 0.0
  %784 = vmatprep.subr.mxu0 0.0
  %785 = vmatpush1.msra.mxu0 0.0
  %786 = vmatprep.subr.mxu0 0.0
  %787 = vmatpush1.msra.mxu0 0.0
  %788 = vmatprep.subr.mxu0 0.0
  %789 = vmatpush1.msra.mxu0 0.0
  %790 = vmatprep.subr.mxu0 0.0
  %791 = vmatpush1.msra.mxu0 0.0
  %792 = vmatprep.subr.mxu0 0.0
  %793 = vmatpush1.msra.mxu0 0.0
  %794 = vmatprep.subr.mxu0 0.0
  %795 = vmatpush1.msra.mxu0 0.0
  %796 = vmatprep.subr.mxu0 0.0
  %797 = vmatpush1.msra.mxu0 0.0
  %798 = vmatprep.subr.mxu0 0.0
  %799 = vmatpush1.msra.mxu0 0.0
  %800 = vmatprep.subr.mxu0 0.0
  %801 = vmatpush1.msra.mxu0 0.0
  %802 = vmatprep.subr.mxu0 0.0
  %803 = vmatpush1.msra.mxu0 0.0
  %804 = vmatprep.subr.mxu0 0.0
  %805 = vmatpush1.msra.mxu0 0.0
  %806 = vmatprep.subr.mxu0 0.0
  %807 = vmatpush1.msra.mxu0 0.0
  %808 = vmatprep.subr.mxu0 0.0
  %809 = vmatpush1.msra.mxu0 0.0
  %810 = vmatprep.subr.mxu0 0.0
  %811 = vmatpush1.msra.mxu0 0.0
  %812 = vmatprep.subr.mxu0 0.0
  %813 = vmatpush1.msra.mxu0 0.0
  %814 = vmatprep.subr.mxu0 0.0
  %815 = vmatpush1.msra.mxu0 0.0
  %816 = vmatprep.subr.mxu0 0.0
  %817 = vmatpush1.msra.mxu0 0.0
  %818 = vmatprep.subr.mxu0 0.0
  %819 = vmatpush1.msra.mxu0 0.0
  %820 = vmatprep.subr.mxu0 0.0
  %821 = vmatpush1.msra.mxu0 0.0
  %822 = vmatprep.subr.mxu0 0.0
  %823 = vmatpush1.msra.mxu0 0.0
  %824 = vmatprep.subr.mxu0 0.0
  %825 = vmatpush1.msra.mxu0 0.0
  %826 = vmatprep.subr.mxu0 0.0
  %827 = vmatpush1.msra.mxu0 0.0
  %828 = vmatprep.subr.mxu0 0.0
  %829 = vmatpush1.msra.mxu0 0.0
  %830 = vmatprep.subr.mxu0 0.0
  %831 = vmatpush1.msra.mxu0 0.0
  %832 = vmatprep.mubr.f32.mxu0 0.0
  %833 = vmatmul.mubr.f32.gmra.mrb[0].mxu0 %v695
  %v834 = vpop.f32.mrb[0].mxu0
  %v835 = vadd.f32 0.0, %v834
  %v836 = vpop.f32.mrb[0].mxu0
  %v837 = vadd.f32 0.0, %v836
  %838 = vdwg.mxu0
  %839 = vmatprep.subr.mxu0 %v685
  %840 = vmatpush1.msra.mxu0 %v684
  %841 = vmatprep.subr.mxu0 0.0
  %842 = vmatpush1.msra.mxu0 0.0
  %843 = vmatprep.subr.mxu0 0.0
  %844 = vmatpush1.msra.mxu0 0.0
  %845 = vmatprep.subr.mxu0 0.0
  %846 = vmatpush1.msra.mxu0 0.0
  %847 = vmatprep.subr.mxu0 0.0
  %848 = vmatpush1.msra.mxu0 0.0
  %849 = vmatprep.subr.mxu0 0.0
  %850 = vmatpush1.msra.mxu0 0.0
  %851 = vmatprep.subr.mxu0 0.0
  %852 = vmatpush1.msra.mxu0 0.0
  %853 = vmatprep.subr.mxu0 0.0
  %854 = vmatpush1.msra.mxu0 0.0
  %855 = vmatprep.subr.mxu0 0.0
  %856 = vmatpush1.msra.mxu0 0.0
  %857 = vmatprep.subr.mxu0 0.0
  %858 = vmatpush1.msra.mxu0 0.0
  %859 = vmatprep.subr.mxu0 0.0
  %860 = vmatpush1.msra.mxu0 0.0
  %861 = vmatprep.subr.mxu0 0.0
  %862 = vmatpush1.msra.mxu0 0.0
  %863 = vmatprep.subr.mxu0 0.0
  %864 = vmatpush1.msra.mxu0 0.0
  %865 = vmatprep.subr.mxu0 0.0
  %866 = vmatpush1.msra.mxu0 0.0
  %867 = vmatprep.subr.mxu0 0.0
  %868 = vmatpush1.msra.mxu0 0.0
  %869 = vmatprep.subr.mxu0 0.0
  %870 = vmatpush1.msra.mxu0 0.0
  %871 = vmatprep.subr.mxu0 0.0
  %872 = vmatpush1.msra.mxu0 0.0
  %873 = vmatprep.subr.mxu0 0.0
  %874 = vmatpush1.msra.mxu0 0.0
  %875 = vmatprep.subr.mxu0 0.0
  %876 = vmatpush1.msra.mxu0 0.0
  %877 = vmatprep.subr.mxu0 0.0
  %878 = vmatpush1.msra.mxu0 0.0
  %879 = vmatprep.subr.mxu0 0.0
  %880 = vmatpush1.msra.mxu0 0.0
  %881 = vmatprep.subr.mxu0 0.0
  %882 = vmatpush1.msra.mxu0 0.0
  %883 = vmatprep.subr.mxu0 0.0
  %884 = vmatpush1.msra.mxu0 0.0
  %885 = vmatprep.subr.mxu0 0.0
  %886 = vmatpush1.msra.mxu0 0.0
  %887 = vmatprep.subr.mxu0 0.0
  %888 = vmatpush1.msra.mxu0 0.0
  %889 = vmatprep.subr.mxu0 0.0
  %890 = vmatpush1.msra.mxu0 0.0
  %891 = vmatprep.subr.mxu0 0.0
  %892 = vmatpush1.msra.mxu0 0.0
  %893 = vmatprep.subr.mxu0 0.0
  %894 = vmatpush1.msra.mxu0 0.0
  %895 = vmatprep.subr.mxu0 0.0
  %896 = vmatpush1.msra.mxu0 0.0
  %897 = vmatprep.subr.mxu0 0.0
  %898 = vmatpush1.msra.mxu0 0.0
  %899 = vmatprep.subr.mxu0 0.0
  %900 = vmatpush1.msra.mxu0 0.0
  %901 = vmatprep.subr.mxu0 0.0
  %902 = vmatpush1.msra.mxu0 0.0
  %903 = vmatprep.mubr.f32.mxu0 0.0
  %904 = vmatmul.mubr.f32.gmra.mrb[0].mxu0 %v695
  %v905 = vpop.f32.mrb[0].mxu0
  %v906 = vadd.f32 0.0, %v905
  %v907 = vpop.f32.mrb[0].mxu0
  %v908 = vadd.f32 0.0, %v907
  %909 = vdwg.mxu0
  %910 = vmatprep.subr.mxu0 0.0
  %911 = vmatpush1.msra.mxu0 %v686
  %912 = vmatprep.subr.mxu0 0.0
  %913 = vmatpush1.msra.mxu0 0.0
  %914 = vmatprep.subr.mxu0 0.0
  %915 = vmatpush1.msra.mxu0 0.0
  %916 = vmatprep.subr.mxu0 0.0
  %917 = vmatpush1.msra.mxu0 0.0
  %918 = vmatprep.subr.mxu0 0.0
  %919 = vmatpush1.msra.mxu0 0.0
  %920 = vmatprep.subr.mxu0 0.0
  %921 = vmatpush1.msra.mxu0 0.0
  %922 = vmatprep.subr.mxu0 0.0
  %923 = vmatpush1.msra.mxu0 0.0
  %924 = vmatprep.subr.mxu0 0.0
  %925 = vmatpush1.msra.mxu0 0.0
  %926 = vmatprep.subr.mxu0 0.0
  %927 = vmatpush1.msra.mxu0 0.0
  %928 = vmatprep.subr.mxu0 0.0
  %929 = vmatpush1.msra.mxu0 0.0
  %930 = vmatprep.subr.mxu0 0.0
  %931 = vmatpush1.msra.mxu0 0.0
  %932 = vmatprep.subr.mxu0 0.0
  %933 = vmatpush1.msra.mxu0 0.0
  %934 = vmatprep.subr.mxu0 0.0
  %935 = vmatpush1.msra.mxu0 0.0
  %936 = vmatprep.subr.mxu0 0.0
  %937 = vmatpush1.msra.mxu0 0.0
  %938 = vmatprep.subr.mxu0 0.0
  %939 = vmatpush1.msra.mxu0 0.0
  %940 = vmatprep.subr.mxu0 0.0
  %941 = vmatpush1.msra.mxu0 0.0
  %942 = vmatprep.subr.mxu0 0.0
  %943 = vmatpush1.msra.mxu0 0.0
  %944 = vmatprep.subr.mxu0 0.0
  %945 = vmatpush1.msra.mxu0 0.0
  %946 = vmatprep.subr.mxu0 0.0
  %947 = vmatpush1.msra.mxu0 0.0
  %948 = vmatprep.subr.mxu0 0.0
  %949 = vmatpush1.msra.mxu0 0.0
  %950 = vmatprep.subr.mxu0 0.0
  %951 = vmatpush1.msra.mxu0 0.0
  %952 = vmatprep.subr.mxu0 0.0
  %953 = vmatpush1.msra.mxu0 0.0
  %954 = vmatprep.subr.mxu0 0.0
  %955 = vmatpush1.msra.mxu0 0.0
  %956 = vmatprep.subr.mxu0 0.0
  %957 = vmatpush1.msra.mxu0 0.0
  %958 = vmatprep.subr.mxu0 0.0
  %959 = vmatpush1.msra.mxu0 0.0
  %960 = vmatprep.subr.mxu0 0.0
  %961 = vmatpush1.msra.mxu0 0.0
  %962 = vmatprep.subr.mxu0 0.0
  %963 = vmatpush1.msra.mxu0 0.0
  %964 = vmatprep.subr.mxu0 0.0
  %965 = vmatpush1.msra.mxu0 0.0
  %966 = vmatprep.subr.mxu0 0.0
  %967 = vmatpush1.msra.mxu0 0.0
  %968 = vmatprep.subr.mxu0 0.0
  %969 = vmatpush1.msra.mxu0 0.0
  %970 = vmatprep.subr.mxu0 0.0
  %971 = vmatpush1.msra.mxu0 0.0
  %972 = vmatprep.subr.mxu0 0.0
  %973 = vmatpush1.msra.mxu0 0.0
  %974 = vmatprep.mubr.f32.mxu0 0.0
  %975 = vmatmul.mubr.f32.gmra.mrb[0].mxu0 %v695
  %v976 = vpop.f32.mrb[0].mxu0
  %v977 = vadd.f32 0.0, %v976
  %v978 = vpop.f32.mrb[0].mxu0
  %979 = vdwg.mxu0
  %v980 = vadd.f32 %v446, %v764
  %v981 = vadd.f32 %v448, %v766
  %v982 = vadd.f32 %v517, %v835
  %v983 = vadd.f32 %v519, %v837
  %v984 = vadd.f32 %v588, %v906
  %v985 = vadd.f32 %v590, %v908
  %v986 = vadd.f32 %v659, %v977
  %v987 = vld [vmem:[%s1 + $0x18] sm:$0xff]
  %988 = vrot.lane.b32.xlu0 %v42, 110
  %v989 = vpop.permute.xlu0 %988
  %990 = vrot.lane.b32.xlu0 %v43, 110
  %v991 = vpop.permute.xlu0 %990
  %992 = vrot.lane.b32.xlu0 %v44, 110
  %v993 = vpop.permute.xlu0 %992
  %994 = vrot.lane.b32.xlu0 %v45, 110
  %v995 = vpop.permute.xlu0 %994
  %996 = vrot.lane.b32.xlu0 %v46, 110
  %v997 = vpop.permute.xlu0 %996
  %998 = vrot.lane.b32.xlu0 %v47, 110
  %v999 = vpop.permute.xlu0 %998
  %1000 = vrot.lane.b32.xlu0 %v48, 110
  %v1001 = vpop.permute.xlu0 %1000
  %1002 = vrot.lane.b32.xlu0 %v49, 110
  %v1003 = vpop.permute.xlu0 %1002
  %vm1004 = vcmask 900096
  %v1005 = vsel %vm1004, %v989, %v991
  %v1006 = vsel %vm1004, %v991, %v993
  %v1007 = vsel %vm1004, %v993, %v995
  %v1008 = vsel %vm1004, %v995, %v997
  %v1009 = vsel %vm1004, %v997, %v999
  %v1010 = vsel %vm1004, %v999, %v1001
  %v1011 = vsel %vm1004, %v1001, %v1003
  %v1020 = vsel %vm89, %v987, 0
  %1022 = vmatprep.subr.mxu0 %v1006
  %1023 = vmatpush1.msra.mxu0 %v1005
  %1024 = vmatprep.subr.mxu0 0.0
  %1025 = vmatpush1.msra.mxu0 0.0
  %1026 = vmatprep.subr.mxu0 0.0
  %1027 = vmatpush1.msra.mxu0 0.0
  %1028 = vmatprep.subr.mxu0 0.0
  %1029 = vmatpush1.msra.mxu0 0.0
  %1030 = vmatprep.subr.mxu0 0.0
  %1031 = vmatpush1.msra.mxu0 0.0
  %1032 = vmatprep.subr.mxu0 0.0
  %1033 = vmatpush1.msra.mxu0 0.0
  %1034 = vmatprep.subr.mxu0 0.0
  %1035 = vmatpush1.msra.mxu0 0.0
  %1036 = vmatprep.subr.mxu0 0.0
  %1037 = vmatpush1.msra.mxu0 0.0
  %1038 = vmatprep.subr.mxu0 0.0
  %1039 = vmatpush1.msra.mxu0 0.0
  %1040 = vmatprep.subr.mxu0 0.0
  %1041 = vmatpush1.msra.mxu0 0.0
  %1042 = vmatprep.subr.mxu0 0.0
  %1043 = vmatpush1.msra.mxu0 0.0
  %1044 = vmatprep.subr.mxu0 0.0
  %1045 = vmatpush1.msra.mxu0 0.0
  %1046 = vmatprep.subr.mxu0 0.0
  %1047 = vmatpush1.msra.mxu0 0.0
  %1048 = vmatprep.subr.mxu0 0.0
  %1049 = vmatpush1.msra.mxu0 0.0
  %1050 = vmatprep.subr.mxu0 0.0
  %1051 = vmatpush1.msra.mxu0 0.0
  %1052 = vmatprep.subr.mxu0 0.0
  %1053 = vmatpush1.msra.mxu0 0.0
  %1054 = vmatprep.subr.mxu0 0.0
  %1055 = vmatpush1.msra.mxu0 0.0
  %1056 = vmatprep.subr.mxu0 0.0
  %1057 = vmatpush1.msra.mxu0 0.0
  %1058 = vmatprep.subr.mxu0 0.0
  %1059 = vmatpush1.msra.mxu0 0.0
  %1060 = vmatprep.subr.mxu0 0.0
  %1061 = vmatpush1.msra.mxu0 0.0
  %1062 = vmatprep.subr.mxu0 0.0
  %1063 = vmatpush1.msra.mxu0 0.0
  %1064 = vmatprep.subr.mxu0 0.0
  %1065 = vmatpush1.msra.mxu0 0.0
  %1066 = vmatprep.subr.mxu0 0.0
  %1067 = vmatpush1.msra.mxu0 0.0
  %1068 = vmatprep.subr.mxu0 0.0
  %1069 = vmatpush1.msra.mxu0 0.0
  %1070 = vmatprep.subr.mxu0 0.0
  %1071 = vmatpush1.msra.mxu0 0.0
  %1072 = vmatprep.subr.mxu0 0.0
  %1073 = vmatpush1.msra.mxu0 0.0
  %1074 = vmatprep.subr.mxu0 0.0
  %1075 = vmatpush1.msra.mxu0 0.0
  %1076 = vmatprep.subr.mxu0 0.0
  %1077 = vmatpush1.msra.mxu0 0.0
  %1078 = vmatprep.subr.mxu0 0.0
  %1079 = vmatpush1.msra.mxu0 0.0
  %1080 = vmatprep.subr.mxu0 0.0
  %1081 = vmatpush1.msra.mxu0 0.0
  %1082 = vmatprep.subr.mxu0 0.0
  %1083 = vmatpush1.msra.mxu0 0.0
  %1084 = vmatprep.subr.mxu0 0.0
  %1085 = vmatpush1.msra.mxu0 0.0
  %1086 = vmatprep.mubr.f32.mxu0 0.0
  %1087 = vmatmul.mubr.f32.gmra.mrb[0].mxu0 %v1020
  %v1088 = vpop.f32.mrb[0].mxu0
  %v1089 = vadd.f32 0.0, %v1088
  %v1090 = vpop.f32.mrb[0].mxu0
  %v1091 = vadd.f32 0.0, %v1090
  %1092 = vdwg.mxu0
  %1093 = vmatprep.subr.mxu0 %v1008
  %1094 = vmatpush1.msra.mxu0 %v1007
  %1095 = vmatprep.subr.mxu0 0.0
  %1096 = vmatpush1.msra.mxu0 0.0
  %1097 = vmatprep.subr.mxu0 0.0
  %1098 = vmatpush1.msra.mxu0 0.0
  %1099 = vmatprep.subr.mxu0 0.0
  %1100 = vmatpush1.msra.mxu0 0.0
  %1101 = vmatprep.subr.mxu0 0.0
  %1102 = vmatpush1.msra.mxu0 0.0
  %1103 = vmatprep.subr.mxu0 0.0
  %1104 = vmatpush1.msra.mxu0 0.0
  %1105 = vmatprep.subr.mxu0 0.0
  %1106 = vmatpush1.msra.mxu0 0.0
  %1107 = vmatprep.subr.mxu0 0.0
  %1108 = vmatpush1.msra.mxu0 0.0
  %1109 = vmatprep.subr.mxu0 0.0
  %1110 = vmatpush1.msra.mxu0 0.0
  %1111 = vmatprep.subr.mxu0 0.0
  %1112 = vmatpush1.msra.mxu0 0.0
  %1113 = vmatprep.subr.mxu0 0.0
  %1114 = vmatpush1.msra.mxu0 0.0
  %1115 = vmatprep.subr.mxu0 0.0
  %1116 = vmatpush1.msra.mxu0 0.0
  %1117 = vmatprep.subr.mxu0 0.0
  %1118 = vmatpush1.msra.mxu0 0.0
  %1119 = vmatprep.subr.mxu0 0.0
  %1120 = vmatpush1.msra.mxu0 0.0
  %1121 = vmatprep.subr.mxu0 0.0
  %1122 = vmatpush1.msra.mxu0 0.0
  %1123 = vmatprep.subr.mxu0 0.0
  %1124 = vmatpush1.msra.mxu0 0.0
  %1125 = vmatprep.subr.mxu0 0.0
  %1126 = vmatpush1.msra.mxu0 0.0
  %1127 = vmatprep.subr.mxu0 0.0
  %1128 = vmatpush1.msra.mxu0 0.0
  %1129 = vmatprep.subr.mxu0 0.0
  %1130 = vmatpush1.msra.mxu0 0.0
  %1131 = vmatprep.subr.mxu0 0.0
  %1132 = vmatpush1.msra.mxu0 0.0
  %1133 = vmatprep.subr.mxu0 0.0
  %1134 = vmatpush1.msra.mxu0 0.0
  %1135 = vmatprep.subr.mxu0 0.0
  %1136 = vmatpush1.msra.mxu0 0.0
  %1137 = vmatprep.subr.mxu0 0.0
  %1138 = vmatpush1.msra.mxu0 0.0
  %1139 = vmatprep.subr.mxu0 0.0
  %1140 = vmatpush1.msra.mxu0 0.0
  %1141 = vmatprep.subr.mxu0 0.0
  %1142 = vmatpush1.msra.mxu0 0.0
  %1143 = vmatprep.subr.mxu0 0.0
  %1144 = vmatpush1.msra.mxu0 0.0
  %1145 = vmatprep.subr.mxu0 0.0
  %1146 = vmatpush1.msra.mxu0 0.0
  %1147 = vmatprep.subr.mxu0 0.0
  %1148 = vmatpush1.msra.mxu0 0.0
  %1149 = vmatprep.subr.mxu0 0.0
  %1150 = vmatpush1.msra.mxu0 0.0
  %1151 = vmatprep.subr.mxu0 0.0
  %1152 = vmatpush1.msra.mxu0 0.0
  %1153 = vmatprep.subr.mxu0 0.0
  %1154 = vmatpush1.msra.mxu0 0.0
  %1155 = vmatprep.subr.mxu0 0.0
  %1156 = vmatpush1.msra.mxu0 0.0
  %1157 = vmatprep.mubr.f32.mxu0 0.0
  %1158 = vmatmul.mubr.f32.gmra.mrb[0].mxu0 %v1020
  %v1159 = vpop.f32.mrb[0].mxu0
  %v1160 = vadd.f32 0.0, %v1159
  %v1161 = vpop.f32.mrb[0].mxu0
  %v1162 = vadd.f32 0.0, %v1161
  %1163 = vdwg.mxu0
  %1164 = vmatprep.subr.mxu0 %v1010
  %1165 = vmatpush1.msra.mxu0 %v1009
  %1166 = vmatprep.subr.mxu0 0.0
  %1167 = vmatpush1.msra.mxu0 0.0
  %1168 = vmatprep.subr.mxu0 0.0
  %1169 = vmatpush1.msra.mxu0 0.0
  %1170 = vmatprep.subr.mxu0 0.0
  %1171 = vmatpush1.msra.mxu0 0.0
  %1172 = vmatprep.subr.mxu0 0.0
  %1173 = vmatpush1.msra.mxu0 0.0
  %1174 = vmatprep.subr.mxu0 0.0
  %1175 = vmatpush1.msra.mxu0 0.0
  %1176 = vmatprep.subr.mxu0 0.0
  %1177 = vmatpush1.msra.mxu0 0.0
  %1178 = vmatprep.subr.mxu0 0.0
  %1179 = vmatpush1.msra.mxu0 0.0
  %1180 = vmatprep.subr.mxu0 0.0
  %1181 = vmatpush1.msra.mxu0 0.0
  %1182 = vmatprep.subr.mxu0 0.0
  %1183 = vmatpush1.msra.mxu0 0.0
  %1184 = vmatprep.subr.mxu0 0.0
  %1185 = vmatpush1.msra.mxu0 0.0
  %1186 = vmatprep.subr.mxu0 0.0
  %1187 = vmatpush1.msra.mxu0 0.0
  %1188 = vmatprep.subr.mxu0 0.0
  %1189 = vmatpush1.msra.mxu0 0.0
  %1190 = vmatprep.subr.mxu0 0.0
  %1191 = vmatpush1.msra.mxu0 0.0
  %1192 = vmatprep.subr.mxu0 0.0
  %1193 = vmatpush1.msra.mxu0 0.0
  %1194 = vmatprep.subr.mxu0 0.0
  %1195 = vmatpush1.msra.mxu0 0.0
  %1196 = vmatprep.subr.mxu0 0.0
  %1197 = vmatpush1.msra.mxu0 0.0
  %1198 = vmatprep.subr.mxu0 0.0
  %1199 = vmatpush1.msra.mxu0 0.0
  %1200 = vmatprep.subr.mxu0 0.0
  %1201 = vmatpush1.msra.mxu0 0.0
  %1202 = vmatprep.subr.mxu0 0.0
  %1203 = vmatpush1.msra.mxu0 0.0
  %1204 = vmatprep.subr.mxu0 0.0
  %1205 = vmatpush1.msra.mxu0 0.0
  %1206 = vmatprep.subr.mxu0 0.0
  %1207 = vmatpush1.msra.mxu0 0.0
  %1208 = vmatprep.subr.mxu0 0.0
  %1209 = vmatpush1.msra.mxu0 0.0
  %1210 = vmatprep.subr.mxu0 0.0
  %1211 = vmatpush1.msra.mxu0 0.0
  %1212 = vmatprep.subr.mxu0 0.0
  %1213 = vmatpush1.msra.mxu0 0.0
  %1214 = vmatprep.subr.mxu0 0.0
  %1215 = vmatpush1.msra.mxu0 0.0
  %1216 = vmatprep.subr.mxu0 0.0
  %1217 = vmatpush1.msra.mxu0 0.0
  %1218 = vmatprep.subr.mxu0 0.0
  %1219 = vmatpush1.msra.mxu0 0.0
  %1220 = vmatprep.subr.mxu0 0.0
  %1221 = vmatpush1.msra.mxu0 0.0
  %1222 = vmatprep.subr.mxu0 0.0
  %1223 = vmatpush1.msra.mxu0 0.0
  %1224 = vmatprep.subr.mxu0 0.0
  %1225 = vmatpush1.msra.mxu0 0.0
  %1226 = vmatprep.subr.mxu0 0.0
  %1227 = vmatpush1.msra.mxu0 0.0
  %1228 = vmatprep.mubr.f32.mxu0 0.0
  %1229 = vmatmul.mubr.f32.gmra.mrb[0].mxu0 %v1020
  %v1230 = vpop.f32.mrb[0].mxu0
  %v1231 = vadd.f32 0.0, %v1230
  %v1232 = vpop.f32.mrb[0].mxu0
  %v1233 = vadd.f32 0.0, %v1232
  %1234 = vdwg.mxu0
  %1235 = vmatprep.subr.mxu0 0.0
  %1236 = vmatpush1.msra.mxu0 %v1011
  %1237 = vmatprep.subr.mxu0 0.0
  %1238 = vmatpush1.msra.mxu0 0.0
  %1239 = vmatprep.subr.mxu0 0.0
  %1240 = vmatpush1.msra.mxu0 0.0
  %1241 = vmatprep.subr.mxu0 0.0
  %1242 = vmatpush1.msra.mxu0 0.0
  %1243 = vmatprep.subr.mxu0 0.0
  %1244 = vmatpush1.msra.mxu0 0.0
  %1245 = vmatprep.subr.mxu0 0.0
  %1246 = vmatpush1.msra.mxu0 0.0
  %1247 = vmatprep.subr.mxu0 0.0
  %1248 = vmatpush1.msra.mxu0 0.0
  %1249 = vmatprep.subr.mxu0 0.0
  %1250 = vmatpush1.msra.mxu0 0.0
  %1251 = vmatprep.subr.mxu0 0.0
  %1252 = vmatpush1.msra.mxu0 0.0
  %1253 = vmatprep.subr.mxu0 0.0
  %1254 = vmatpush1.msra.mxu0 0.0
  %1255 = vmatprep.subr.mxu0 0.0
  %1256 = vmatpush1.msra.mxu0 0.0
  %1257 = vmatprep.subr.mxu0 0.0
  %1258 = vmatpush1.msra.mxu0 0.0
  %1259 = vmatprep.subr.mxu0 0.0
  %1260 = vmatpush1.msra.mxu0 0.0
  %1261 = vmatprep.subr.mxu0 0.0
  %1262 = vmatpush1.msra.mxu0 0.0
  %1263 = vmatprep.subr.mxu0 0.0
  %1264 = vmatpush1.msra.mxu0 0.0
  %1265 = vmatprep.subr.mxu0 0.0
  %1266 = vmatpush1.msra.mxu0 0.0
  %1267 = vmatprep.subr.mxu0 0.0
  %1268 = vmatpush1.msra.mxu0 0.0
  %1269 = vmatprep.subr.mxu0 0.0
  %1270 = vmatpush1.msra.mxu0 0.0
  %1271 = vmatprep.subr.mxu0 0.0
  %1272 = vmatpush1.msra.mxu0 0.0
  %1273 = vmatprep.subr.mxu0 0.0
  %1274 = vmatpush1.msra.mxu0 0.0
  %1275 = vmatprep.subr.mxu0 0.0
  %1276 = vmatpush1.msra.mxu0 0.0
  %1277 = vmatprep.subr.mxu0 0.0
  %1278 = vmatpush1.msra.mxu0 0.0
  %1279 = vmatprep.subr.mxu0 0.0
  %1280 = vmatpush1.msra.mxu0 0.0
  %1281 = vmatprep.subr.mxu0 0.0
  %1282 = vmatpush1.msra.mxu0 0.0
  %1283 = vmatprep.subr.mxu0 0.0
  %1284 = vmatpush1.msra.mxu0 0.0
  %1285 = vmatprep.subr.mxu0 0.0
  %1286 = vmatpush1.msra.mxu0 0.0
  %1287 = vmatprep.subr.mxu0 0.0
  %1288 = vmatpush1.msra.mxu0 0.0
  %1289 = vmatprep.subr.mxu0 0.0
  %1290 = vmatpush1.msra.mxu0 0.0
  %1291 = vmatprep.subr.mxu0 0.0
  %1292 = vmatpush1.msra.mxu0 0.0
  %1293 = vmatprep.subr.mxu0 0.0
  %1294 = vmatpush1.msra.mxu0 0.0
  %1295 = vmatprep.subr.mxu0 0.0
  %1296 = vmatpush1.msra.mxu0 0.0
  %1297 = vmatprep.subr.mxu0 0.0
  %1298 = vmatpush1.msra.mxu0 0.0
  %1299 = vmatprep.mubr.f32.mxu0 0.0
  %1300 = vmatmul.mubr.f32.gmra.mrb[0].mxu0 %v1020
  %v1301 = vpop.f32.mrb[0].mxu0
  %v1302 = vadd.f32 0.0, %v1301
  %v1303 = vpop.f32.mrb[0].mxu0
  %1304 = vdwg.mxu0
  %v1305 = vadd.f32 %v980, %v1089
  %v1306 = vadd.f32 %v981, %v1091
  %v1307 = vadd.f32 %v982, %v1160
  %v1308 = vadd.f32 %v983, %v1162
  %v1309 = vadd.f32 %v984, %v1231
  %v1310 = vadd.f32 %v985, %v1233
  %v1311 = vadd.f32 %v986, %v1302
  %v1312 = vld [vmem:[%s1 + $0x20] sm:$0xff]
  %1313 = vrot.lane.b32.xlu0 %v42, 109
  %v1314 = vpop.permute.xlu0 %1313
  %1315 = vrot.lane.b32.xlu0 %v43, 109
  %v1316 = vpop.permute.xlu0 %1315
  %1317 = vrot.lane.b32.xlu0 %v44, 109
  %v1318 = vpop.permute.xlu0 %1317
  %1319 = vrot.lane.b32.xlu0 %v45, 109
  %v1320 = vpop.permute.xlu0 %1319
  %1321 = vrot.lane.b32.xlu0 %v46, 109
  %v1322 = vpop.permute.xlu0 %1321
  %1323 = vrot.lane.b32.xlu0 %v47, 109
  %v1324 = vpop.permute.xlu0 %1323
  %1325 = vrot.lane.b32.xlu0 %v48, 109
  %v1326 = vpop.permute.xlu0 %1325
  %1327 = vrot.lane.b32.xlu0 %v49, 109
  %v1328 = vpop.permute.xlu0 %1327
  %vm1329 = vcmask 891904
  %v1330 = vsel %vm1329, %v1314, %v1316
  %v1331 = vsel %vm1329, %v1316, %v1318
  %v1332 = vsel %vm1329, %v1318, %v1320
  %v1333 = vsel %vm1329, %v1320, %v1322
  %v1334 = vsel %vm1329, %v1322, %v1324
  %v1335 = vsel %vm1329, %v1324, %v1326
  %v1336 = vsel %vm1329, %v1326, %v1328
  %v1345 = vsel %vm89, %v1312, 0
  %1347 = vmatprep.subr.mxu0 %v1331
  %1348 = vmatpush1.msra.mxu0 %v1330
  %1349 = vmatprep.subr.mxu0 0.0
  %1350 = vmatpush1.msra.mxu0 0.0
  %1351 = vmatprep.subr.mxu0 0.0
  %1352 = vmatpush1.msra.mxu0 0.0
  %1353 = vmatprep.subr.mxu0 0.0
  %1354 = vmatpush1.msra.mxu0 0.0
  %1355 = vmatprep.subr.mxu0 0.0
  %1356 = vmatpush1.msra.mxu0 0.0
  %1357 = vmatprep.subr.mxu0 0.0
  %1358 = vmatpush1.msra.mxu0 0.0
  %1359 = vmatprep.subr.mxu0 0.0
  %1360 = vmatpush1.msra.mxu0 0.0
  %1361 = vmatprep.subr.mxu0 0.0
  %1362 = vmatpush1.msra.mxu0 0.0
  %1363 = vmatprep.subr.mxu0 0.0
  %1364 = vmatpush1.msra.mxu0 0.0
  %1365 = vmatprep.subr.mxu0 0.0
  %1366 = vmatpush1.msra.mxu0 0.0
  %1367 = vmatprep.subr.mxu0 0.0
  %1368 = vmatpush1.msra.mxu0 0.0
  %1369 = vmatprep.subr.mxu0 0.0
  %1370 = vmatpush1.msra.mxu0 0.0
  %1371 = vmatprep.subr.mxu0 0.0
  %1372 = vmatpush1.msra.mxu0 0.0
  %1373 = vmatprep.subr.mxu0 0.0
  %1374 = vmatpush1.msra.mxu0 0.0
  %1375 = vmatprep.subr.mxu0 0.0
  %1376 = vmatpush1.msra.mxu0 0.0
  %1377 = vmatprep.subr.mxu0 0.0
  %1378 = vmatpush1.msra.mxu0 0.0
  %1379 = vmatprep.subr.mxu0 0.0
  %1380 = vmatpush1.msra.mxu0 0.0
  %1381 = vmatprep.subr.mxu0 0.0
  %1382 = vmatpush1.msra.mxu0 0.0
  %1383 = vmatprep.subr.mxu0 0.0
  %1384 = vmatpush1.msra.mxu0 0.0
  %1385 = vmatprep.subr.mxu0 0.0
  %1386 = vmatpush1.msra.mxu0 0.0
  %1387 = vmatprep.subr.mxu0 0.0
  %1388 = vmatpush1.msra.mxu0 0.0
  %1389 = vmatprep.subr.mxu0 0.0
  %1390 = vmatpush1.msra.mxu0 0.0
  %1391 = vmatprep.subr.mxu0 0.0
  %1392 = vmatpush1.msra.mxu0 0.0
  %1393 = vmatprep.subr.mxu0 0.0
  %1394 = vmatpush1.msra.mxu0 0.0
  %1395 = vmatprep.subr.mxu0 0.0
  %1396 = vmatpush1.msra.mxu0 0.0
  %1397 = vmatprep.subr.mxu0 0.0
  %1398 = vmatpush1.msra.mxu0 0.0
  %1399 = vmatprep.subr.mxu0 0.0
  %1400 = vmatpush1.msra.mxu0 0.0
  %1401 = vmatprep.subr.mxu0 0.0
  %1402 = vmatpush1.msra.mxu0 0.0
  %1403 = vmatprep.subr.mxu0 0.0
  %1404 = vmatpush1.msra.mxu0 0.0
  %1405 = vmatprep.subr.mxu0 0.0
  %1406 = vmatpush1.msra.mxu0 0.0
  %1407 = vmatprep.subr.mxu0 0.0
  %1408 = vmatpush1.msra.mxu0 0.0
  %1409 = vmatprep.subr.mxu0 0.0
  %1410 = vmatpush1.msra.mxu0 0.0
  %1411 = vmatprep.mubr.f32.mxu0 0.0
  %1412 = vmatmul.mubr.f32.gmra.mrb[0].mxu0 %v1345
  %v1413 = vpop.f32.mrb[0].mxu0
  %v1414 = vadd.f32 0.0, %v1413
  %v1415 = vpop.f32.mrb[0].mxu0
  %v1416 = vadd.f32 0.0, %v1415
  %1417 = vdwg.mxu0
  %1418 = vmatprep.subr.mxu0 %v1333
  %1419 = vmatpush1.msra.mxu0 %v1332
  %1420 = vmatprep.subr.mxu0 0.0
  %1421 = vmatpush1.msra.mxu0 0.0
  %1422 = vmatprep.subr.mxu0 0.0
  %1423 = vmatpush1.msra.mxu0 0.0
  %1424 = vmatprep.subr.mxu0 0.0
  %1425 = vmatpush1.msra.mxu0 0.0
  %1426 = vmatprep.subr.mxu0 0.0
  %1427 = vmatpush1.msra.mxu0 0.0
  %1428 = vmatprep.subr.mxu0 0.0
  %1429 = vmatpush1.msra.mxu0 0.0
  %1430 = vmatprep.subr.mxu0 0.0
  %1431 = vmatpush1.msra.mxu0 0.0
  %1432 = vmatprep.subr.mxu0 0.0
  %1433 = vmatpush1.msra.mxu0 0.0
  %1434 = vmatprep.subr.mxu0 0.0
  %1435 = vmatpush1.msra.mxu0 0.0
  %1436 = vmatprep.subr.mxu0 0.0
  %1437 = vmatpush1.msra.mxu0 0.0
  %1438 = vmatprep.subr.mxu0 0.0
  %1439 = vmatpush1.msra.mxu0 0.0
  %1440 = vmatprep.subr.mxu0 0.0
  %1441 = vmatpush1.msra.mxu0 0.0
  %1442 = vmatprep.subr.mxu0 0.0
  %1443 = vmatpush1.msra.mxu0 0.0
  %1444 = vmatprep.subr.mxu0 0.0
  %1445 = vmatpush1.msra.mxu0 0.0
  %1446 = vmatprep.subr.mxu0 0.0
  %1447 = vmatpush1.msra.mxu0 0.0
  %1448 = vmatprep.subr.mxu0 0.0
  %1449 = vmatpush1.msra.mxu0 0.0
  %1450 = vmatprep.subr.mxu0 0.0
  %1451 = vmatpush1.msra.mxu0 0.0
  %1452 = vmatprep.subr.mxu0 0.0
  %1453 = vmatpush1.msra.mxu0 0.0
  %1454 = vmatprep.subr.mxu0 0.0
  %1455 = vmatpush1.msra.mxu0 0.0
  %1456 = vmatprep.subr.mxu0 0.0
  %1457 = vmatpush1.msra.mxu0 0.0
  %1458 = vmatprep.subr.mxu0 0.0
  %1459 = vmatpush1.msra.mxu0 0.0
  %1460 = vmatprep.subr.mxu0 0.0
  %1461 = vmatpush1.msra.mxu0 0.0
  %1462 = vmatprep.subr.mxu0 0.0
  %1463 = vmatpush1.msra.mxu0 0.0
  %1464 = vmatprep.subr.mxu0 0.0
  %1465 = vmatpush1.msra.mxu0 0.0
  %1466 = vmatprep.subr.mxu0 0.0
  %1467 = vmatpush1.msra.mxu0 0.0
  %1468 = vmatprep.subr.mxu0 0.0
  %1469 = vmatpush1.msra.mxu0 0.0
  %1470 = vmatprep.subr.mxu0 0.0
  %1471 = vmatpush1.msra.mxu0 0.0
  %1472 = vmatprep.subr.mxu0 0.0
  %1473 = vmatpush1.msra.mxu0 0.0
  %1474 = vmatprep.subr.mxu0 0.0
  %1475 = vmatpush1.msra.mxu0 0.0
  %1476 = vmatprep.subr.mxu0 0.0
  %1477 = vmatpush1.msra.mxu0 0.0
  %1478 = vmatprep.subr.mxu0 0.0
  %1479 = vmatpush1.msra.mxu0 0.0
  %1480 = vmatprep.subr.mxu0 0.0
  %1481 = vmatpush1.msra.mxu0 0.0
  %1482 = vmatprep.mubr.f32.mxu0 0.0
  %1483 = vmatmul.mubr.f32.gmra.mrb[0].mxu0 %v1345
  %v1484 = vpop.f32.mrb[0].mxu0
  %v1485 = vadd.f32 0.0, %v1484
  %v1486 = vpop.f32.mrb[0].mxu0
  %v1487 = vadd.f32 0.0, %v1486
  %1488 = vdwg.mxu0
  %1489 = vmatprep.subr.mxu0 %v1335
  %1490 = vmatpush1.msra.mxu0 %v1334
  %1491 = vmatprep.subr.mxu0 0.0
  %1492 = vmatpush1.msra.mxu0 0.0
  %1493 = vmatprep.subr.mxu0 0.0
  %1494 = vmatpush1.msra.mxu0 0.0
  %1495 = vmatprep.subr.mxu0 0.0
  %1496 = vmatpush1.msra.mxu0 0.0
  %1497 = vmatprep.subr.mxu0 0.0
  %1498 = vmatpush1.msra.mxu0 0.0
  %1499 = vmatprep.subr.mxu0 0.0
  %1500 = vmatpush1.msra.mxu0 0.0
  %1501 = vmatprep.subr.mxu0 0.0
  %1502 = vmatpush1.msra.mxu0 0.0
  %1503 = vmatprep.subr.mxu0 0.0
  %1504 = vmatpush1.msra.mxu0 0.0
  %1505 = vmatprep.subr.mxu0 0.0
  %1506 = vmatpush1.msra.mxu0 0.0
  %1507 = vmatprep.subr.mxu0 0.0
  %1508 = vmatpush1.msra.mxu0 0.0
  %1509 = vmatprep.subr.mxu0 0.0
  %1510 = vmatpush1.msra.mxu0 0.0
  %1511 = vmatprep.subr.mxu0 0.0
  %1512 = vmatpush1.msra.mxu0 0.0
  %1513 = vmatprep.subr.mxu0 0.0
  %1514 = vmatpush1.msra.mxu0 0.0
  %1515 = vmatprep.subr.mxu0 0.0
  %1516 = vmatpush1.msra.mxu0 0.0
  %1517 = vmatprep.subr.mxu0 0.0
  %1518 = vmatpush1.msra.mxu0 0.0
  %1519 = vmatprep.subr.mxu0 0.0
  %1520 = vmatpush1.msra.mxu0 0.0
  %1521 = vmatprep.subr.mxu0 0.0
  %1522 = vmatpush1.msra.mxu0 0.0
  %1523 = vmatprep.subr.mxu0 0.0
  %1524 = vmatpush1.msra.mxu0 0.0
  %1525 = vmatprep.subr.mxu0 0.0
  %1526 = vmatpush1.msra.mxu0 0.0
  %1527 = vmatprep.subr.mxu0 0.0
  %1528 = vmatpush1.msra.mxu0 0.0
  %1529 = vmatprep.subr.mxu0 0.0
  %1530 = vmatpush1.msra.mxu0 0.0
  %1531 = vmatprep.subr.mxu0 0.0
  %1532 = vmatpush1.msra.mxu0 0.0
  %1533 = vmatprep.subr.mxu0 0.0
  %1534 = vmatpush1.msra.mxu0 0.0
  %1535 = vmatprep.subr.mxu0 0.0
  %1536 = vmatpush1.msra.mxu0 0.0
  %1537 = vmatprep.subr.mxu0 0.0
  %1538 = vmatpush1.msra.mxu0 0.0
  %1539 = vmatprep.subr.mxu0 0.0
  %1540 = vmatpush1.msra.mxu0 0.0
  %1541 = vmatprep.subr.mxu0 0.0
  %1542 = vmatpush1.msra.mxu0 0.0
  %1543 = vmatprep.subr.mxu0 0.0
  %1544 = vmatpush1.msra.mxu0 0.0
  %1545 = vmatprep.subr.mxu0 0.0
  %1546 = vmatpush1.msra.mxu0 0.0
  %1547 = vmatprep.subr.mxu0 0.0
  %1548 = vmatpush1.msra.mxu0 0.0
  %1549 = vmatprep.subr.mxu0 0.0
  %1550 = vmatpush1.msra.mxu0 0.0
  %1551 = vmatprep.subr.mxu0 0.0
  %1552 = vmatpush1.msra.mxu0 0.0
  %1553 = vmatprep.mubr.f32.mxu0 0.0
  %1554 = vmatmul.mubr.f32.gmra.mrb[0].mxu0 %v1345
  %v1555 = vpop.f32.mrb[0].mxu0
  %v1556 = vadd.f32 0.0, %v1555
  %v1557 = vpop.f32.mrb[0].mxu0
  %v1558 = vadd.f32 0.0, %v1557
  %1559 = vdwg.mxu0
  %1560 = vmatprep.subr.mxu0 0.0
  %1561 = vmatpush1.msra.mxu0 %v1336
  %1562 = vmatprep.subr.mxu0 0.0
  %1563 = vmatpush1.msra.mxu0 0.0
  %1564 = vmatprep.subr.mxu0 0.0
  %1565 = vmatpush1.msra.mxu0 0.0
  %1566 = vmatprep.subr.mxu0 0.0
  %1567 = vmatpush1.msra.mxu0 0.0
  %1568 = vmatprep.subr.mxu0 0.0
  %1569 = vmatpush1.msra.mxu0 0.0
  %1570 = vmatprep.subr.mxu0 0.0
  %1571 = vmatpush1.msra.mxu0 0.0
  %1572 = vmatprep.subr.mxu0 0.0
  %1573 = vmatpush1.msra.mxu0 0.0
  %1574 = vmatprep.subr.mxu0 0.0
  %1575 = vmatpush1.msra.mxu0 0.0
  %1576 = vmatprep.subr.mxu0 0.0
  %1577 = vmatpush1.msra.mxu0 0.0
  %1578 = vmatprep.subr.mxu0 0.0
  %1579 = vmatpush1.msra.mxu0 0.0
  %1580 = vmatprep.subr.mxu0 0.0
  %1581 = vmatpush1.msra.mxu0 0.0
  %1582 = vmatprep.subr.mxu0 0.0
  %1583 = vmatpush1.msra.mxu0 0.0
  %1584 = vmatprep.subr.mxu0 0.0
  %1585 = vmatpush1.msra.mxu0 0.0
  %1586 = vmatprep.subr.mxu0 0.0
  %1587 = vmatpush1.msra.mxu0 0.0
  %1588 = vmatprep.subr.mxu0 0.0
  %1589 = vmatpush1.msra.mxu0 0.0
  %1590 = vmatprep.subr.mxu0 0.0
  %1591 = vmatpush1.msra.mxu0 0.0
  %1592 = vmatprep.subr.mxu0 0.0
  %1593 = vmatpush1.msra.mxu0 0.0
  %1594 = vmatprep.subr.mxu0 0.0
  %1595 = vmatpush1.msra.mxu0 0.0
  %1596 = vmatprep.subr.mxu0 0.0
  %1597 = vmatpush1.msra.mxu0 0.0
  %1598 = vmatprep.subr.mxu0 0.0
  %1599 = vmatpush1.msra.mxu0 0.0
  %1600 = vmatprep.subr.mxu0 0.0
  %1601 = vmatpush1.msra.mxu0 0.0
  %1602 = vmatprep.subr.mxu0 0.0
  %1603 = vmatpush1.msra.mxu0 0.0
  %1604 = vmatprep.subr.mxu0 0.0
  %1605 = vmatpush1.msra.mxu0 0.0
  %1606 = vmatprep.subr.mxu0 0.0
  %1607 = vmatpush1.msra.mxu0 0.0
  %1608 = vmatprep.subr.mxu0 0.0
  %1609 = vmatpush1.msra.mxu0 0.0
  %1610 = vmatprep.subr.mxu0 0.0
  %1611 = vmatpush1.msra.mxu0 0.0
  %1612 = vmatprep.subr.mxu0 0.0
  %1613 = vmatpush1.msra.mxu0 0.0
  %1614 = vmatprep.subr.mxu0 0.0
  %1615 = vmatpush1.msra.mxu0 0.0
  %1616 = vmatprep.subr.mxu0 0.0
  %1617 = vmatpush1.msra.mxu0 0.0
  %1618 = vmatprep.subr.mxu0 0.0
  %1619 = vmatpush1.msra.mxu0 0.0
  %1620 = vmatprep.subr.mxu0 0.0
  %1621 = vmatpush1.msra.mxu0 0.0
  %1622 = vmatprep.subr.mxu0 0.0
  %1623 = vmatpush1.msra.mxu0 0.0
  %1624 = vmatprep.mubr.f32.mxu0 0.0
  %1625 = vmatmul.mubr.f32.gmra.mrb[0].mxu0 %v1345
  %v1626 = vpop.f32.mrb[0].mxu0
  %v1627 = vadd.f32 0.0, %v1626
  %v1628 = vpop.f32.mrb[0].mxu0
  %1629 = vdwg.mxu0
  %v1630 = vadd.f32 %v1305, %v1414
  %v1631 = vadd.f32 %v1306, %v1416
  %v1632 = vadd.f32 %v1307, %v1485
  %v1633 = vadd.f32 %v1308, %v1487
  %v1634 = vadd.f32 %v1309, %v1556
  %v1635 = vadd.f32 %v1310, %v1558
  %v1636 = vadd.f32 %v1311, %v1627
  %v1637 = vld [vmem:[%s1 + $0x28] sm:$0xff]
  %1638 = vrot.lane.b32.xlu0 %v42, 108
  %v1639 = vpop.permute.xlu0 %1638
  %1640 = vrot.lane.b32.xlu0 %v43, 108
  %v1641 = vpop.permute.xlu0 %1640
  %1642 = vrot.lane.b32.xlu0 %v44, 108
  %v1643 = vpop.permute.xlu0 %1642
  %1644 = vrot.lane.b32.xlu0 %v45, 108
  %v1645 = vpop.permute.xlu0 %1644
  %1646 = vrot.lane.b32.xlu0 %v46, 108
  %v1647 = vpop.permute.xlu0 %1646
  %1648 = vrot.lane.b32.xlu0 %v47, 108
  %v1649 = vpop.permute.xlu0 %1648
  %1650 = vrot.lane.b32.xlu0 %v48, 108
  %v1651 = vpop.permute.xlu0 %1650
  %1652 = vrot.lane.b32.xlu0 %v49, 108
  %v1653 = vpop.permute.xlu0 %1652
  %vm1654 = vcmask 883712
  %v1655 = vsel %vm1654, %v1639, %v1641
  %v1656 = vsel %vm1654, %v1641, %v1643
  %v1657 = vsel %vm1654, %v1643, %v1645
  %v1658 = vsel %vm1654, %v1645, %v1647
  %v1659 = vsel %vm1654, %v1647, %v1649
  %v1660 = vsel %vm1654, %v1649, %v1651
  %v1661 = vsel %vm1654, %v1651, %v1653
  %v1670 = vsel %vm89, %v1637, 0
  %1672 = vmatprep.subr.mxu0 %v1656
  %1673 = vmatpush1.msra.mxu0 %v1655
  %1674 = vmatprep.subr.mxu0 0.0
  %1675 = vmatpush1.msra.mxu0 0.0
  %1676 = vmatprep.subr.mxu0 0.0
  %1677 = vmatpush1.msra.mxu0 0.0
  %1678 = vmatprep.subr.mxu0 0.0
  %1679 = vmatpush1.msra.mxu0 0.0
  %1680 = vmatprep.subr.mxu0 0.0
  %1681 = vmatpush1.msra.mxu0 0.0
  %1682 = vmatprep.subr.mxu0 0.0
  %1683 = vmatpush1.msra.mxu0 0.0
  %1684 = vmatprep.subr.mxu0 0.0
  %1685 = vmatpush1.msra.mxu0 0.0
  %1686 = vmatprep.subr.mxu0 0.0
  %1687 = vmatpush1.msra.mxu0 0.0
  %1688 = vmatprep.subr.mxu0 0.0
  %1689 = vmatpush1.msra.mxu0 0.0
  %1690 = vmatprep.subr.mxu0 0.0
  %1691 = vmatpush1.msra.mxu0 0.0
  %1692 = vmatprep.subr.mxu0 0.0
  %1693 = vmatpush1.msra.mxu0 0.0
  %1694 = vmatprep.subr.mxu0 0.0
  %1695 = vmatpush1.msra.mxu0 0.0
  %1696 = vmatprep.subr.mxu0 0.0
  %1697 = vmatpush1.msra.mxu0 0.0
  %1698 = vmatprep.subr.mxu0 0.0
  %1699 = vmatpush1.msra.mxu0 0.0
  %1700 = vmatprep.subr.mxu0 0.0
  %1701 = vmatpush1.msra.mxu0 0.0
  %1702 = vmatprep.subr.mxu0 0.0
  %1703 = vmatpush1.msra.mxu0 0.0
  %1704 = vmatprep.subr.mxu0 0.0
  %1705 = vmatpush1.msra.mxu0 0.0
  %1706 = vmatprep.subr.mxu0 0.0
  %1707 = vmatpush1.msra.mxu0 0.0
  %1708 = vmatprep.subr.mxu0 0.0
  %1709 = vmatpush1.msra.mxu0 0.0
  %1710 = vmatprep.subr.mxu0 0.0
  %1711 = vmatpush1.msra.mxu0 0.0
  %1712 = vmatprep.subr.mxu0 0.0
  %1713 = vmatpush1.msra.mxu0 0.0
  %1714 = vmatprep.subr.mxu0 0.0
  %1715 = vmatpush1.msra.mxu0 0.0
  %1716 = vmatprep.subr.mxu0 0.0
  %1717 = vmatpush1.msra.mxu0 0.0
  %1718 = vmatprep.subr.mxu0 0.0
  %1719 = vmatpush1.msra.mxu0 0.0
  %1720 = vmatprep.subr.mxu0 0.0
  %1721 = vmatpush1.msra.mxu0 0.0
  %1722 = vmatprep.subr.mxu0 0.0
  %1723 = vmatpush1.msra.mxu0 0.0
  %1724 = vmatprep.subr.mxu0 0.0
  %1725 = vmatpush1.msra.mxu0 0.0
  %1726 = vmatprep.subr.mxu0 0.0
  %1727 = vmatpush1.msra.mxu0 0.0
  %1728 = vmatprep.subr.mxu0 0.0
  %1729 = vmatpush1.msra.mxu0 0.0
  %1730 = vmatprep.subr.mxu0 0.0
  %1731 = vmatpush1.msra.mxu0 0.0
  %1732 = vmatprep.subr.mxu0 0.0
  %1733 = vmatpush1.msra.mxu0 0.0
  %1734 = vmatprep.subr.mxu0 0.0
  %1735 = vmatpush1.msra.mxu0 0.0
  %1736 = vmatprep.mubr.f32.mxu0 0.0
  %1737 = vmatmul.mubr.f32.gmra.mrb[0].mxu0 %v1670
  %v1738 = vpop.f32.mrb[0].mxu0
  %v1739 = vadd.f32 0.0, %v1738
  %v1740 = vpop.f32.mrb[0].mxu0
  %v1741 = vadd.f32 0.0, %v1740
  %1742 = vdwg.mxu0
  %1743 = vmatprep.subr.mxu0 %v1658
  %1744 = vmatpush1.msra.mxu0 %v1657
  %1745 = vmatprep.subr.mxu0 0.0
  %1746 = vmatpush1.msra.mxu0 0.0
  %1747 = vmatprep.subr.mxu0 0.0
  %1748 = vmatpush1.msra.mxu0 0.0
  %1749 = vmatprep.subr.mxu0 0.0
  %1750 = vmatpush1.msra.mxu0 0.0
  %1751 = vmatprep.subr.mxu0 0.0
  %1752 = vmatpush1.msra.mxu0 0.0
  %1753 = vmatprep.subr.mxu0 0.0
  %1754 = vmatpush1.msra.mxu0 0.0
  %1755 = vmatprep.subr.mxu0 0.0
  %1756 = vmatpush1.msra.mxu0 0.0
  %1757 = vmatprep.subr.mxu0 0.0
  %1758 = vmatpush1.msra.mxu0 0.0
  %1759 = vmatprep.subr.mxu0 0.0
  %1760 = vmatpush1.msra.mxu0 0.0
  %1761 = vmatprep.subr.mxu0 0.0
  %1762 = vmatpush1.msra.mxu0 0.0
  %1763 = vmatprep.subr.mxu0 0.0
  %1764 = vmatpush1.msra.mxu0 0.0
  %1765 = vmatprep.subr.mxu0 0.0
  %1766 = vmatpush1.msra.mxu0 0.0
  %1767 = vmatprep.subr.mxu0 0.0
  %1768 = vmatpush1.msra.mxu0 0.0
  %1769 = vmatprep.subr.mxu0 0.0
  %1770 = vmatpush1.msra.mxu0 0.0
  %1771 = vmatprep.subr.mxu0 0.0
  %1772 = vmatpush1.msra.mxu0 0.0
  %1773 = vmatprep.subr.mxu0 0.0
  %1774 = vmatpush1.msra.mxu0 0.0
  %1775 = vmatprep.subr.mxu0 0.0
  %1776 = vmatpush1.msra.mxu0 0.0
  %1777 = vmatprep.subr.mxu0 0.0
  %1778 = vmatpush1.msra.mxu0 0.0
  %1779 = vmatprep.subr.mxu0 0.0
  %1780 = vmatpush1.msra.mxu0 0.0
  %1781 = vmatprep.subr.mxu0 0.0
  %1782 = vmatpush1.msra.mxu0 0.0
  %1783 = vmatprep.subr.mxu0 0.0
  %1784 = vmatpush1.msra.mxu0 0.0
  %1785 = vmatprep.subr.mxu0 0.0
  %1786 = vmatpush1.msra.mxu0 0.0
  %1787 = vmatprep.subr.mxu0 0.0
  %1788 = vmatpush1.msra.mxu0 0.0
  %1789 = vmatprep.subr.mxu0 0.0
  %1790 = vmatpush1.msra.mxu0 0.0
  %1791 = vmatprep.subr.mxu0 0.0
  %1792 = vmatpush1.msra.mxu0 0.0
  %1793 = vmatprep.subr.mxu0 0.0
  %1794 = vmatpush1.msra.mxu0 0.0
  %1795 = vmatprep.subr.mxu0 0.0
  %1796 = vmatpush1.msra.mxu0 0.0
  %1797 = vmatprep.subr.mxu0 0.0
  %1798 = vmatpush1.msra.mxu0 0.0
  %1799 = vmatprep.subr.mxu0 0.0
  %1800 = vmatpush1.msra.mxu0 0.0
  %1801 = vmatprep.subr.mxu0 0.0
  %1802 = vmatpush1.msra.mxu0 0.0
  %1803 = vmatprep.subr.mxu0 0.0
  %1804 = vmatpush1.msra.mxu0 0.0
  %1805 = vmatprep.subr.mxu0 0.0
  %1806 = vmatpush1.msra.mxu0 0.0
  %1807 = vmatprep.mubr.f32.mxu0 0.0
  %1808 = vmatmul.mubr.f32.gmra.mrb[0].mxu0 %v1670
  %v1809 = vpop.f32.mrb[0].mxu0
  %v1810 = vadd.f32 0.0, %v1809
  %v1811 = vpop.f32.mrb[0].mxu0
  %v1812 = vadd.f32 0.0, %v1811
  %1813 = vdwg.mxu0
  %1814 = vmatprep.subr.mxu0 %v1660
  %1815 = vmatpush1.msra.mxu0 %v1659
  %1816 = vmatprep.subr.mxu0 0.0
  %1817 = vmatpush1.msra.mxu0 0.0
  %1818 = vmatprep.subr.mxu0 0.0
  %1819 = vmatpush1.msra.mxu0 0.0
  %1820 = vmatprep.subr.mxu0 0.0
  %1821 = vmatpush1.msra.mxu0 0.0
  %1822 = vmatprep.subr.mxu0 0.0
  %1823 = vmatpush1.msra.mxu0 0.0
  %1824 = vmatprep.subr.mxu0 0.0
  %1825 = vmatpush1.msra.mxu0 0.0
  %1826 = vmatprep.subr.mxu0 0.0
  %1827 = vmatpush1.msra.mxu0 0.0
  %1828 = vmatprep.subr.mxu0 0.0
  %1829 = vmatpush1.msra.mxu0 0.0
  %1830 = vmatprep.subr.mxu0 0.0
  %1831 = vmatpush1.msra.mxu0 0.0
  %1832 = vmatprep.subr.mxu0 0.0
  %1833 = vmatpush1.msra.mxu0 0.0
  %1834 = vmatprep.subr.mxu0 0.0
  %1835 = vmatpush1.msra.mxu0 0.0
  %1836 = vmatprep.subr.mxu0 0.0
  %1837 = vmatpush1.msra.mxu0 0.0
  %1838 = vmatprep.subr.mxu0 0.0
  %1839 = vmatpush1.msra.mxu0 0.0
  %1840 = vmatprep.subr.mxu0 0.0
  %1841 = vmatpush1.msra.mxu0 0.0
  %1842 = vmatprep.subr.mxu0 0.0
  %1843 = vmatpush1.msra.mxu0 0.0
  %1844 = vmatprep.subr.mxu0 0.0
  %1845 = vmatpush1.msra.mxu0 0.0
  %1846 = vmatprep.subr.mxu0 0.0
  %1847 = vmatpush1.msra.mxu0 0.0
  %1848 = vmatprep.subr.mxu0 0.0
  %1849 = vmatpush1.msra.mxu0 0.0
  %1850 = vmatprep.subr.mxu0 0.0
  %1851 = vmatpush1.msra.mxu0 0.0
  %1852 = vmatprep.subr.mxu0 0.0
  %1853 = vmatpush1.msra.mxu0 0.0
  %1854 = vmatprep.subr.mxu0 0.0
  %1855 = vmatpush1.msra.mxu0 0.0
  %1856 = vmatprep.subr.mxu0 0.0
  %1857 = vmatpush1.msra.mxu0 0.0
  %1858 = vmatprep.subr.mxu0 0.0
  %1859 = vmatpush1.msra.mxu0 0.0
  %1860 = vmatprep.subr.mxu0 0.0
  %1861 = vmatpush1.msra.mxu0 0.0
  %1862 = vmatprep.subr.mxu0 0.0
  %1863 = vmatpush1.msra.mxu0 0.0
  %1864 = vmatprep.subr.mxu0 0.0
  %1865 = vmatpush1.msra.mxu0 0.0
  %1866 = vmatprep.subr.mxu0 0.0
  %1867 = vmatpush1.msra.mxu0 0.0
  %1868 = vmatprep.subr.mxu0 0.0
  %1869 = vmatpush1.msra.mxu0 0.0
  %1870 = vmatprep.subr.mxu0 0.0
  %1871 = vmatpush1.msra.mxu0 0.0
  %1872 = vmatprep.subr.mxu0 0.0
  %1873 = vmatpush1.msra.mxu0 0.0
  %1874 = vmatprep.subr.mxu0 0.0
  %1875 = vmatpush1.msra.mxu0 0.0
  %1876 = vmatprep.subr.mxu0 0.0
  %1877 = vmatpush1.msra.mxu0 0.0
  %1878 = vmatprep.mubr.f32.mxu0 0.0
  %1879 = vmatmul.mubr.f32.gmra.mrb[0].mxu0 %v1670
  %v1880 = vpop.f32.mrb[0].mxu0
  %v1881 = vadd.f32 0.0, %v1880
  %v1882 = vpop.f32.mrb[0].mxu0
  %v1883 = vadd.f32 0.0, %v1882
  %1884 = vdwg.mxu0
  %1885 = vmatprep.subr.mxu0 0.0
  %1886 = vmatpush1.msra.mxu0 %v1661
  %1887 = vmatprep.subr.mxu0 0.0
  %1888 = vmatpush1.msra.mxu0 0.0
  %1889 = vmatprep.subr.mxu0 0.0
  %1890 = vmatpush1.msra.mxu0 0.0
  %1891 = vmatprep.subr.mxu0 0.0
  %1892 = vmatpush1.msra.mxu0 0.0
  %1893 = vmatprep.subr.mxu0 0.0
  %1894 = vmatpush1.msra.mxu0 0.0
  %1895 = vmatprep.subr.mxu0 0.0
  %1896 = vmatpush1.msra.mxu0 0.0
  %1897 = vmatprep.subr.mxu0 0.0
  %1898 = vmatpush1.msra.mxu0 0.0
  %1899 = vmatprep.subr.mxu0 0.0
  %1900 = vmatpush1.msra.mxu0 0.0
  %1901 = vmatprep.subr.mxu0 0.0
  %1902 = vmatpush1.msra.mxu0 0.0
  %1903 = vmatprep.subr.mxu0 0.0
  %1904 = vmatpush1.msra.mxu0 0.0
  %1905 = vmatprep.subr.mxu0 0.0
  %1906 = vmatpush1.msra.mxu0 0.0
  %1907 = vmatprep.subr.mxu0 0.0
  %1908 = vmatpush1.msra.mxu0 0.0
  %1909 = vmatprep.subr.mxu0 0.0
  %1910 = vmatpush1.msra.mxu0 0.0
  %1911 = vmatprep.subr.mxu0 0.0
  %1912 = vmatpush1.msra.mxu0 0.0
  %1913 = vmatprep.subr.mxu0 0.0
  %1914 = vmatpush1.msra.mxu0 0.0
  %1915 = vmatprep.subr.mxu0 0.0
  %1916 = vmatpush1.msra.mxu0 0.0
  %1917 = vmatprep.subr.mxu0 0.0
  %1918 = vmatpush1.msra.mxu0 0.0
  %1919 = vmatprep.subr.mxu0 0.0
  %1920 = vmatpush1.msra.mxu0 0.0
  %1921 = vmatprep.subr.mxu0 0.0
  %1922 = vmatpush1.msra.mxu0 0.0
  %1923 = vmatprep.subr.mxu0 0.0
  %1924 = vmatpush1.msra.mxu0 0.0
  %1925 = vmatprep.subr.mxu0 0.0
  %1926 = vmatpush1.msra.mxu0 0.0
  %1927 = vmatprep.subr.mxu0 0.0
  %1928 = vmatpush1.msra.mxu0 0.0
  %1929 = vmatprep.subr.mxu0 0.0
  %1930 = vmatpush1.msra.mxu0 0.0
  %1931 = vmatprep.subr.mxu0 0.0
  %1932 = vmatpush1.msra.mxu0 0.0
  %1933 = vmatprep.subr.mxu0 0.0
  %1934 = vmatpush1.msra.mxu0 0.0
  %1935 = vmatprep.subr.mxu0 0.0
  %1936 = vmatpush1.msra.mxu0 0.0
  %1937 = vmatprep.subr.mxu0 0.0
  %1938 = vmatpush1.msra.mxu0 0.0
  %1939 = vmatprep.subr.mxu0 0.0
  %1940 = vmatpush1.msra.mxu0 0.0
  %1941 = vmatprep.subr.mxu0 0.0
  %1942 = vmatpush1.msra.mxu0 0.0
  %1943 = vmatprep.subr.mxu0 0.0
  %1944 = vmatpush1.msra.mxu0 0.0
  %1945 = vmatprep.subr.mxu0 0.0
  %1946 = vmatpush1.msra.mxu0 0.0
  %1947 = vmatprep.subr.mxu0 0.0
  %1948 = vmatpush1.msra.mxu0 0.0
  %1949 = vmatprep.mubr.f32.mxu0 0.0
  %1950 = vmatmul.mubr.f32.gmra.mrb[0].mxu0 %v1670
  %v1951 = vpop.f32.mrb[0].mxu0
  %v1952 = vadd.f32 0.0, %v1951
  %v1953 = vpop.f32.mrb[0].mxu0
  %1954 = vdwg.mxu0
  %v1955 = vadd.f32 %v1630, %v1739
  %v1956 = vadd.f32 %v1631, %v1741
  %v1957 = vadd.f32 %v1632, %v1810
  %v1958 = vadd.f32 %v1633, %v1812
  %v1959 = vadd.f32 %v1634, %v1881
  %v1960 = vadd.f32 %v1635, %v1883
  %v1961 = vadd.f32 %v1636, %v1952
  %v1962 = vld [vmem:[%s1 + $0x30] sm:$0xff]
  %1963 = vrot.lane.b32.xlu0 %v42, 92
  %v1964 = vpop.permute.xlu0 %1963
  %1965 = vrot.lane.b32.xlu0 %v43, 92
  %v1966 = vpop.permute.xlu0 %1965
  %1967 = vrot.lane.b32.xlu0 %v44, 92
  %v1968 = vpop.permute.xlu0 %1967
  %1969 = vrot.lane.b32.xlu0 %v45, 92
  %v1970 = vpop.permute.xlu0 %1969
  %1971 = vrot.lane.b32.xlu0 %v46, 92
  %v1972 = vpop.permute.xlu0 %1971
  %1973 = vrot.lane.b32.xlu0 %v47, 92
  %v1974 = vpop.permute.xlu0 %1973
  %1975 = vrot.lane.b32.xlu0 %v48, 92
  %v1976 = vpop.permute.xlu0 %1975
  %1977 = vrot.lane.b32.xlu0 %v49, 92
  %v1978 = vpop.permute.xlu0 %1977
  %vm1979 = vcmask 752640
  %v1980 = vsel %vm1979, %v1964, %v1966
  %v1981 = vsel %vm1979, %v1966, %v1968
  %v1982 = vsel %vm1979, %v1968, %v1970
  %v1983 = vsel %vm1979, %v1970, %v1972
  %v1984 = vsel %vm1979, %v1972, %v1974
  %v1985 = vsel %vm1979, %v1974, %v1976
  %v1986 = vsel %vm1979, %v1976, %v1978
  %v1995 = vsel %vm89, %v1962, 0
  %1997 = vmatprep.subr.mxu0 %v1981
  %1998 = vmatpush1.msra.mxu0 %v1980
  %1999 = vmatprep.subr.mxu0 0.0
  %2000 = vmatpush1.msra.mxu0 0.0
  %2001 = vmatprep.subr.mxu0 0.0
  %2002 = vmatpush1.msra.mxu0 0.0
  %2003 = vmatprep.subr.mxu0 0.0
  %2004 = vmatpush1.msra.mxu0 0.0
  %2005 = vmatprep.subr.mxu0 0.0
  %2006 = vmatpush1.msra.mxu0 0.0
  %2007 = vmatprep.subr.mxu0 0.0
  %2008 = vmatpush1.msra.mxu0 0.0
  %2009 = vmatprep.subr.mxu0 0.0
  %2010 = vmatpush1.msra.mxu0 0.0
  %2011 = vmatprep.subr.mxu0 0.0
  %2012 = vmatpush1.msra.mxu0 0.0
  %2013 = vmatprep.subr.mxu0 0.0
  %2014 = vmatpush1.msra.mxu0 0.0
  %2015 = vmatprep.subr.mxu0 0.0
  %2016 = vmatpush1.msra.mxu0 0.0
  %2017 = vmatprep.subr.mxu0 0.0
  %2018 = vmatpush1.msra.mxu0 0.0
  %2019 = vmatprep.subr.mxu0 0.0
  %2020 = vmatpush1.msra.mxu0 0.0
  %2021 = vmatprep.subr.mxu0 0.0
  %2022 = vmatpush1.msra.mxu0 0.0
  %2023 = vmatprep.subr.mxu0 0.0
  %2024 = vmatpush1.msra.mxu0 0.0
  %2025 = vmatprep.subr.mxu0 0.0
  %2026 = vmatpush1.msra.mxu0 0.0
  %2027 = vmatprep.subr.mxu0 0.0
  %2028 = vmatpush1.msra.mxu0 0.0
  %2029 = vmatprep.subr.mxu0 0.0
  %2030 = vmatpush1.msra.mxu0 0.0
  %2031 = vmatprep.subr.mxu0 0.0
  %2032 = vmatpush1.msra.mxu0 0.0
  %2033 = vmatprep.subr.mxu0 0.0
  %2034 = vmatpush1.msra.mxu0 0.0
  %2035 = vmatprep.subr.mxu0 0.0
  %2036 = vmatpush1.msra.mxu0 0.0
  %2037 = vmatprep.subr.mxu0 0.0
  %2038 = vmatpush1.msra.mxu0 0.0
  %2039 = vmatprep.subr.mxu0 0.0
  %2040 = vmatpush1.msra.mxu0 0.0
  %2041 = vmatprep.subr.mxu0 0.0
  %2042 = vmatpush1.msra.mxu0 0.0
  %2043 = vmatprep.subr.mxu0 0.0
  %2044 = vmatpush1.msra.mxu0 0.0
  %2045 = vmatprep.subr.mxu0 0.0
  %2046 = vmatpush1.msra.mxu0 0.0
  %2047 = vmatprep.subr.mxu0 0.0
  %2048 = vmatpush1.msra.mxu0 0.0
  %2049 = vmatprep.subr.mxu0 0.0
  %2050 = vmatpush1.msra.mxu0 0.0
  %2051 = vmatprep.subr.mxu0 0.0
  %2052 = vmatpush1.msra.mxu0 0.0
  %2053 = vmatprep.subr.mxu0 0.0
  %2054 = vmatpush1.msra.mxu0 0.0
  %2055 = vmatprep.subr.mxu0 0.0
  %2056 = vmatpush1.msra.mxu0 0.0
  %2057 = vmatprep.subr.mxu0 0.0
  %2058 = vmatpush1.msra.mxu0 0.0
  %2059 = vmatprep.subr.mxu0 0.0
  %2060 = vmatpush1.msra.mxu0 0.0
  %2061 = vmatprep.mubr.f32.mxu0 0.0
  %2062 = vmatmul.mubr.f32.gmra.mrb[0].mxu0 %v1995
  %v2063 = vpop.f32.mrb[0].mxu0
  %v2064 = vadd.f32 0.0, %v2063
  %v2065 = vpop.f32.mrb[0].mxu0
  %v2066 = vadd.f32 0.0, %v2065
  %2067 = vdwg.mxu0
  %2068 = vmatprep.subr.mxu0 %v1983
  %2069 = vmatpush1.msra.mxu0 %v1982
  %2070 = vmatprep.subr.mxu0 0.0
  %2071 = vmatpush1.msra.mxu0 0.0
  %2072 = vmatprep.subr.mxu0 0.0
  %2073 = vmatpush1.msra.mxu0 0.0
  %2074 = vmatprep.subr.mxu0 0.0
  %2075 = vmatpush1.msra.mxu0 0.0
  %2076 = vmatprep.subr.mxu0 0.0
  %2077 = vmatpush1.msra.mxu0 0.0
  %2078 = vmatprep.subr.mxu0 0.0
  %2079 = vmatpush1.msra.mxu0 0.0
  %2080 = vmatprep.subr.mxu0 0.0
  %2081 = vmatpush1.msra.mxu0 0.0
  %2082 = vmatprep.subr.mxu0 0.0
  %2083 = vmatpush1.msra.mxu0 0.0
  %2084 = vmatprep.subr.mxu0 0.0
  %2085 = vmatpush1.msra.mxu0 0.0
  %2086 = vmatprep.subr.mxu0 0.0
  %2087 = vmatpush1.msra.mxu0 0.0
  %2088 = vmatprep.subr.mxu0 0.0
  %2089 = vmatpush1.msra.mxu0 0.0
  %2090 = vmatprep.subr.mxu0 0.0
  %2091 = vmatpush1.msra.mxu0 0.0
  %2092 = vmatprep.subr.mxu0 0.0
  %2093 = vmatpush1.msra.mxu0 0.0
  %2094 = vmatprep.subr.mxu0 0.0
  %2095 = vmatpush1.msra.mxu0 0.0
  %2096 = vmatprep.subr.mxu0 0.0
  %2097 = vmatpush1.msra.mxu0 0.0
  %2098 = vmatprep.subr.mxu0 0.0
  %2099 = vmatpush1.msra.mxu0 0.0
  %2100 = vmatprep.subr.mxu0 0.0
  %2101 = vmatpush1.msra.mxu0 0.0
  %2102 = vmatprep.subr.mxu0 0.0
  %2103 = vmatpush1.msra.mxu0 0.0
  %2104 = vmatprep.subr.mxu0 0.0
  %2105 = vmatpush1.msra.mxu0 0.0
  %2106 = vmatprep.subr.mxu0 0.0
  %2107 = vmatpush1.msra.mxu0 0.0
  %2108 = vmatprep.subr.mxu0 0.0
  %2109 = vmatpush1.msra.mxu0 0.0
  %2110 = vmatprep.subr.mxu0 0.0
  %2111 = vmatpush1.msra.mxu0 0.0
  %2112 = vmatprep.subr.mxu0 0.0
  %2113 = vmatpush1.msra.mxu0 0.0
  %2114 = vmatprep.subr.mxu0 0.0
  %2115 = vmatpush1.msra.mxu0 0.0
  %2116 = vmatprep.subr.mxu0 0.0
  %2117 = vmatpush1.msra.mxu0 0.0
  %2118 = vmatprep.subr.mxu0 0.0
  %2119 = vmatpush1.msra.mxu0 0.0
  %2120 = vmatprep.subr.mxu0 0.0
  %2121 = vmatpush1.msra.mxu0 0.0
  %2122 = vmatprep.subr.mxu0 0.0
  %2123 = vmatpush1.msra.mxu0 0.0
  %2124 = vmatprep.subr.mxu0 0.0
  %2125 = vmatpush1.msra.mxu0 0.0
  %2126 = vmatprep.subr.mxu0 0.0
  %2127 = vmatpush1.msra.mxu0 0.0
  %2128 = vmatprep.subr.mxu0 0.0
  %2129 = vmatpush1.msra.mxu0 0.0
  %2130 = vmatprep.subr.mxu0 0.0
  %2131 = vmatpush1.msra.mxu0 0.0
  %2132 = vmatprep.mubr.f32.mxu0 0.0
  %2133 = vmatmul.mubr.f32.gmra.mrb[0].mxu0 %v1995
  %v2134 = vpop.f32.mrb[0].mxu0
  %v2135 = vadd.f32 0.0, %v2134
  %v2136 = vpop.f32.mrb[0].mxu0
  %v2137 = vadd.f32 0.0, %v2136
  %2138 = vdwg.mxu0
  %2139 = vmatprep.subr.mxu0 %v1985
  %2140 = vmatpush1.msra.mxu0 %v1984
  %2141 = vmatprep.subr.mxu0 0.0
  %2142 = vmatpush1.msra.mxu0 0.0
  %2143 = vmatprep.subr.mxu0 0.0
  %2144 = vmatpush1.msra.mxu0 0.0
  %2145 = vmatprep.subr.mxu0 0.0
  %2146 = vmatpush1.msra.mxu0 0.0
  %2147 = vmatprep.subr.mxu0 0.0
  %2148 = vmatpush1.msra.mxu0 0.0
  %2149 = vmatprep.subr.mxu0 0.0
  %2150 = vmatpush1.msra.mxu0 0.0
  %2151 = vmatprep.subr.mxu0 0.0
  %2152 = vmatpush1.msra.mxu0 0.0
  %2153 = vmatprep.subr.mxu0 0.0
  %2154 = vmatpush1.msra.mxu0 0.0
  %2155 = vmatprep.subr.mxu0 0.0
  %2156 = vmatpush1.msra.mxu0 0.0
  %2157 = vmatprep.subr.mxu0 0.0
  %2158 = vmatpush1.msra.mxu0 0.0
  %2159 = vmatprep.subr.mxu0 0.0
  %2160 = vmatpush1.msra.mxu0 0.0
  %2161 = vmatprep.subr.mxu0 0.0
  %2162 = vmatpush1.msra.mxu0 0.0
  %2163 = vmatprep.subr.mxu0 0.0
  %2164 = vmatpush1.msra.mxu0 0.0
  %2165 = vmatprep.subr.mxu0 0.0
  %2166 = vmatpush1.msra.mxu0 0.0
  %2167 = vmatprep.subr.mxu0 0.0
  %2168 = vmatpush1.msra.mxu0 0.0
  %2169 = vmatprep.subr.mxu0 0.0
  %2170 = vmatpush1.msra.mxu0 0.0
  %2171 = vmatprep.subr.mxu0 0.0
  %2172 = vmatpush1.msra.mxu0 0.0
  %2173 = vmatprep.subr.mxu0 0.0
  %2174 = vmatpush1.msra.mxu0 0.0
  %2175 = vmatprep.subr.mxu0 0.0
  %2176 = vmatpush1.msra.mxu0 0.0
  %2177 = vmatprep.subr.mxu0 0.0
  %2178 = vmatpush1.msra.mxu0 0.0
  %2179 = vmatprep.subr.mxu0 0.0
  %2180 = vmatpush1.msra.mxu0 0.0
  %2181 = vmatprep.subr.mxu0 0.0
  %2182 = vmatpush1.msra.mxu0 0.0
  %2183 = vmatprep.subr.mxu0 0.0
  %2184 = vmatpush1.msra.mxu0 0.0
  %2185 = vmatprep.subr.mxu0 0.0
  %2186 = vmatpush1.msra.mxu0 0.0
  %2187 = vmatprep.subr.mxu0 0.0
  %2188 = vmatpush1.msra.mxu0 0.0
  %2189 = vmatprep.subr.mxu0 0.0
  %2190 = vmatpush1.msra.mxu0 0.0
  %2191 = vmatprep.subr.mxu0 0.0
  %2192 = vmatpush1.msra.mxu0 0.0
  %2193 = vmatprep.subr.mxu0 0.0
  %2194 = vmatpush1.msra.mxu0 0.0
  %2195 = vmatprep.subr.mxu0 0.0
  %2196 = vmatpush1.msra.mxu0 0.0
  %2197 = vmatprep.subr.mxu0 0.0
  %2198 = vmatpush1.msra.mxu0 0.0
  %2199 = vmatprep.subr.mxu0 0.0
  %2200 = vmatpush1.msra.mxu0 0.0
  %2201 = vmatprep.subr.mxu0 0.0
  %2202 = vmatpush1.msra.mxu0 0.0
  %2203 = vmatprep.mubr.f32.mxu0 0.0
  %2204 = vmatmul.mubr.f32.gmra.mrb[0].mxu0 %v1995
  %v2205 = vpop.f32.mrb[0].mxu0
  %v2206 = vadd.f32 0.0, %v2205
  %v2207 = vpop.f32.mrb[0].mxu0
  %v2208 = vadd.f32 0.0, %v2207
  %2209 = vdwg.mxu0
  %2210 = vmatprep.subr.mxu0 0.0
  %2211 = vmatpush1.msra.mxu0 %v1986
  %2212 = vmatprep.subr.mxu0 0.0
  %2213 = vmatpush1.msra.mxu0 0.0
  %2214 = vmatprep.subr.mxu0 0.0
  %2215 = vmatpush1.msra.mxu0 0.0
  %2216 = vmatprep.subr.mxu0 0.0
  %2217 = vmatpush1.msra.mxu0 0.0
  %2218 = vmatprep.subr.mxu0 0.0
  %2219 = vmatpush1.msra.mxu0 0.0
  %2220 = vmatprep.subr.mxu0 0.0
  %2221 = vmatpush1.msra.mxu0 0.0
  %2222 = vmatprep.subr.mxu0 0.0
  %2223 = vmatpush1.msra.mxu0 0.0
  %2224 = vmatprep.subr.mxu0 0.0
  %2225 = vmatpush1.msra.mxu0 0.0
  %2226 = vmatprep.subr.mxu0 0.0
  %2227 = vmatpush1.msra.mxu0 0.0
  %2228 = vmatprep.subr.mxu0 0.0
  %2229 = vmatpush1.msra.mxu0 0.0
  %2230 = vmatprep.subr.mxu0 0.0
  %2231 = vmatpush1.msra.mxu0 0.0
  %2232 = vmatprep.subr.mxu0 0.0
  %2233 = vmatpush1.msra.mxu0 0.0
  %2234 = vmatprep.subr.mxu0 0.0
  %2235 = vmatpush1.msra.mxu0 0.0
  %2236 = vmatprep.subr.mxu0 0.0
  %2237 = vmatpush1.msra.mxu0 0.0
  %2238 = vmatprep.subr.mxu0 0.0
  %2239 = vmatpush1.msra.mxu0 0.0
  %2240 = vmatprep.subr.mxu0 0.0
  %2241 = vmatpush1.msra.mxu0 0.0
  %2242 = vmatprep.subr.mxu0 0.0
  %2243 = vmatpush1.msra.mxu0 0.0
  %2244 = vmatprep.subr.mxu0 0.0
  %2245 = vmatpush1.msra.mxu0 0.0
  %2246 = vmatprep.subr.mxu0 0.0
  %2247 = vmatpush1.msra.mxu0 0.0
  %2248 = vmatprep.subr.mxu0 0.0
  %2249 = vmatpush1.msra.mxu0 0.0
  %2250 = vmatprep.subr.mxu0 0.0
  %2251 = vmatpush1.msra.mxu0 0.0
  %2252 = vmatprep.subr.mxu0 0.0
  %2253 = vmatpush1.msra.mxu0 0.0
  %2254 = vmatprep.subr.mxu0 0.0
  %2255 = vmatpush1.msra.mxu0 0.0
  %2256 = vmatprep.subr.mxu0 0.0
  %2257 = vmatpush1.msra.mxu0 0.0
  %2258 = vmatprep.subr.mxu0 0.0
  %2259 = vmatpush1.msra.mxu0 0.0
  %2260 = vmatprep.subr.mxu0 0.0
  %2261 = vmatpush1.msra.mxu0 0.0
  %2262 = vmatprep.subr.mxu0 0.0
  %2263 = vmatpush1.msra.mxu0 0.0
  %2264 = vmatprep.subr.mxu0 0.0
  %2265 = vmatpush1.msra.mxu0 0.0
  %2266 = vmatprep.subr.mxu0 0.0
  %2267 = vmatpush1.msra.mxu0 0.0
  %2268 = vmatprep.subr.mxu0 0.0
  %2269 = vmatpush1.msra.mxu0 0.0
  %2270 = vmatprep.subr.mxu0 0.0
  %2271 = vmatpush1.msra.mxu0 0.0
  %2272 = vmatprep.subr.mxu0 0.0
  %2273 = vmatpush1.msra.mxu0 0.0
  %2274 = vmatprep.mubr.f32.mxu0 0.0
  %2275 = vmatmul.mubr.f32.gmra.mrb[0].mxu0 %v1995
  %v2276 = vpop.f32.mrb[0].mxu0
  %v2277 = vadd.f32 0.0, %v2276
  %v2278 = vpop.f32.mrb[0].mxu0
  %2279 = vdwg.mxu0
  %v2280 = vadd.f32 %v1955, %v2064
  %v2281 = vadd.f32 %v1956, %v2066
  %v2282 = vadd.f32 %v1957, %v2135
  %v2283 = vadd.f32 %v1958, %v2137
  %v2284 = vadd.f32 %v1959, %v2206
  %v2285 = vadd.f32 %v1960, %v2208
  %v2286 = vadd.f32 %v1961, %v2277
  %v2287 = vld [vmem:[%s1 + $0x38] sm:$0xff]
  %2288 = vrot.lane.b32.xlu0 %v42, 91
  %v2289 = vpop.permute.xlu0 %2288
  %2290 = vrot.lane.b32.xlu0 %v43, 91
  %v2291 = vpop.permute.xlu0 %2290
  %2292 = vrot.lane.b32.xlu0 %v44, 91
  %v2293 = vpop.permute.xlu0 %2292
  %2294 = vrot.lane.b32.xlu0 %v45, 91
  %v2295 = vpop.permute.xlu0 %2294
  %2296 = vrot.lane.b32.xlu0 %v46, 91
  %v2297 = vpop.permute.xlu0 %2296
  %2298 = vrot.lane.b32.xlu0 %v47, 91
  %v2299 = vpop.permute.xlu0 %2298
  %2300 = vrot.lane.b32.xlu0 %v48, 91
  %v2301 = vpop.permute.xlu0 %2300
  %2302 = vrot.lane.b32.xlu0 %v49, 91
  %v2303 = vpop.permute.xlu0 %2302
  %vm2304 = vcmask 744448
  %v2305 = vsel %vm2304, %v2289, %v2291
  %v2306 = vsel %vm2304, %v2291, %v2293
  %v2307 = vsel %vm2304, %v2293, %v2295
  %v2308 = vsel %vm2304, %v2295, %v2297
  %v2309 = vsel %vm2304, %v2297, %v2299
  %v2310 = vsel %vm2304, %v2299, %v2301
  %v2311 = vsel %vm2304, %v2301, %v2303
  %v2320 = vsel %vm89, %v2287, 0
  %2322 = vmatprep.subr.mxu0 %v2306
  %2323 = vmatpush1.msra.mxu0 %v2305
  %2324 = vmatprep.subr.mxu0 0.0
  %2325 = vmatpush1.msra.mxu0 0.0
  %2326 = vmatprep.subr.mxu0 0.0
  %2327 = vmatpush1.msra.mxu0 0.0
  %2328 = vmatprep.subr.mxu0 0.0
  %2329 = vmatpush1.msra.mxu0 0.0
  %2330 = vmatprep.subr.mxu0 0.0
  %2331 = vmatpush1.msra.mxu0 0.0
  %2332 = vmatprep.subr.mxu0 0.0
  %2333 = vmatpush1.msra.mxu0 0.0
  %2334 = vmatprep.subr.mxu0 0.0
  %2335 = vmatpush1.msra.mxu0 0.0
  %2336 = vmatprep.subr.mxu0 0.0
  %2337 = vmatpush1.msra.mxu0 0.0
  %2338 = vmatprep.subr.mxu0 0.0
  %2339 = vmatpush1.msra.mxu0 0.0
  %2340 = vmatprep.subr.mxu0 0.0
  %2341 = vmatpush1.msra.mxu0 0.0
  %2342 = vmatprep.subr.mxu0 0.0
  %2343 = vmatpush1.msra.mxu0 0.0
  %2344 = vmatprep.subr.mxu0 0.0
  %2345 = vmatpush1.msra.mxu0 0.0
  %2346 = vmatprep.subr.mxu0 0.0
  %2347 = vmatpush1.msra.mxu0 0.0
  %2348 = vmatprep.subr.mxu0 0.0
  %2349 = vmatpush1.msra.mxu0 0.0
  %2350 = vmatprep.subr.mxu0 0.0
  %2351 = vmatpush1.msra.mxu0 0.0
  %2352 = vmatprep.subr.mxu0 0.0
  %2353 = vmatpush1.msra.mxu0 0.0
  %2354 = vmatprep.subr.mxu0 0.0
  %2355 = vmatpush1.msra.mxu0 0.0
  %2356 = vmatprep.subr.mxu0 0.0
  %2357 = vmatpush1.msra.mxu0 0.0
  %2358 = vmatprep.subr.mxu0 0.0
  %2359 = vmatpush1.msra.mxu0 0.0
  %2360 = vmatprep.subr.mxu0 0.0
  %2361 = vmatpush1.msra.mxu0 0.0
  %2362 = vmatprep.subr.mxu0 0.0
  %2363 = vmatpush1.msra.mxu0 0.0
  %2364 = vmatprep.subr.mxu0 0.0
  %2365 = vmatpush1.msra.mxu0 0.0
  %2366 = vmatprep.subr.mxu0 0.0
  %2367 = vmatpush1.msra.mxu0 0.0
  %2368 = vmatprep.subr.mxu0 0.0
  %2369 = vmatpush1.msra.mxu0 0.0
  %2370 = vmatprep.subr.mxu0 0.0
  %2371 = vmatpush1.msra.mxu0 0.0
  %2372 = vmatprep.subr.mxu0 0.0
  %2373 = vmatpush1.msra.mxu0 0.0
  %2374 = vmatprep.subr.mxu0 0.0
  %2375 = vmatpush1.msra.mxu0 0.0
  %2376 = vmatprep.subr.mxu0 0.0
  %2377 = vmatpush1.msra.mxu0 0.0
  %2378 = vmatprep.subr.mxu0 0.0
  %2379 = vmatpush1.msra.mxu0 0.0
  %2380 = vmatprep.subr.mxu0 0.0
  %2381 = vmatpush1.msra.mxu0 0.0
  %2382 = vmatprep.subr.mxu0 0.0
  %2383 = vmatpush1.msra.mxu0 0.0
  %2384 = vmatprep.subr.mxu0 0.0
  %2385 = vmatpush1.msra.mxu0 0.0
  %2386 = vmatprep.mubr.f32.mxu0 0.0
  %2387 = vmatmul.mubr.f32.gmra.mrb[0].mxu0 %v2320
  %v2388 = vpop.f32.mrb[0].mxu0
  %v2389 = vadd.f32 0.0, %v2388
  %v2390 = vpop.f32.mrb[0].mxu0
  %v2391 = vadd.f32 0.0, %v2390
  %2392 = vdwg.mxu0
  %2393 = vmatprep.subr.mxu0 %v2308
  %2394 = vmatpush1.msra.mxu0 %v2307
  %2395 = vmatprep.subr.mxu0 0.0
  %2396 = vmatpush1.msra.mxu0 0.0
  %2397 = vmatprep.subr.mxu0 0.0
  %2398 = vmatpush1.msra.mxu0 0.0
  %2399 = vmatprep.subr.mxu0 0.0
  %2400 = vmatpush1.msra.mxu0 0.0
  %2401 = vmatprep.subr.mxu0 0.0
  %2402 = vmatpush1.msra.mxu0 0.0
  %2403 = vmatprep.subr.mxu0 0.0
  %2404 = vmatpush1.msra.mxu0 0.0
  %2405 = vmatprep.subr.mxu0 0.0
  %2406 = vmatpush1.msra.mxu0 0.0
  %2407 = vmatprep.subr.mxu0 0.0
  %2408 = vmatpush1.msra.mxu0 0.0
  %2409 = vmatprep.subr.mxu0 0.0
  %2410 = vmatpush1.msra.mxu0 0.0
  %2411 = vmatprep.subr.mxu0 0.0
  %2412 = vmatpush1.msra.mxu0 0.0
  %2413 = vmatprep.subr.mxu0 0.0
  %2414 = vmatpush1.msra.mxu0 0.0
  %2415 = vmatprep.subr.mxu0 0.0
  %2416 = vmatpush1.msra.mxu0 0.0
  %2417 = vmatprep.subr.mxu0 0.0
  %2418 = vmatpush1.msra.mxu0 0.0
  %2419 = vmatprep.subr.mxu0 0.0
  %2420 = vmatpush1.msra.mxu0 0.0
  %2421 = vmatprep.subr.mxu0 0.0
  %2422 = vmatpush1.msra.mxu0 0.0
  %2423 = vmatprep.subr.mxu0 0.0
  %2424 = vmatpush1.msra.mxu0 0.0
  %2425 = vmatprep.subr.mxu0 0.0
  %2426 = vmatpush1.msra.mxu0 0.0
  %2427 = vmatprep.subr.mxu0 0.0
  %2428 = vmatpush1.msra.mxu0 0.0
  %2429 = vmatprep.subr.mxu0 0.0
  %2430 = vmatpush1.msra.mxu0 0.0
  %2431 = vmatprep.subr.mxu0 0.0
  %2432 = vmatpush1.msra.mxu0 0.0
  %2433 = vmatprep.subr.mxu0 0.0
  %2434 = vmatpush1.msra.mxu0 0.0
  %2435 = vmatprep.subr.mxu0 0.0
  %2436 = vmatpush1.msra.mxu0 0.0
  %2437 = vmatprep.subr.mxu0 0.0
  %2438 = vmatpush1.msra.mxu0 0.0
  %2439 = vmatprep.subr.mxu0 0.0
  %2440 = vmatpush1.msra.mxu0 0.0
  %2441 = vmatprep.subr.mxu0 0.0
  %2442 = vmatpush1.msra.mxu0 0.0
  %2443 = vmatprep.subr.mxu0 0.0
  %2444 = vmatpush1.msra.mxu0 0.0
  %2445 = vmatprep.subr.mxu0 0.0
  %2446 = vmatpush1.msra.mxu0 0.0
  %2447 = vmatprep.subr.mxu0 0.0
  %2448 = vmatpush1.msra.mxu0 0.0
  %2449 = vmatprep.subr.mxu0 0.0
  %2450 = vmatpush1.msra.mxu0 0.0
  %2451 = vmatprep.subr.mxu0 0.0
  %2452 = vmatpush1.msra.mxu0 0.0
  %2453 = vmatprep.subr.mxu0 0.0
  %2454 = vmatpush1.msra.mxu0 0.0
  %2455 = vmatprep.subr.mxu0 0.0
  %2456 = vmatpush1.msra.mxu0 0.0
  %2457 = vmatprep.mubr.f32.mxu0 0.0
  %2458 = vmatmul.mubr.f32.gmra.mrb[0].mxu0 %v2320
  %v2459 = vpop.f32.mrb[0].mxu0
  %v2460 = vadd.f32 0.0, %v2459
  %v2461 = vpop.f32.mrb[0].mxu0
  %v2462 = vadd.f32 0.0, %v2461
  %2463 = vdwg.mxu0
  %2464 = vmatprep.subr.mxu0 %v2310
  %2465 = vmatpush1.msra.mxu0 %v2309
  %2466 = vmatprep.subr.mxu0 0.0
  %2467 = vmatpush1.msra.mxu0 0.0
  %2468 = vmatprep.subr.mxu0 0.0
  %2469 = vmatpush1.msra.mxu0 0.0
  %2470 = vmatprep.subr.mxu0 0.0
  %2471 = vmatpush1.msra.mxu0 0.0
  %2472 = vmatprep.subr.mxu0 0.0
  %2473 = vmatpush1.msra.mxu0 0.0
  %2474 = vmatprep.subr.mxu0 0.0
  %2475 = vmatpush1.msra.mxu0 0.0
  %2476 = vmatprep.subr.mxu0 0.0
  %2477 = vmatpush1.msra.mxu0 0.0
  %2478 = vmatprep.subr.mxu0 0.0
  %2479 = vmatpush1.msra.mxu0 0.0
  %2480 = vmatprep.subr.mxu0 0.0
  %2481 = vmatpush1.msra.mxu0 0.0
  %2482 = vmatprep.subr.mxu0 0.0
  %2483 = vmatpush1.msra.mxu0 0.0
  %2484 = vmatprep.subr.mxu0 0.0
  %2485 = vmatpush1.msra.mxu0 0.0
  %2486 = vmatprep.subr.mxu0 0.0
  %2487 = vmatpush1.msra.mxu0 0.0
  %2488 = vmatprep.subr.mxu0 0.0
  %2489 = vmatpush1.msra.mxu0 0.0
  %2490 = vmatprep.subr.mxu0 0.0
  %2491 = vmatpush1.msra.mxu0 0.0
  %2492 = vmatprep.subr.mxu0 0.0
  %2493 = vmatpush1.msra.mxu0 0.0
  %2494 = vmatprep.subr.mxu0 0.0
  %2495 = vmatpush1.msra.mxu0 0.0
  %2496 = vmatprep.subr.mxu0 0.0
  %2497 = vmatpush1.msra.mxu0 0.0
  %2498 = vmatprep.subr.mxu0 0.0
  %2499 = vmatpush1.msra.mxu0 0.0
  %2500 = vmatprep.subr.mxu0 0.0
  %2501 = vmatpush1.msra.mxu0 0.0
  %2502 = vmatprep.subr.mxu0 0.0
  %2503 = vmatpush1.msra.mxu0 0.0
  %2504 = vmatprep.subr.mxu0 0.0
  %2505 = vmatpush1.msra.mxu0 0.0
  %2506 = vmatprep.subr.mxu0 0.0
  %2507 = vmatpush1.msra.mxu0 0.0
  %2508 = vmatprep.subr.mxu0 0.0
  %2509 = vmatpush1.msra.mxu0 0.0
  %2510 = vmatprep.subr.mxu0 0.0
  %2511 = vmatpush1.msra.mxu0 0.0
  %2512 = vmatprep.subr.mxu0 0.0
  %2513 = vmatpush1.msra.mxu0 0.0
  %2514 = vmatprep.subr.mxu0 0.0
  %2515 = vmatpush1.msra.mxu0 0.0
  %2516 = vmatprep.subr.mxu0 0.0
  %2517 = vmatpush1.msra.mxu0 0.0
  %2518 = vmatprep.subr.mxu0 0.0
  %2519 = vmatpush1.msra.mxu0 0.0
  %2520 = vmatprep.subr.mxu0 0.0
  %2521 = vmatpush1.msra.mxu0 0.0
  %2522 = vmatprep.subr.mxu0 0.0
  %2523 = vmatpush1.msra.mxu0 0.0
  %2524 = vmatprep.subr.mxu0 0.0
  %2525 = vmatpush1.msra.mxu0 0.0
  %2526 = vmatprep.subr.mxu0 0.0
  %2527 = vmatpush1.msra.mxu0 0.0
  %2528 = vmatprep.mubr.f32.mxu0 0.0
  %2529 = vmatmul.mubr.f32.gmra.mrb[0].mxu0 %v2320
  %v2530 = vpop.f32.mrb[0].mxu0
  %v2531 = vadd.f32 0.0, %v2530
  %v2532 = vpop.f32.mrb[0].mxu0
  %v2533 = vadd.f32 0.0, %v2532
  %2534 = vdwg.mxu0
  %2535 = vmatprep.subr.mxu0 0.0
  %2536 = vmatpush1.msra.mxu0 %v2311
  %2537 = vmatprep.subr.mxu0 0.0
  %2538 = vmatpush1.msra.mxu0 0.0
  %2539 = vmatprep.subr.mxu0 0.0
  %2540 = vmatpush1.msra.mxu0 0.0
  %2541 = vmatprep.subr.mxu0 0.0
  %2542 = vmatpush1.msra.mxu0 0.0
  %2543 = vmatprep.subr.mxu0 0.0
  %2544 = vmatpush1.msra.mxu0 0.0
  %2545 = vmatprep.subr.mxu0 0.0
  %2546 = vmatpush1.msra.mxu0 0.0
  %2547 = vmatprep.subr.mxu0 0.0
  %2548 = vmatpush1.msra.mxu0 0.0
  %2549 = vmatprep.subr.mxu0 0.0
  %2550 = vmatpush1.msra.mxu0 0.0
  %2551 = vmatprep.subr.mxu0 0.0
  %2552 = vmatpush1.msra.mxu0 0.0
  %2553 = vmatprep.subr.mxu0 0.0
  %2554 = vmatpush1.msra.mxu0 0.0
  %2555 = vmatprep.subr.mxu0 0.0
  %2556 = vmatpush1.msra.mxu0 0.0
  %2557 = vmatprep.subr.mxu0 0.0
  %2558 = vmatpush1.msra.mxu0 0.0
  %2559 = vmatprep.subr.mxu0 0.0
  %2560 = vmatpush1.msra.mxu0 0.0
  %2561 = vmatprep.subr.mxu0 0.0
  %2562 = vmatpush1.msra.mxu0 0.0
  %2563 = vmatprep.subr.mxu0 0.0
  %2564 = vmatpush1.msra.mxu0 0.0
  %2565 = vmatprep.subr.mxu0 0.0
  %2566 = vmatpush1.msra.mxu0 0.0
  %2567 = vmatprep.subr.mxu0 0.0
  %2568 = vmatpush1.msra.mxu0 0.0
  %2569 = vmatprep.subr.mxu0 0.0
  %2570 = vmatpush1.msra.mxu0 0.0
  %2571 = vmatprep.subr.mxu0 0.0
  %2572 = vmatpush1.msra.mxu0 0.0
  %2573 = vmatprep.subr.mxu0 0.0
  %2574 = vmatpush1.msra.mxu0 0.0
  %2575 = vmatprep.subr.mxu0 0.0
  %2576 = vmatpush1.msra.mxu0 0.0
  %2577 = vmatprep.subr.mxu0 0.0
  %2578 = vmatpush1.msra.mxu0 0.0
  %2579 = vmatprep.subr.mxu0 0.0
  %2580 = vmatpush1.msra.mxu0 0.0
  %2581 = vmatprep.subr.mxu0 0.0
  %2582 = vmatpush1.msra.mxu0 0.0
  %2583 = vmatprep.subr.mxu0 0.0
  %2584 = vmatpush1.msra.mxu0 0.0
  %2585 = vmatprep.subr.mxu0 0.0
  %2586 = vmatpush1.msra.mxu0 0.0
  %2587 = vmatprep.subr.mxu0 0.0
  %2588 = vmatpush1.msra.mxu0 0.0
  %2589 = vmatprep.subr.mxu0 0.0
  %2590 = vmatpush1.msra.mxu0 0.0
  %2591 = vmatprep.subr.mxu0 0.0
  %2592 = vmatpush1.msra.mxu0 0.0
  %2593 = vmatprep.subr.mxu0 0.0
  %2594 = vmatpush1.msra.mxu0 0.0
  %2595 = vmatprep.subr.mxu0 0.0
  %2596 = vmatpush1.msra.mxu0 0.0
  %2597 = vmatprep.subr.mxu0 0.0
  %2598 = vmatpush1.msra.mxu0 0.0
  %2599 = vmatprep.mubr.f32.mxu0 0.0
  %2600 = vmatmul.mubr.f32.gmra.mrb[0].mxu0 %v2320
  %v2601 = vpop.f32.mrb[0].mxu0
  %v2602 = vadd.f32 0.0, %v2601
  %v2603 = vpop.f32.mrb[0].mxu0
  %2604 = vdwg.mxu0
  %v2605 = vadd.f32 %v2280, %v2389
  %v2606 = vadd.f32 %v2281, %v2391
  %v2607 = vadd.f32 %v2282, %v2460
  %v2608 = vadd.f32 %v2283, %v2462
  %v2609 = vadd.f32 %v2284, %v2531
  %v2610 = vadd.f32 %v2285, %v2533
  %v2611 = vadd.f32 %v2286, %v2602
  %v2612 = vld [vmem:[%s1 + $0x40] sm:$0xff]
  %2613 = vrot.lane.b32.xlu0 %v42, 90
  %v2614 = vpop.permute.xlu0 %2613
  %2615 = vrot.lane.b32.xlu0 %v43, 90
  %v2616 = vpop.permute.xlu0 %2615
  %2617 = vrot.lane.b32.xlu0 %v44, 90
  %v2618 = vpop.permute.xlu0 %2617
  %2619 = vrot.lane.b32.xlu0 %v45, 90
  %v2620 = vpop.permute.xlu0 %2619
  %2621 = vrot.lane.b32.xlu0 %v46, 90
  %v2622 = vpop.permute.xlu0 %2621
  %2623 = vrot.lane.b32.xlu0 %v47, 90
  %v2624 = vpop.permute.xlu0 %2623
  %2625 = vrot.lane.b32.xlu0 %v48, 90
  %v2626 = vpop.permute.xlu0 %2625
  %2627 = vrot.lane.b32.xlu0 %v49, 90
  %v2628 = vpop.permute.xlu0 %2627
  %vm2629 = vcmask 736256
  %v2630 = vsel %vm2629, %v2614, %v2616
  %v2631 = vsel %vm2629, %v2616, %v2618
  %v2632 = vsel %vm2629, %v2618, %v2620
  %v2633 = vsel %vm2629, %v2620, %v2622
  %v2634 = vsel %vm2629, %v2622, %v2624
  %v2635 = vsel %vm2629, %v2624, %v2626
  %v2636 = vsel %vm2629, %v2626, %v2628
  %v2645 = vsel %vm89, %v2612, 0
  %2647 = vmatprep.subr.mxu0 %v2631
  %2648 = vmatpush1.msra.mxu0 %v2630
  %2649 = vmatprep.subr.mxu0 0.0
  %2650 = vmatpush1.msra.mxu0 0.0
  %2651 = vmatprep.subr.mxu0 0.0
  %2652 = vmatpush1.msra.mxu0 0.0
  %2653 = vmatprep.subr.mxu0 0.0
  %2654 = vmatpush1.msra.mxu0 0.0
  %2655 = vmatprep.subr.mxu0 0.0
  %2656 = vmatpush1.msra.mxu0 0.0
  %2657 = vmatprep.subr.mxu0 0.0
  %2658 = vmatpush1.msra.mxu0 0.0
  %2659 = vmatprep.subr.mxu0 0.0
  %2660 = vmatpush1.msra.mxu0 0.0
  %2661 = vmatprep.subr.mxu0 0.0
  %2662 = vmatpush1.msra.mxu0 0.0
  %2663 = vmatprep.subr.mxu0 0.0
  %2664 = vmatpush1.msra.mxu0 0.0
  %2665 = vmatprep.subr.mxu0 0.0
  %2666 = vmatpush1.msra.mxu0 0.0
  %2667 = vmatprep.subr.mxu0 0.0
  %2668 = vmatpush1.msra.mxu0 0.0
  %2669 = vmatprep.subr.mxu0 0.0
  %2670 = vmatpush1.msra.mxu0 0.0
  %2671 = vmatprep.subr.mxu0 0.0
  %2672 = vmatpush1.msra.mxu0 0.0
  %2673 = vmatprep.subr.mxu0 0.0
  %2674 = vmatpush1.msra.mxu0 0.0
  %2675 = vmatprep.subr.mxu0 0.0
  %2676 = vmatpush1.msra.mxu0 0.0
  %2677 = vmatprep.subr.mxu0 0.0
  %2678 = vmatpush1.msra.mxu0 0.0
  %2679 = vmatprep.subr.mxu0 0.0
  %2680 = vmatpush1.msra.mxu0 0.0
  %2681 = vmatprep.subr.mxu0 0.0
  %2682 = vmatpush1.msra.mxu0 0.0
  %2683 = vmatprep.subr.mxu0 0.0
  %2684 = vmatpush1.msra.mxu0 0.0
  %2685 = vmatprep.subr.mxu0 0.0
  %2686 = vmatpush1.msra.mxu0 0.0
  %2687 = vmatprep.subr.mxu0 0.0
  %2688 = vmatpush1.msra.mxu0 0.0
  %2689 = vmatprep.subr.mxu0 0.0
  %2690 = vmatpush1.msra.mxu0 0.0
  %2691 = vmatprep.subr.mxu0 0.0
  %2692 = vmatpush1.msra.mxu0 0.0
  %2693 = vmatprep.subr.mxu0 0.0
  %2694 = vmatpush1.msra.mxu0 0.0
  %2695 = vmatprep.subr.mxu0 0.0
  %2696 = vmatpush1.msra.mxu0 0.0
  %2697 = vmatprep.subr.mxu0 0.0
  %2698 = vmatpush1.msra.mxu0 0.0
  %2699 = vmatprep.subr.mxu0 0.0
  %2700 = vmatpush1.msra.mxu0 0.0
  %2701 = vmatprep.subr.mxu0 0.0
  %2702 = vmatpush1.msra.mxu0 0.0
  %2703 = vmatprep.subr.mxu0 0.0
  %2704 = vmatpush1.msra.mxu0 0.0
  %2705 = vmatprep.subr.mxu0 0.0
  %2706 = vmatpush1.msra.mxu0 0.0
  %2707 = vmatprep.subr.mxu0 0.0
  %2708 = vmatpush1.msra.mxu0 0.0
  %2709 = vmatprep.subr.mxu0 0.0
  %2710 = vmatpush1.msra.mxu0 0.0
  %2711 = vmatprep.mubr.f32.mxu0 0.0
  %2712 = vmatmul.mubr.f32.gmra.mrb[0].mxu0 %v2645
  %v2713 = vpop.f32.mrb[0].mxu0
  %v2714 = vadd.f32 0.0, %v2713
  %v2715 = vpop.f32.mrb[0].mxu0
  %v2716 = vadd.f32 0.0, %v2715
  %2717 = vdwg.mxu0
  %2718 = vmatprep.subr.mxu0 %v2633
  %2719 = vmatpush1.msra.mxu0 %v2632
  %2720 = vmatprep.subr.mxu0 0.0
  %2721 = vmatpush1.msra.mxu0 0.0
  %2722 = vmatprep.subr.mxu0 0.0
  %2723 = vmatpush1.msra.mxu0 0.0
  %2724 = vmatprep.subr.mxu0 0.0
  %2725 = vmatpush1.msra.mxu0 0.0
  %2726 = vmatprep.subr.mxu0 0.0
  %2727 = vmatpush1.msra.mxu0 0.0
  %2728 = vmatprep.subr.mxu0 0.0
  %2729 = vmatpush1.msra.mxu0 0.0
  %2730 = vmatprep.subr.mxu0 0.0
  %2731 = vmatpush1.msra.mxu0 0.0
  %2732 = vmatprep.subr.mxu0 0.0
  %2733 = vmatpush1.msra.mxu0 0.0
  %2734 = vmatprep.subr.mxu0 0.0
  %2735 = vmatpush1.msra.mxu0 0.0
  %2736 = vmatprep.subr.mxu0 0.0
  %2737 = vmatpush1.msra.mxu0 0.0
  %2738 = vmatprep.subr.mxu0 0.0
  %2739 = vmatpush1.msra.mxu0 0.0
  %2740 = vmatprep.subr.mxu0 0.0
  %2741 = vmatpush1.msra.mxu0 0.0
  %2742 = vmatprep.subr.mxu0 0.0
  %2743 = vmatpush1.msra.mxu0 0.0
  %2744 = vmatprep.subr.mxu0 0.0
  %2745 = vmatpush1.msra.mxu0 0.0
  %2746 = vmatprep.subr.mxu0 0.0
  %2747 = vmatpush1.msra.mxu0 0.0
  %2748 = vmatprep.subr.mxu0 0.0
  %2749 = vmatpush1.msra.mxu0 0.0
  %2750 = vmatprep.subr.mxu0 0.0
  %2751 = vmatpush1.msra.mxu0 0.0
  %2752 = vmatprep.subr.mxu0 0.0
  %2753 = vmatpush1.msra.mxu0 0.0
  %2754 = vmatprep.subr.mxu0 0.0
  %2755 = vmatpush1.msra.mxu0 0.0
  %2756 = vmatprep.subr.mxu0 0.0
  %2757 = vmatpush1.msra.mxu0 0.0
  %2758 = vmatprep.subr.mxu0 0.0
  %2759 = vmatpush1.msra.mxu0 0.0
  %2760 = vmatprep.subr.mxu0 0.0
  %2761 = vmatpush1.msra.mxu0 0.0
  %2762 = vmatprep.subr.mxu0 0.0
  %2763 = vmatpush1.msra.mxu0 0.0
  %2764 = vmatprep.subr.mxu0 0.0
  %2765 = vmatpush1.msra.mxu0 0.0
  %2766 = vmatprep.subr.mxu0 0.0
  %2767 = vmatpush1.msra.mxu0 0.0
  %2768 = vmatprep.subr.mxu0 0.0
  %2769 = vmatpush1.msra.mxu0 0.0
  %2770 = vmatprep.subr.mxu0 0.0
  %2771 = vmatpush1.msra.mxu0 0.0
  %2772 = vmatprep.subr.mxu0 0.0
  %2773 = vmatpush1.msra.mxu0 0.0
  %2774 = vmatprep.subr.mxu0 0.0
  %2775 = vmatpush1.msra.mxu0 0.0
  %2776 = vmatprep.subr.mxu0 0.0
  %2777 = vmatpush1.msra.mxu0 0.0
  %2778 = vmatprep.subr.mxu0 0.0
  %2779 = vmatpush1.msra.mxu0 0.0
  %2780 = vmatprep.subr.mxu0 0.0
  %2781 = vmatpush1.msra.mxu0 0.0
  %2782 = vmatprep.mubr.f32.mxu0 0.0
  %2783 = vmatmul.mubr.f32.gmra.mrb[0].mxu0 %v2645
  %v2784 = vpop.f32.mrb[0].mxu0
  %v2785 = vadd.f32 0.0, %v2784
  %v2786 = vpop.f32.mrb[0].mxu0
  %v2787 = vadd.f32 0.0, %v2786
  %2788 = vdwg.mxu0
  %2789 = vmatprep.subr.mxu0 %v2635
  %2790 = vmatpush1.msra.mxu0 %v2634
  %2791 = vmatprep.subr.mxu0 0.0
  %2792 = vmatpush1.msra.mxu0 0.0
  %2793 = vmatprep.subr.mxu0 0.0
  %2794 = vmatpush1.msra.mxu0 0.0
  %2795 = vmatprep.subr.mxu0 0.0
  %2796 = vmatpush1.msra.mxu0 0.0
  %2797 = vmatprep.subr.mxu0 0.0
  %2798 = vmatpush1.msra.mxu0 0.0
  %2799 = vmatprep.subr.mxu0 0.0
  %2800 = vmatpush1.msra.mxu0 0.0
  %2801 = vmatprep.subr.mxu0 0.0
  %2802 = vmatpush1.msra.mxu0 0.0
  %2803 = vmatprep.subr.mxu0 0.0
  %2804 = vmatpush1.msra.mxu0 0.0
  %2805 = vmatprep.subr.mxu0 0.0
  %2806 = vmatpush1.msra.mxu0 0.0
  %2807 = vmatprep.subr.mxu0 0.0
  %2808 = vmatpush1.msra.mxu0 0.0
  %2809 = vmatprep.subr.mxu0 0.0
  %2810 = vmatpush1.msra.mxu0 0.0
  %2811 = vmatprep.subr.mxu0 0.0
  %2812 = vmatpush1.msra.mxu0 0.0
  %2813 = vmatprep.subr.mxu0 0.0
  %2814 = vmatpush1.msra.mxu0 0.0
  %2815 = vmatprep.subr.mxu0 0.0
  %2816 = vmatpush1.msra.mxu0 0.0
  %2817 = vmatprep.subr.mxu0 0.0
  %2818 = vmatpush1.msra.mxu0 0.0
  %2819 = vmatprep.subr.mxu0 0.0
  %2820 = vmatpush1.msra.mxu0 0.0
  %2821 = vmatprep.subr.mxu0 0.0
  %2822 = vmatpush1.msra.mxu0 0.0
  %2823 = vmatprep.subr.mxu0 0.0
  %2824 = vmatpush1.msra.mxu0 0.0
  %2825 = vmatprep.subr.mxu0 0.0
  %2826 = vmatpush1.msra.mxu0 0.0
  %2827 = vmatprep.subr.mxu0 0.0
  %2828 = vmatpush1.msra.mxu0 0.0
  %2829 = vmatprep.subr.mxu0 0.0
  %2830 = vmatpush1.msra.mxu0 0.0
  %2831 = vmatprep.subr.mxu0 0.0
  %2832 = vmatpush1.msra.mxu0 0.0
  %2833 = vmatprep.subr.mxu0 0.0
  %2834 = vmatpush1.msra.mxu0 0.0
  %2835 = vmatprep.subr.mxu0 0.0
  %2836 = vmatpush1.msra.mxu0 0.0
  %2837 = vmatprep.subr.mxu0 0.0
  %2838 = vmatpush1.msra.mxu0 0.0
  %2839 = vmatprep.subr.mxu0 0.0
  %2840 = vmatpush1.msra.mxu0 0.0
  %2841 = vmatprep.subr.mxu0 0.0
  %2842 = vmatpush1.msra.mxu0 0.0
  %2843 = vmatprep.subr.mxu0 0.0
  %2844 = vmatpush1.msra.mxu0 0.0
  %2845 = vmatprep.subr.mxu0 0.0
  %2846 = vmatpush1.msra.mxu0 0.0
  %2847 = vmatprep.subr.mxu0 0.0
  %2848 = vmatpush1.msra.mxu0 0.0
  %2849 = vmatprep.subr.mxu0 0.0
  %2850 = vmatpush1.msra.mxu0 0.0
  %2851 = vmatprep.subr.mxu0 0.0
  %2852 = vmatpush1.msra.mxu0 0.0
  %2853 = vmatprep.mubr.f32.mxu0 0.0
  %2854 = vmatmul.mubr.f32.gmra.mrb[0].mxu0 %v2645
  %v2855 = vpop.f32.mrb[0].mxu0
  %v2856 = vadd.f32 0.0, %v2855
  %v2857 = vpop.f32.mrb[0].mxu0
  %v2858 = vadd.f32 0.0, %v2857
  %2859 = vdwg.mxu0
  %2860 = vmatprep.subr.mxu0 0.0
  %2861 = vmatpush1.msra.mxu0 %v2636
  %2862 = vmatprep.subr.mxu0 0.0
  %2863 = vmatpush1.msra.mxu0 0.0
  %2864 = vmatprep.subr.mxu0 0.0
  %2865 = vmatpush1.msra.mxu0 0.0
  %2866 = vmatprep.subr.mxu0 0.0
  %2867 = vmatpush1.msra.mxu0 0.0
  %2868 = vmatprep.subr.mxu0 0.0
  %2869 = vmatpush1.msra.mxu0 0.0
  %2870 = vmatprep.subr.mxu0 0.0
  %2871 = vmatpush1.msra.mxu0 0.0
  %2872 = vmatprep.subr.mxu0 0.0
  %2873 = vmatpush1.msra.mxu0 0.0
  %2874 = vmatprep.subr.mxu0 0.0
  %2875 = vmatpush1.msra.mxu0 0.0
  %2876 = vmatprep.subr.mxu0 0.0
  %2877 = vmatpush1.msra.mxu0 0.0
  %2878 = vmatprep.subr.mxu0 0.0
  %2879 = vmatpush1.msra.mxu0 0.0
  %2880 = vmatprep.subr.mxu0 0.0
  %2881 = vmatpush1.msra.mxu0 0.0
  %2882 = vmatprep.subr.mxu0 0.0
  %2883 = vmatpush1.msra.mxu0 0.0
  %2884 = vmatprep.subr.mxu0 0.0
  %2885 = vmatpush1.msra.mxu0 0.0
  %2886 = vmatprep.subr.mxu0 0.0
  %2887 = vmatpush1.msra.mxu0 0.0
  %2888 = vmatprep.subr.mxu0 0.0
  %2889 = vmatpush1.msra.mxu0 0.0
  %2890 = vmatprep.subr.mxu0 0.0
  %2891 = vmatpush1.msra.mxu0 0.0
  %2892 = vmatprep.subr.mxu0 0.0
  %2893 = vmatpush1.msra.mxu0 0.0
  %2894 = vmatprep.subr.mxu0 0.0
  %2895 = vmatpush1.msra.mxu0 0.0
  %2896 = vmatprep.subr.mxu0 0.0
  %2897 = vmatpush1.msra.mxu0 0.0
  %2898 = vmatprep.subr.mxu0 0.0
  %2899 = vmatpush1.msra.mxu0 0.0
  %2900 = vmatprep.subr.mxu0 0.0
  %2901 = vmatpush1.msra.mxu0 0.0
  %2902 = vmatprep.subr.mxu0 0.0
  %2903 = vmatpush1.msra.mxu0 0.0
  %2904 = vmatprep.subr.mxu0 0.0
  %2905 = vmatpush1.msra.mxu0 0.0
  %2906 = vmatprep.subr.mxu0 0.0
  %2907 = vmatpush1.msra.mxu0 0.0
  %2908 = vmatprep.subr.mxu0 0.0
  %2909 = vmatpush1.msra.mxu0 0.0
  %2910 = vmatprep.subr.mxu0 0.0
  %2911 = vmatpush1.msra.mxu0 0.0
  %2912 = vmatprep.subr.mxu0 0.0
  %2913 = vmatpush1.msra.mxu0 0.0
  %2914 = vmatprep.subr.mxu0 0.0
  %2915 = vmatpush1.msra.mxu0 0.0
  %2916 = vmatprep.subr.mxu0 0.0
  %2917 = vmatpush1.msra.mxu0 0.0
  %2918 = vmatprep.subr.mxu0 0.0
  %2919 = vmatpush1.msra.mxu0 0.0
  %2920 = vmatprep.subr.mxu0 0.0
  %2921 = vmatpush1.msra.mxu0 0.0
  %2922 = vmatprep.subr.mxu0 0.0
  %2923 = vmatpush1.msra.mxu0 0.0
  %2924 = vmatprep.mubr.f32.mxu0 0.0
  %2925 = vmatmul.mubr.f32.gmra.mrb[0].mxu0 %v2645
  %v2926 = vpop.f32.mrb[0].mxu0
  %v2927 = vadd.f32 0.0, %v2926
  %v2928 = vpop.f32.mrb[0].mxu0
  %2929 = vdwg.mxu0
  %v2930 = vadd.f32 %v2605, %v2714
  %v2931 = vadd.f32 %v2606, %v2716
  %v2932 = vadd.f32 %v2607, %v2785
  %v2933 = vadd.f32 %v2608, %v2787
  %v2934 = vadd.f32 %v2609, %v2856
  %v2935 = vadd.f32 %v2610, %v2858
  %v2936 = vadd.f32 %v2611, %v2927
  %v2938 = vlaneseq
  %v2939 = vshrl.u32 %v2938, 7
  %v2940 = vsub.s32 0, %v2939
  %v2941 = vrot.slane %v32, %v2940
  %v2942 = vlaneseq
  %v2943 = vshrl.u32 %v2942, 7
  %v2944 = vsub.s32 1, %v2943
  %v2945 = vrot.slane %v32, %v2944
  %v2946 = vlaneseq
  %v2947 = vshrl.u32 %v2946, 7
  %v2948 = vsub.s32 2, %v2947
  %v2949 = vrot.slane %v32, %v2948
  %v2950 = vlaneseq
  %v2951 = vshrl.u32 %v2950, 7
  %v2952 = vsub.s32 3, %v2951
  %v2953 = vrot.slane %v32, %v2952
  %v2954 = vlaneseq
  %v2955 = vshrl.u32 %v2954, 7
  %v2956 = vsub.s32 4, %v2955
  %v2957 = vrot.slane %v32, %v2956
  %v2958 = vlaneseq
  %v2959 = vshrl.u32 %v2958, 7
  %v2960 = vsub.s32 5, %v2959
  %v2961 = vrot.slane %v32, %v2960
  %v2962 = vlaneseq
  %v2963 = vshrl.u32 %v2962, 7
  %v2964 = vsub.s32 6, %v2963
  %v2965 = vrot.slane %v32, %v2964
  %v2973 = vmul.f32 %v2930, %v2941
  %v2974 = vmul.f32 %v2931, %v2945
  %v2975 = vmul.f32 %v2932, %v2949
  %v2976 = vmul.f32 %v2933, %v2953
  %v2977 = vmul.f32 %v2934, %v2957
  %v2978 = vmul.f32 %v2935, %v2961
  %v2979 = vmul.f32 %v2936, %v2965
  %v2980 = vadd.f32 %v2973, %v2974
  %v2981 = vadd.f32 %v2980, %v2975
  %v2982 = vadd.f32 %v2981, %v2976
  %v2983 = vadd.f32 %v2982, %v2977
  %v2984 = vadd.f32 %v2983, %v2978
  %v2985 = vadd.f32 %v2984, %v2979
  %2986 = vadd.xlane.f32.xlu0 %v2985
  %v2987 = vpop.xlane.xlu0 %2986
  %v2988 = vmul.f32 %v2973, %v2930
  %v2989 = vmul.f32 %v2974, %v2931
  %v2990 = vmul.f32 %v2975, %v2932
  %v2991 = vmul.f32 %v2976, %v2933
  %v2992 = vmul.f32 %v2977, %v2934
  %v2993 = vmul.f32 %v2978, %v2935
  %v2994 = vmul.f32 %v2979, %v2936
  %v2995 = vadd.f32 %v2988, %v2989
  %v2996 = vadd.f32 %v2995, %v2990
  %v2997 = vadd.f32 %v2996, %v2991
  %v2998 = vadd.f32 %v2997, %v2992
  %v2999 = vadd.f32 %v2998, %v2993
  %v3000 = vadd.f32 %v2999, %v2994
  %3001 = vadd.xlane.f32.xlu0 %v3000
  %v3002 = vpop.xlane.xlu0 %3001
  %v3003 = vmul.f32 %v2987, 0.001953125
  %v3004 = vmul.f32 %v3002, 0.001953125
  %v3005 = vmul.f32 %v3003, %v3003
  %v3006 = vsub.f32 %v3004, %v3005
  %v3007 = vld [vmem:[%s2] sm:$0xff]
  %v3008 = vadd.f32 %v3006, 1e-05
  %v3009 = vrsqrt.pop %v3008
  %v3010 = vmul.f32 %v3007, %v3009
  %v3011 = vld [vmem:[%s3] sm:$0xff]
  %v3012 = vmul.f32 %v3003, %v3010
  %v3013 = vsub.f32 %v3011, %v3012
  %3015 = vset.pattern.permute.xlu0 0
  %3016 = vperm.xlu0 %3015, %v3010
  %v3017 = vpop.permute.xlu0 %3016
  %v3019 = vmul.f32 %v2930, %v3017
  %v3020 = vmul.f32 %v2931, %v3017
  %v3021 = vmul.f32 %v2932, %v3017
  %v3022 = vmul.f32 %v2933, %v3017
  %v3023 = vmul.f32 %v2934, %v3017
  %v3024 = vmul.f32 %v2935, %v3017
  %v3025 = vmul.f32 %v2936, %v3017
  %3027 = vset.pattern.permute.xlu0 0
  %3028 = vperm.xlu0 %3027, %v3013
  %v3029 = vpop.permute.xlu0 %3028
  %v3031 = vadd.f32 %v3019, %v3029
  %v3032 = vadd.f32 %v3020, %v3029
  %v3033 = vadd.f32 %v3021, %v3029
  %v3034 = vadd.f32 %v3022, %v3029
  %v3035 = vadd.f32 %v3023, %v3029
  %v3036 = vadd.f32 %v3024, %v3029
  %v3037 = vadd.f32 %v3025, %v3029
  %v3038 = vmax.f32 %v3031, 0.0
  %v3039 = vmax.f32 %v3032, 0.0
  %v3040 = vmax.f32 %v3033, 0.0
  %v3041 = vmax.f32 %v3034, 0.0
  %v3042 = vmax.f32 %v3035, 0.0
  %v3043 = vmax.f32 %v3036, 0.0
  %v3044 = vmax.f32 %v3037, 0.0
  %v3045 = vmul.f32 %v3038, %v2941
  %v3046 = vmul.f32 %v3039, %v2945
  %v3047 = vmul.f32 %v3040, %v2949
  %v3048 = vmul.f32 %v3041, %v2953
  %v3049 = vmul.f32 %v3042, %v2957
  %v3050 = vmul.f32 %v3043, %v2961
  %v3051 = vmul.f32 %v3044, %v2965
  %3052 = vst [vmem:[#allocation2] sm:$0xff] %v3045
  %3053 = vst [vmem:[#allocation2 + $0x8] sm:$0xff] %v3046
  %3054 = vst [vmem:[#allocation2 + $0x10] sm:$0xff] %v3047
  %3055 = vst [vmem:[#allocation2 + $0x18] sm:$0xff] %v3048
  %3056 = vst [vmem:[#allocation2 + $0x20] sm:$0xff] %v3049
  %3057 = vst [vmem:[#allocation2 + $0x28] sm:$0xff] %v3050
  %3058 = vst [vmem:[#allocation2 + $0x30] sm:$0xff] %v3051
  %v3059 = vld [vmem:[%s8] sm:$0x3f]
  %v3060 = vld [vmem:[%s4] sm:$0xff]
  %v3061 = vld [vmem:[#allocation2] sm:$0xff]
  %v3062 = vld [vmem:[#allocation2 + $0x8] sm:$0xff]
  %v3063 = vld [vmem:[#allocation2 + $0x10] sm:$0xff]
  %v3064 = vld [vmem:[#allocation2 + $0x18] sm:$0xff]
  %v3065 = vld [vmem:[#allocation2 + $0x20] sm:$0xff]
  %v3066 = vld [vmem:[#allocation2 + $0x28] sm:$0xff]
  %v3067 = vld [vmem:[%s4 + $0x8] sm:$0xff]
  %v3068 = vld [vmem:[#allocation2] sm:$0xff]
  %v3069 = vld [vmem:[#allocation2 + $0x8] sm:$0xff]
  %v3070 = vld [vmem:[#allocation2 + $0x10] sm:$0xff]
  %v3071 = vld [vmem:[#allocation2 + $0x18] sm:$0xff]
  %v3072 = vld [vmem:[#allocation2 + $0x20] sm:$0xff]
  %v3073 = vld [vmem:[#allocation2 + $0x28] sm:$0xff]
  %v3074 = vld [vmem:[#allocation2 + $0x30] sm:$0xff]
  %3082 = vrot.lane.b32.xlu0 %v3068, 127
  %v3083 = vpop.permute.xlu0 %3082
  %3084 = vrot.lane.b32.xlu0 %v3069, 127
  %v3085 = vpop.permute.xlu0 %3084
  %3086 = vrot.lane.b32.xlu0 %v3070, 127
  %v3087 = vpop.permute.xlu0 %3086
  %3088 = vrot.lane.b32.xlu0 %v3071, 127
  %v3089 = vpop.permute.xlu0 %3088
  %3090 = vrot.lane.b32.xlu0 %v3072, 127
  %v3091 = vpop.permute.xlu0 %3090
  %3092 = vrot.lane.b32.xlu0 %v3073, 127
  %v3093 = vpop.permute.xlu0 %3092
  %3094 = vrot.lane.b32.xlu0 %v3074, 127
  %v3095 = vpop.permute.xlu0 %3094
  %v3096 = vsel %vm74, %v3083, %v3085
  %v3097 = vsel %vm74, %v3085, %v3087
  %v3098 = vsel %vm74, %v3087, %v3089
  %v3099 = vsel %vm74, %v3089, %v3091
  %v3100 = vsel %vm74, %v3091, %v3093
  %v3101 = vsel %vm74, %v3093, %v3095
  %v3109 = vsel %vm89, %v3067, 0
  %3111 = vmatprep.subr.mxu0 %v3097
  %3112 = vmatpush1.msra.mxu0 %v3096
  %3113 = vmatprep.subr.mxu0 0.0
  %3114 = vmatpush1.msra.mxu0 0.0
  %3115 = vmatprep.subr.mxu0 0.0
  %3116 = vmatpush1.msra.mxu0 0.0
  %3117 = vmatprep.subr.mxu0 0.0
  %3118 = vmatpush1.msra.mxu0 0.0
  %3119 = vmatprep.subr.mxu0 0.0
  %3120 = vmatpush1.msra.mxu0 0.0
  %3121 = vmatprep.subr.mxu0 0.0
  %3122 = vmatpush1.msra.mxu0 0.0
  %3123 = vmatprep.subr.mxu0 0.0
  %3124 = vmatpush1.msra.mxu0 0.0
  %3125 = vmatprep.subr.mxu0 0.0
  %3126 = vmatpush1.msra.mxu0 0.0
  %3127 = vmatprep.subr.mxu0 0.0
  %3128 = vmatpush1.msra.mxu0 0.0
  %3129 = vmatprep.subr.mxu0 0.0
  %3130 = vmatpush1.msra.mxu0 0.0
  %3131 = vmatprep.subr.mxu0 0.0
  %3132 = vmatpush1.msra.mxu0 0.0
  %3133 = vmatprep.subr.mxu0 0.0
  %3134 = vmatpush1.msra.mxu0 0.0
  %3135 = vmatprep.subr.mxu0 0.0
  %3136 = vmatpush1.msra.mxu0 0.0
  %3137 = vmatprep.subr.mxu0 0.0
  %3138 = vmatpush1.msra.mxu0 0.0
  %3139 = vmatprep.subr.mxu0 0.0
  %3140 = vmatpush1.msra.mxu0 0.0
  %3141 = vmatprep.subr.mxu0 0.0
  %3142 = vmatpush1.msra.mxu0 0.0
  %3143 = vmatprep.subr.mxu0 0.0
  %3144 = vmatpush1.msra.mxu0 0.0
  %3145 = vmatprep.subr.mxu0 0.0
  %3146 = vmatpush1.msra.mxu0 0.0
  %3147 = vmatprep.subr.mxu0 0.0
  %3148 = vmatpush1.msra.mxu0 0.0
  %3149 = vmatprep.subr.mxu0 0.0
  %3150 = vmatpush1.msra.mxu0 0.0
  %3151 = vmatprep.subr.mxu0 0.0
  %3152 = vmatpush1.msra.mxu0 0.0
  %3153 = vmatprep.subr.mxu0 0.0
  %3154 = vmatpush1.msra.mxu0 0.0
  %3155 = vmatprep.subr.mxu0 0.0
  %3156 = vmatpush1.msra.mxu0 0.0
  %3157 = vmatprep.subr.mxu0 0.0
  %3158 = vmatpush1.msra.mxu0 0.0
  %3159 = vmatprep.subr.mxu0 0.0
  %3160 = vmatpush1.msra.mxu0 0.0
  %3161 = vmatprep.subr.mxu0 0.0
  %3162 = vmatpush1.msra.mxu0 0.0
  %3163 = vmatprep.subr.mxu0 0.0
  %3164 = vmatpush1.msra.mxu0 0.0
  %3165 = vmatprep.subr.mxu0 0.0
  %3166 = vmatpush1.msra.mxu0 0.0
  %3167 = vmatprep.subr.mxu0 0.0
  %3168 = vmatpush1.msra.mxu0 0.0
  %3169 = vmatprep.subr.mxu0 0.0
  %3170 = vmatpush1.msra.mxu0 0.0
  %3171 = vmatprep.subr.mxu0 0.0
  %3172 = vmatpush1.msra.mxu0 0.0
  %3173 = vmatprep.subr.mxu0 0.0
  %3174 = vmatpush1.msra.mxu0 0.0
  %3175 = vmatprep.mubr.f32.mxu0 0.0
  %3176 = vmatmul.mubr.f32.gmra.mrb[0].mxu0 %v3109
  %v3177 = vpop.f32.mrb[0].mxu0
  %v3178 = vadd.f32 0.0, %v3177
  %v3179 = vpop.f32.mrb[0].mxu0
  %v3180 = vadd.f32 0.0, %v3179
  %3181 = vdwg.mxu0
  %3182 = vmatprep.subr.mxu0 %v3099
  %3183 = vmatpush1.msra.mxu0 %v3098
  %3184 = vmatprep.subr.mxu0 0.0
  %3185 = vmatpush1.msra.mxu0 0.0
  %3186 = vmatprep.subr.mxu0 0.0
  %3187 = vmatpush1.msra.mxu0 0.0
  %3188 = vmatprep.subr.mxu0 0.0
  %3189 = vmatpush1.msra.mxu0 0.0
  %3190 = vmatprep.subr.mxu0 0.0
  %3191 = vmatpush1.msra.mxu0 0.0
  %3192 = vmatprep.subr.mxu0 0.0
  %3193 = vmatpush1.msra.mxu0 0.0
  %3194 = vmatprep.subr.mxu0 0.0
  %3195 = vmatpush1.msra.mxu0 0.0
  %3196 = vmatprep.subr.mxu0 0.0
  %3197 = vmatpush1.msra.mxu0 0.0
  %3198 = vmatprep.subr.mxu0 0.0
  %3199 = vmatpush1.msra.mxu0 0.0
  %3200 = vmatprep.subr.mxu0 0.0
  %3201 = vmatpush1.msra.mxu0 0.0
  %3202 = vmatprep.subr.mxu0 0.0
  %3203 = vmatpush1.msra.mxu0 0.0
  %3204 = vmatprep.subr.mxu0 0.0
  %3205 = vmatpush1.msra.mxu0 0.0
  %3206 = vmatprep.subr.mxu0 0.0
  %3207 = vmatpush1.msra.mxu0 0.0
  %3208 = vmatprep.subr.mxu0 0.0
  %3209 = vmatpush1.msra.mxu0 0.0
  %3210 = vmatprep.subr.mxu0 0.0
  %3211 = vmatpush1.msra.mxu0 0.0
  %3212 = vmatprep.subr.mxu0 0.0
  %3213 = vmatpush1.msra.mxu0 0.0
  %3214 = vmatprep.subr.mxu0 0.0
  %3215 = vmatpush1.msra.mxu0 0.0
  %3216 = vmatprep.subr.mxu0 0.0
  %3217 = vmatpush1.msra.mxu0 0.0
  %3218 = vmatprep.subr.mxu0 0.0
  %3219 = vmatpush1.msra.mxu0 0.0
  %3220 = vmatprep.subr.mxu0 0.0
  %3221 = vmatpush1.msra.mxu0 0.0
  %3222 = vmatprep.subr.mxu0 0.0
  %3223 = vmatpush1.msra.mxu0 0.0
  %3224 = vmatprep.subr.mxu0 0.0
  %3225 = vmatpush1.msra.mxu0 0.0
  %3226 = vmatprep.subr.mxu0 0.0
  %3227 = vmatpush1.msra.mxu0 0.0
  %3228 = vmatprep.subr.mxu0 0.0
  %3229 = vmatpush1.msra.mxu0 0.0
  %3230 = vmatprep.subr.mxu0 0.0
  %3231 = vmatpush1.msra.mxu0 0.0
  %3232 = vmatprep.subr.mxu0 0.0
  %3233 = vmatpush1.msra.mxu0 0.0
  %3234 = vmatprep.subr.mxu0 0.0
  %3235 = vmatpush1.msra.mxu0 0.0
  %3236 = vmatprep.subr.mxu0 0.0
  %3237 = vmatpush1.msra.mxu0 0.0
  %3238 = vmatprep.subr.mxu0 0.0
  %3239 = vmatpush1.msra.mxu0 0.0
  %3240 = vmatprep.subr.mxu0 0.0
  %3241 = vmatpush1.msra.mxu0 0.0
  %3242 = vmatprep.subr.mxu0 0.0
  %3243 = vmatpush1.msra.mxu0 0.0
  %3244 = vmatprep.subr.mxu0 0.0
  %3245 = vmatpush1.msra.mxu0 0.0
  %3246 = vmatprep.mubr.f32.mxu0 0.0
  %3247 = vmatmul.mubr.f32.gmra.mrb[0].mxu0 %v3109
  %v3248 = vpop.f32.mrb[0].mxu0
  %v3249 = vadd.f32 0.0, %v3248
  %v3250 = vpop.f32.mrb[0].mxu0
  %v3251 = vadd.f32 0.0, %v3250
  %3252 = vdwg.mxu0
  %3253 = vmatprep.subr.mxu0 %v3101
  %3254 = vmatpush1.msra.mxu0 %v3100
  %3255 = vmatprep.subr.mxu0 0.0
  %3256 = vmatpush1.msra.mxu0 0.0
  %3257 = vmatprep.subr.mxu0 0.0
  %3258 = vmatpush1.msra.mxu0 0.0
  %3259 = vmatprep.subr.mxu0 0.0
  %3260 = vmatpush1.msra.mxu0 0.0
  %3261 = vmatprep.subr.mxu0 0.0
  %3262 = vmatpush1.msra.mxu0 0.0
  %3263 = vmatprep.subr.mxu0 0.0
  %3264 = vmatpush1.msra.mxu0 0.0
  %3265 = vmatprep.subr.mxu0 0.0
  %3266 = vmatpush1.msra.mxu0 0.0
  %3267 = vmatprep.subr.mxu0 0.0
  %3268 = vmatpush1.msra.mxu0 0.0
  %3269 = vmatprep.subr.mxu0 0.0
  %3270 = vmatpush1.msra.mxu0 0.0
  %3271 = vmatprep.subr.mxu0 0.0
  %3272 = vmatpush1.msra.mxu0 0.0
  %3273 = vmatprep.subr.mxu0 0.0
  %3274 = vmatpush1.msra.mxu0 0.0
  %3275 = vmatprep.subr.mxu0 0.0
  %3276 = vmatpush1.msra.mxu0 0.0
  %3277 = vmatprep.subr.mxu0 0.0
  %3278 = vmatpush1.msra.mxu0 0.0
  %3279 = vmatprep.subr.mxu0 0.0
  %3280 = vmatpush1.msra.mxu0 0.0
  %3281 = vmatprep.subr.mxu0 0.0
  %3282 = vmatpush1.msra.mxu0 0.0
  %3283 = vmatprep.subr.mxu0 0.0
  %3284 = vmatpush1.msra.mxu0 0.0
  %3285 = vmatprep.subr.mxu0 0.0
  %3286 = vmatpush1.msra.mxu0 0.0
  %3287 = vmatprep.subr.mxu0 0.0
  %3288 = vmatpush1.msra.mxu0 0.0
  %3289 = vmatprep.subr.mxu0 0.0
  %3290 = vmatpush1.msra.mxu0 0.0
  %3291 = vmatprep.subr.mxu0 0.0
  %3292 = vmatpush1.msra.mxu0 0.0
  %3293 = vmatprep.subr.mxu0 0.0
  %3294 = vmatpush1.msra.mxu0 0.0
  %3295 = vmatprep.subr.mxu0 0.0
  %3296 = vmatpush1.msra.mxu0 0.0
  %3297 = vmatprep.subr.mxu0 0.0
  %3298 = vmatpush1.msra.mxu0 0.0
  %3299 = vmatprep.subr.mxu0 0.0
  %3300 = vmatpush1.msra.mxu0 0.0
  %3301 = vmatprep.subr.mxu0 0.0
  %3302 = vmatpush1.msra.mxu0 0.0
  %3303 = vmatprep.subr.mxu0 0.0
  %3304 = vmatpush1.msra.mxu0 0.0
  %3305 = vmatprep.subr.mxu0 0.0
  %3306 = vmatpush1.msra.mxu0 0.0
  %3307 = vmatprep.subr.mxu0 0.0
  %3308 = vmatpush1.msra.mxu0 0.0
  %3309 = vmatprep.subr.mxu0 0.0
  %3310 = vmatpush1.msra.mxu0 0.0
  %3311 = vmatprep.subr.mxu0 0.0
  %3312 = vmatpush1.msra.mxu0 0.0
  %3313 = vmatprep.subr.mxu0 0.0
  %3314 = vmatpush1.msra.mxu0 0.0
  %3315 = vmatprep.subr.mxu0 0.0
  %3316 = vmatpush1.msra.mxu0 0.0
  %3317 = vmatprep.mubr.f32.mxu0 0.0
  %3318 = vmatmul.mubr.f32.gmra.mrb[0].mxu0 %v3109
  %v3319 = vpop.f32.mrb[0].mxu0
  %v3320 = vadd.f32 0.0, %v3319
  %v3321 = vpop.f32.mrb[0].mxu0
  %v3322 = vadd.f32 0.0, %v3321
  %3323 = vdwg.mxu0
  %v3325 = vsel %vm89, %v3060, 0
  %3327 = vmatprep.subr.mxu0 %v3062
  %3328 = vmatpush1.msra.mxu0 %v3061
  %3329 = vmatprep.subr.mxu0 0.0
  %3330 = vmatpush1.msra.mxu0 0.0
  %3331 = vmatprep.subr.mxu0 0.0
  %3332 = vmatpush1.msra.mxu0 0.0
  %3333 = vmatprep.subr.mxu0 0.0
  %3334 = vmatpush1.msra.mxu0 0.0
  %3335 = vmatprep.subr.mxu0 0.0
  %3336 = vmatpush1.msra.mxu0 0.0
  %3337 = vmatprep.subr.mxu0 0.0
  %3338 = vmatpush1.msra.mxu0 0.0
  %3339 = vmatprep.subr.mxu0 0.0
  %3340 = vmatpush1.msra.mxu0 0.0
  %3341 = vmatprep.subr.mxu0 0.0
  %3342 = vmatpush1.msra.mxu0 0.0
  %3343 = vmatprep.subr.mxu0 0.0
  %3344 = vmatpush1.msra.mxu0 0.0
  %3345 = vmatprep.subr.mxu0 0.0
  %3346 = vmatpush1.msra.mxu0 0.0
  %3347 = vmatprep.subr.mxu0 0.0
  %3348 = vmatpush1.msra.mxu0 0.0
  %3349 = vmatprep.subr.mxu0 0.0
  %3350 = vmatpush1.msra.mxu0 0.0
  %3351 = vmatprep.subr.mxu0 0.0
  %3352 = vmatpush1.msra.mxu0 0.0
  %3353 = vmatprep.subr.mxu0 0.0
  %3354 = vmatpush1.msra.mxu0 0.0
  %3355 = vmatprep.subr.mxu0 0.0
  %3356 = vmatpush1.msra.mxu0 0.0
  %3357 = vmatprep.subr.mxu0 0.0
  %3358 = vmatpush1.msra.mxu0 0.0
  %3359 = vmatprep.subr.mxu0 0.0
  %3360 = vmatpush1.msra.mxu0 0.0
  %3361 = vmatprep.subr.mxu0 0.0
  %3362 = vmatpush1.msra.mxu0 0.0
  %3363 = vmatprep.subr.mxu0 0.0
  %3364 = vmatpush1.msra.mxu0 0.0
  %3365 = vmatprep.subr.mxu0 0.0
  %3366 = vmatpush1.msra.mxu0 0.0
  %3367 = vmatprep.subr.mxu0 0.0
  %3368 = vmatpush1.msra.mxu0 0.0
  %3369 = vmatprep.subr.mxu0 0.0
  %3370 = vmatpush1.msra.mxu0 0.0
  %3371 = vmatprep.subr.mxu0 0.0
  %3372 = vmatpush1.msra.mxu0 0.0
  %3373 = vmatprep.subr.mxu0 0.0
  %3374 = vmatpush1.msra.mxu0 0.0
  %3375 = vmatprep.subr.mxu0 0.0
  %3376 = vmatpush1.msra.mxu0 0.0
  %3377 = vmatprep.subr.mxu0 0.0
  %3378 = vmatpush1.msra.mxu0 0.0
  %3379 = vmatprep.subr.mxu0 0.0
  %3380 = vmatpush1.msra.mxu0 0.0
  %3381 = vmatprep.subr.mxu0 0.0
  %3382 = vmatpush1.msra.mxu0 0.0
  %3383 = vmatprep.subr.mxu0 0.0
  %3384 = vmatpush1.msra.mxu0 0.0
  %3385 = vmatprep.subr.mxu0 0.0
  %3386 = vmatpush1.msra.mxu0 0.0
  %3387 = vmatprep.subr.mxu0 0.0
  %3388 = vmatpush1.msra.mxu0 0.0
  %3389 = vmatprep.subr.mxu0 0.0
  %3390 = vmatpush1.msra.mxu0 0.0
  %3391 = vmatprep.mubr.f32.mxu0 0.0
  %3392 = vmatmul.mubr.f32.gmra.mrb[0].mxu0 %v3325
  %v3393 = vpop.f32.mrb[0].mxu0
  %v3394 = vadd.f32 %v3178, %v3393
  %v3395 = vpop.f32.mrb[0].mxu0
  %v3396 = vadd.f32 %v3180, %v3395
  %3397 = vdwg.mxu0
  %3398 = vmatprep.subr.mxu0 %v3064
  %3399 = vmatpush1.msra.mxu0 %v3063
  %3400 = vmatprep.subr.mxu0 0.0
  %3401 = vmatpush1.msra.mxu0 0.0
  %3402 = vmatprep.subr.mxu0 0.0
  %3403 = vmatpush1.msra.mxu0 0.0
  %3404 = vmatprep.subr.mxu0 0.0
  %3405 = vmatpush1.msra.mxu0 0.0
  %3406 = vmatprep.subr.mxu0 0.0
  %3407 = vmatpush1.msra.mxu0 0.0
  %3408 = vmatprep.subr.mxu0 0.0
  %3409 = vmatpush1.msra.mxu0 0.0
  %3410 = vmatprep.subr.mxu0 0.0
  %3411 = vmatpush1.msra.mxu0 0.0
  %3412 = vmatprep.subr.mxu0 0.0
  %3413 = vmatpush1.msra.mxu0 0.0
  %3414 = vmatprep.subr.mxu0 0.0
  %3415 = vmatpush1.msra.mxu0 0.0
  %3416 = vmatprep.subr.mxu0 0.0
  %3417 = vmatpush1.msra.mxu0 0.0
  %3418 = vmatprep.subr.mxu0 0.0
  %3419 = vmatpush1.msra.mxu0 0.0
  %3420 = vmatprep.subr.mxu0 0.0
  %3421 = vmatpush1.msra.mxu0 0.0
  %3422 = vmatprep.subr.mxu0 0.0
  %3423 = vmatpush1.msra.mxu0 0.0
  %3424 = vmatprep.subr.mxu0 0.0
  %3425 = vmatpush1.msra.mxu0 0.0
  %3426 = vmatprep.subr.mxu0 0.0
  %3427 = vmatpush1.msra.mxu0 0.0
  %3428 = vmatprep.subr.mxu0 0.0
  %3429 = vmatpush1.msra.mxu0 0.0
  %3430 = vmatprep.subr.mxu0 0.0
  %3431 = vmatpush1.msra.mxu0 0.0
  %3432 = vmatprep.subr.mxu0 0.0
  %3433 = vmatpush1.msra.mxu0 0.0
  %3434 = vmatprep.subr.mxu0 0.0
  %3435 = vmatpush1.msra.mxu0 0.0
  %3436 = vmatprep.subr.mxu0 0.0
  %3437 = vmatpush1.msra.mxu0 0.0
  %3438 = vmatprep.subr.mxu0 0.0
  %3439 = vmatpush1.msra.mxu0 0.0
  %3440 = vmatprep.subr.mxu0 0.0
  %3441 = vmatpush1.msra.mxu0 0.0
  %3442 = vmatprep.subr.mxu0 0.0
  %3443 = vmatpush1.msra.mxu0 0.0
  %3444 = vmatprep.subr.mxu0 0.0
  %3445 = vmatpush1.msra.mxu0 0.0
  %3446 = vmatprep.subr.mxu0 0.0
  %3447 = vmatpush1.msra.mxu0 0.0
  %3448 = vmatprep.subr.mxu0 0.0
  %3449 = vmatpush1.msra.mxu0 0.0
  %3450 = vmatprep.subr.mxu0 0.0
  %3451 = vmatpush1.msra.mxu0 0.0
  %3452 = vmatprep.subr.mxu0 0.0
  %3453 = vmatpush1.msra.mxu0 0.0
  %3454 = vmatprep.subr.mxu0 0.0
  %3455 = vmatpush1.msra.mxu0 0.0
  %3456 = vmatprep.subr.mxu0 0.0
  %3457 = vmatpush1.msra.mxu0 0.0
  %3458 = vmatprep.subr.mxu0 0.0
  %3459 = vmatpush1.msra.mxu0 0.0
  %3460 = vmatprep.subr.mxu0 0.0
  %3461 = vmatpush1.msra.mxu0 0.0
  %3462 = vmatprep.mubr.f32.mxu0 0.0
  %3463 = vmatmul.mubr.f32.gmra.mrb[0].mxu0 %v3325
  %v3464 = vpop.f32.mrb[0].mxu0
  %v3465 = vadd.f32 %v3249, %v3464
  %v3466 = vpop.f32.mrb[0].mxu0
  %v3467 = vadd.f32 %v3251, %v3466
  %3468 = vdwg.mxu0
  %3469 = vmatprep.subr.mxu0 %v3066
  %3470 = vmatpush1.msra.mxu0 %v3065
  %3471 = vmatprep.subr.mxu0 0.0
  %3472 = vmatpush1.msra.mxu0 0.0
  %3473 = vmatprep.subr.mxu0 0.0
  %3474 = vmatpush1.msra.mxu0 0.0
  %3475 = vmatprep.subr.mxu0 0.0
  %3476 = vmatpush1.msra.mxu0 0.0
  %3477 = vmatprep.subr.mxu0 0.0
  %3478 = vmatpush1.msra.mxu0 0.0
  %3479 = vmatprep.subr.mxu0 0.0
  %3480 = vmatpush1.msra.mxu0 0.0
  %3481 = vmatprep.subr.mxu0 0.0
  %3482 = vmatpush1.msra.mxu0 0.0
  %3483 = vmatprep.subr.mxu0 0.0
  %3484 = vmatpush1.msra.mxu0 0.0
  %3485 = vmatprep.subr.mxu0 0.0
  %3486 = vmatpush1.msra.mxu0 0.0
  %3487 = vmatprep.subr.mxu0 0.0
  %3488 = vmatpush1.msra.mxu0 0.0
  %3489 = vmatprep.subr.mxu0 0.0
  %3490 = vmatpush1.msra.mxu0 0.0
  %3491 = vmatprep.subr.mxu0 0.0
  %3492 = vmatpush1.msra.mxu0 0.0
  %3493 = vmatprep.subr.mxu0 0.0
  %3494 = vmatpush1.msra.mxu0 0.0
  %3495 = vmatprep.subr.mxu0 0.0
  %3496 = vmatpush1.msra.mxu0 0.0
  %3497 = vmatprep.subr.mxu0 0.0
  %3498 = vmatpush1.msra.mxu0 0.0
  %3499 = vmatprep.subr.mxu0 0.0
  %3500 = vmatpush1.msra.mxu0 0.0
  %3501 = vmatprep.subr.mxu0 0.0
  %3502 = vmatpush1.msra.mxu0 0.0
  %3503 = vmatprep.subr.mxu0 0.0
  %3504 = vmatpush1.msra.mxu0 0.0
  %3505 = vmatprep.subr.mxu0 0.0
  %3506 = vmatpush1.msra.mxu0 0.0
  %3507 = vmatprep.subr.mxu0 0.0
  %3508 = vmatpush1.msra.mxu0 0.0
  %3509 = vmatprep.subr.mxu0 0.0
  %3510 = vmatpush1.msra.mxu0 0.0
  %3511 = vmatprep.subr.mxu0 0.0
  %3512 = vmatpush1.msra.mxu0 0.0
  %3513 = vmatprep.subr.mxu0 0.0
  %3514 = vmatpush1.msra.mxu0 0.0
  %3515 = vmatprep.subr.mxu0 0.0
  %3516 = vmatpush1.msra.mxu0 0.0
  %3517 = vmatprep.subr.mxu0 0.0
  %3518 = vmatpush1.msra.mxu0 0.0
  %3519 = vmatprep.subr.mxu0 0.0
  %3520 = vmatpush1.msra.mxu0 0.0
  %3521 = vmatprep.subr.mxu0 0.0
  %3522 = vmatpush1.msra.mxu0 0.0
  %3523 = vmatprep.subr.mxu0 0.0
  %3524 = vmatpush1.msra.mxu0 0.0
  %3525 = vmatprep.subr.mxu0 0.0
  %3526 = vmatpush1.msra.mxu0 0.0
  %3527 = vmatprep.subr.mxu0 0.0
  %3528 = vmatpush1.msra.mxu0 0.0
  %3529 = vmatprep.subr.mxu0 0.0
  %3530 = vmatpush1.msra.mxu0 0.0
  %3531 = vmatprep.subr.mxu0 0.0
  %3532 = vmatpush1.msra.mxu0 0.0
  %3533 = vmatprep.mubr.f32.mxu0 0.0
  %3534 = vmatmul.mubr.f32.gmra.mrb[0].mxu0 %v3325
  %v3535 = vpop.f32.mrb[0].mxu0
  %v3536 = vadd.f32 %v3320, %v3535
  %v3537 = vpop.f32.mrb[0].mxu0
  %v3538 = vadd.f32 %v3322, %v3537
  %3539 = vdwg.mxu0
  %v3540 = vld [vmem:[%s4 + $0x10] sm:$0xff]
  %3541 = vrot.lane.b32.xlu0 %v3068, 126
  %v3542 = vpop.permute.xlu0 %3541
  %3543 = vrot.lane.b32.xlu0 %v3069, 126
  %v3544 = vpop.permute.xlu0 %3543
  %3545 = vrot.lane.b32.xlu0 %v3070, 126
  %v3546 = vpop.permute.xlu0 %3545
  %3547 = vrot.lane.b32.xlu0 %v3071, 126
  %v3548 = vpop.permute.xlu0 %3547
  %3549 = vrot.lane.b32.xlu0 %v3072, 126
  %v3550 = vpop.permute.xlu0 %3549
  %3551 = vrot.lane.b32.xlu0 %v3073, 126
  %v3552 = vpop.permute.xlu0 %3551
  %3553 = vrot.lane.b32.xlu0 %v3074, 126
  %v3554 = vpop.permute.xlu0 %3553
  %v3555 = vsel %vm679, %v3542, %v3544
  %v3556 = vsel %vm679, %v3544, %v3546
  %v3557 = vsel %vm679, %v3546, %v3548
  %v3558 = vsel %vm679, %v3548, %v3550
  %v3559 = vsel %vm679, %v3550, %v3552
  %v3560 = vsel %vm679, %v3552, %v3554
  %v3568 = vsel %vm89, %v3540, 0
  %3570 = vmatprep.subr.mxu0 %v3556
  %3571 = vmatpush1.msra.mxu0 %v3555
  %3572 = vmatprep.subr.mxu0 0.0
  %3573 = vmatpush1.msra.mxu0 0.0
  %3574 = vmatprep.subr.mxu0 0.0
  %3575 = vmatpush1.msra.mxu0 0.0
  %3576 = vmatprep.subr.mxu0 0.0
  %3577 = vmatpush1.msra.mxu0 0.0
  %3578 = vmatprep.subr.mxu0 0.0
  %3579 = vmatpush1.msra.mxu0 0.0
  %3580 = vmatprep.subr.mxu0 0.0
  %3581 = vmatpush1.msra.mxu0 0.0
  %3582 = vmatprep.subr.mxu0 0.0
  %3583 = vmatpush1.msra.mxu0 0.0
  %3584 = vmatprep.subr.mxu0 0.0
  %3585 = vmatpush1.msra.mxu0 0.0
  %3586 = vmatprep.subr.mxu0 0.0
  %3587 = vmatpush1.msra.mxu0 0.0
  %3588 = vmatprep.subr.mxu0 0.0
  %3589 = vmatpush1.msra.mxu0 0.0
  %3590 = vmatprep.subr.mxu0 0.0
  %3591 = vmatpush1.msra.mxu0 0.0
  %3592 = vmatprep.subr.mxu0 0.0
  %3593 = vmatpush1.msra.mxu0 0.0
  %3594 = vmatprep.subr.mxu0 0.0
  %3595 = vmatpush1.msra.mxu0 0.0
  %3596 = vmatprep.subr.mxu0 0.0
  %3597 = vmatpush1.msra.mxu0 0.0
  %3598 = vmatprep.subr.mxu0 0.0
  %3599 = vmatpush1.msra.mxu0 0.0
  %3600 = vmatprep.subr.mxu0 0.0
  %3601 = vmatpush1.msra.mxu0 0.0
  %3602 = vmatprep.subr.mxu0 0.0
  %3603 = vmatpush1.msra.mxu0 0.0
  %3604 = vmatprep.subr.mxu0 0.0
  %3605 = vmatpush1.msra.mxu0 0.0
  %3606 = vmatprep.subr.mxu0 0.0
  %3607 = vmatpush1.msra.mxu0 0.0
  %3608 = vmatprep.subr.mxu0 0.0
  %3609 = vmatpush1.msra.mxu0 0.0
  %3610 = vmatprep.subr.mxu0 0.0
  %3611 = vmatpush1.msra.mxu0 0.0
  %3612 = vmatprep.subr.mxu0 0.0
  %3613 = vmatpush1.msra.mxu0 0.0
  %3614 = vmatprep.subr.mxu0 0.0
  %3615 = vmatpush1.msra.mxu0 0.0
  %3616 = vmatprep.subr.mxu0 0.0
  %3617 = vmatpush1.msra.mxu0 0.0
  %3618 = vmatprep.subr.mxu0 0.0
  %3619 = vmatpush1.msra.mxu0 0.0
  %3620 = vmatprep.subr.mxu0 0.0
  %3621 = vmatpush1.msra.mxu0 0.0
  %3622 = vmatprep.subr.mxu0 0.0
  %3623 = vmatpush1.msra.mxu0 0.0
  %3624 = vmatprep.subr.mxu0 0.0
  %3625 = vmatpush1.msra.mxu0 0.0
  %3626 = vmatprep.subr.mxu0 0.0
  %3627 = vmatpush1.msra.mxu0 0.0
  %3628 = vmatprep.subr.mxu0 0.0
  %3629 = vmatpush1.msra.mxu0 0.0
  %3630 = vmatprep.subr.mxu0 0.0
  %3631 = vmatpush1.msra.mxu0 0.0
  %3632 = vmatprep.subr.mxu0 0.0
  %3633 = vmatpush1.msra.mxu0 0.0
  %3634 = vmatprep.mubr.f32.mxu0 0.0
  %3635 = vmatmul.mubr.f32.gmra.mrb[0].mxu0 %v3568
  %v3636 = vpop.f32.mrb[0].mxu0
  %v3637 = vadd.f32 0.0, %v3636
  %v3638 = vpop.f32.mrb[0].mxu0
  %v3639 = vadd.f32 0.0, %v3638
  %3640 = vdwg.mxu0
  %3641 = vmatprep.subr.mxu0 %v3558
  %3642 = vmatpush1.msra.mxu0 %v3557
  %3643 = vmatprep.subr.mxu0 0.0
  %3644 = vmatpush1.msra.mxu0 0.0
  %3645 = vmatprep.subr.mxu0 0.0
  %3646 = vmatpush1.msra.mxu0 0.0
  %3647 = vmatprep.subr.mxu0 0.0
  %3648 = vmatpush1.msra.mxu0 0.0
  %3649 = vmatprep.subr.mxu0 0.0
  %3650 = vmatpush1.msra.mxu0 0.0
  %3651 = vmatprep.subr.mxu0 0.0
  %3652 = vmatpush1.msra.mxu0 0.0
  %3653 = vmatprep.subr.mxu0 0.0
  %3654 = vmatpush1.msra.mxu0 0.0
  %3655 = vmatprep.subr.mxu0 0.0
  %3656 = vmatpush1.msra.mxu0 0.0
  %3657 = vmatprep.subr.mxu0 0.0
  %3658 = vmatpush1.msra.mxu0 0.0
  %3659 = vmatprep.subr.mxu0 0.0
  %3660 = vmatpush1.msra.mxu0 0.0
  %3661 = vmatprep.subr.mxu0 0.0
  %3662 = vmatpush1.msra.mxu0 0.0
  %3663 = vmatprep.subr.mxu0 0.0
  %3664 = vmatpush1.msra.mxu0 0.0
  %3665 = vmatprep.subr.mxu0 0.0
  %3666 = vmatpush1.msra.mxu0 0.0
  %3667 = vmatprep.subr.mxu0 0.0
  %3668 = vmatpush1.msra.mxu0 0.0
  %3669 = vmatprep.subr.mxu0 0.0
  %3670 = vmatpush1.msra.mxu0 0.0
  %3671 = vmatprep.subr.mxu0 0.0
  %3672 = vmatpush1.msra.mxu0 0.0
  %3673 = vmatprep.subr.mxu0 0.0
  %3674 = vmatpush1.msra.mxu0 0.0
  %3675 = vmatprep.subr.mxu0 0.0
  %3676 = vmatpush1.msra.mxu0 0.0
  %3677 = vmatprep.subr.mxu0 0.0
  %3678 = vmatpush1.msra.mxu0 0.0
  %3679 = vmatprep.subr.mxu0 0.0
  %3680 = vmatpush1.msra.mxu0 0.0
  %3681 = vmatprep.subr.mxu0 0.0
  %3682 = vmatpush1.msra.mxu0 0.0
  %3683 = vmatprep.subr.mxu0 0.0
  %3684 = vmatpush1.msra.mxu0 0.0
  %3685 = vmatprep.subr.mxu0 0.0
  %3686 = vmatpush1.msra.mxu0 0.0
  %3687 = vmatprep.subr.mxu0 0.0
  %3688 = vmatpush1.msra.mxu0 0.0
  %3689 = vmatprep.subr.mxu0 0.0
  %3690 = vmatpush1.msra.mxu0 0.0
  %3691 = vmatprep.subr.mxu0 0.0
  %3692 = vmatpush1.msra.mxu0 0.0
  %3693 = vmatprep.subr.mxu0 0.0
  %3694 = vmatpush1.msra.mxu0 0.0
  %3695 = vmatprep.subr.mxu0 0.0
  %3696 = vmatpush1.msra.mxu0 0.0
  %3697 = vmatprep.subr.mxu0 0.0
  %3698 = vmatpush1.msra.mxu0 0.0
  %3699 = vmatprep.subr.mxu0 0.0
  %3700 = vmatpush1.msra.mxu0 0.0
  %3701 = vmatprep.subr.mxu0 0.0
  %3702 = vmatpush1.msra.mxu0 0.0
  %3703 = vmatprep.subr.mxu0 0.0
  %3704 = vmatpush1.msra.mxu0 0.0
  %3705 = vmatprep.mubr.f32.mxu0 0.0
  %3706 = vmatmul.mubr.f32.gmra.mrb[0].mxu0 %v3568
  %v3707 = vpop.f32.mrb[0].mxu0
  %v3708 = vadd.f32 0.0, %v3707
  %v3709 = vpop.f32.mrb[0].mxu0
  %v3710 = vadd.f32 0.0, %v3709
  %3711 = vdwg.mxu0
  %3712 = vmatprep.subr.mxu0 %v3560
  %3713 = vmatpush1.msra.mxu0 %v3559
  %3714 = vmatprep.subr.mxu0 0.0
  %3715 = vmatpush1.msra.mxu0 0.0
  %3716 = vmatprep.subr.mxu0 0.0
  %3717 = vmatpush1.msra.mxu0 0.0
  %3718 = vmatprep.subr.mxu0 0.0
  %3719 = vmatpush1.msra.mxu0 0.0
  %3720 = vmatprep.subr.mxu0 0.0
  %3721 = vmatpush1.msra.mxu0 0.0
  %3722 = vmatprep.subr.mxu0 0.0
  %3723 = vmatpush1.msra.mxu0 0.0
  %3724 = vmatprep.subr.mxu0 0.0
  %3725 = vmatpush1.msra.mxu0 0.0
  %3726 = vmatprep.subr.mxu0 0.0
  %3727 = vmatpush1.msra.mxu0 0.0
  %3728 = vmatprep.subr.mxu0 0.0
  %3729 = vmatpush1.msra.mxu0 0.0
  %3730 = vmatprep.subr.mxu0 0.0
  %3731 = vmatpush1.msra.mxu0 0.0
  %3732 = vmatprep.subr.mxu0 0.0
  %3733 = vmatpush1.msra.mxu0 0.0
  %3734 = vmatprep.subr.mxu0 0.0
  %3735 = vmatpush1.msra.mxu0 0.0
  %3736 = vmatprep.subr.mxu0 0.0
  %3737 = vmatpush1.msra.mxu0 0.0
  %3738 = vmatprep.subr.mxu0 0.0
  %3739 = vmatpush1.msra.mxu0 0.0
  %3740 = vmatprep.subr.mxu0 0.0
  %3741 = vmatpush1.msra.mxu0 0.0
  %3742 = vmatprep.subr.mxu0 0.0
  %3743 = vmatpush1.msra.mxu0 0.0
  %3744 = vmatprep.subr.mxu0 0.0
  %3745 = vmatpush1.msra.mxu0 0.0
  %3746 = vmatprep.subr.mxu0 0.0
  %3747 = vmatpush1.msra.mxu0 0.0
  %3748 = vmatprep.subr.mxu0 0.0
  %3749 = vmatpush1.msra.mxu0 0.0
  %3750 = vmatprep.subr.mxu0 0.0
  %3751 = vmatpush1.msra.mxu0 0.0
  %3752 = vmatprep.subr.mxu0 0.0
  %3753 = vmatpush1.msra.mxu0 0.0
  %3754 = vmatprep.subr.mxu0 0.0
  %3755 = vmatpush1.msra.mxu0 0.0
  %3756 = vmatprep.subr.mxu0 0.0
  %3757 = vmatpush1.msra.mxu0 0.0
  %3758 = vmatprep.subr.mxu0 0.0
  %3759 = vmatpush1.msra.mxu0 0.0
  %3760 = vmatprep.subr.mxu0 0.0
  %3761 = vmatpush1.msra.mxu0 0.0
  %3762 = vmatprep.subr.mxu0 0.0
  %3763 = vmatpush1.msra.mxu0 0.0
  %3764 = vmatprep.subr.mxu0 0.0
  %3765 = vmatpush1.msra.mxu0 0.0
  %3766 = vmatprep.subr.mxu0 0.0
  %3767 = vmatpush1.msra.mxu0 0.0
  %3768 = vmatprep.subr.mxu0 0.0
  %3769 = vmatpush1.msra.mxu0 0.0
  %3770 = vmatprep.subr.mxu0 0.0
  %3771 = vmatpush1.msra.mxu0 0.0
  %3772 = vmatprep.subr.mxu0 0.0
  %3773 = vmatpush1.msra.mxu0 0.0
  %3774 = vmatprep.subr.mxu0 0.0
  %3775 = vmatpush1.msra.mxu0 0.0
  %3776 = vmatprep.mubr.f32.mxu0 0.0
  %3777 = vmatmul.mubr.f32.gmra.mrb[0].mxu0 %v3568
  %v3778 = vpop.f32.mrb[0].mxu0
  %v3779 = vadd.f32 0.0, %v3778
  %v3780 = vpop.f32.mrb[0].mxu0
  %v3781 = vadd.f32 0.0, %v3780
  %3782 = vdwg.mxu0
  %v3783 = vadd.f32 %v3394, %v3637
  %v3784 = vadd.f32 %v3396, %v3639
  %v3785 = vadd.f32 %v3465, %v3708
  %v3786 = vadd.f32 %v3467, %v3710
  %v3787 = vadd.f32 %v3536, %v3779
  %v3788 = vadd.f32 %v3538, %v3781
  %v3789 = vld [vmem:[%s4 + $0x18] sm:$0xff]
  %3790 = vrot.lane.b32.xlu0 %v3068, 110
  %v3791 = vpop.permute.xlu0 %3790
  %3792 = vrot.lane.b32.xlu0 %v3069, 110
  %v3793 = vpop.permute.xlu0 %3792
  %3794 = vrot.lane.b32.xlu0 %v3070, 110
  %v3795 = vpop.permute.xlu0 %3794
  %3796 = vrot.lane.b32.xlu0 %v3071, 110
  %v3797 = vpop.permute.xlu0 %3796
  %3798 = vrot.lane.b32.xlu0 %v3072, 110
  %v3799 = vpop.permute.xlu0 %3798
  %3800 = vrot.lane.b32.xlu0 %v3073, 110
  %v3801 = vpop.permute.xlu0 %3800
  %3802 = vrot.lane.b32.xlu0 %v3074, 110
  %v3803 = vpop.permute.xlu0 %3802
  %v3804 = vsel %vm1004, %v3791, %v3793
  %v3805 = vsel %vm1004, %v3793, %v3795
  %v3806 = vsel %vm1004, %v3795, %v3797
  %v3807 = vsel %vm1004, %v3797, %v3799
  %v3808 = vsel %vm1004, %v3799, %v3801
  %v3809 = vsel %vm1004, %v3801, %v3803
  %v3817 = vsel %vm89, %v3789, 0
  %3819 = vmatprep.subr.mxu0 %v3805
  %3820 = vmatpush1.msra.mxu0 %v3804
  %3821 = vmatprep.subr.mxu0 0.0
  %3822 = vmatpush1.msra.mxu0 0.0
  %3823 = vmatprep.subr.mxu0 0.0
  %3824 = vmatpush1.msra.mxu0 0.0
  %3825 = vmatprep.subr.mxu0 0.0
  %3826 = vmatpush1.msra.mxu0 0.0
  %3827 = vmatprep.subr.mxu0 0.0
  %3828 = vmatpush1.msra.mxu0 0.0
  %3829 = vmatprep.subr.mxu0 0.0
  %3830 = vmatpush1.msra.mxu0 0.0
  %3831 = vmatprep.subr.mxu0 0.0
  %3832 = vmatpush1.msra.mxu0 0.0
  %3833 = vmatprep.subr.mxu0 0.0
  %3834 = vmatpush1.msra.mxu0 0.0
  %3835 = vmatprep.subr.mxu0 0.0
  %3836 = vmatpush1.msra.mxu0 0.0
  %3837 = vmatprep.subr.mxu0 0.0
  %3838 = vmatpush1.msra.mxu0 0.0
  %3839 = vmatprep.subr.mxu0 0.0
  %3840 = vmatpush1.msra.mxu0 0.0
  %3841 = vmatprep.subr.mxu0 0.0
  %3842 = vmatpush1.msra.mxu0 0.0
  %3843 = vmatprep.subr.mxu0 0.0
  %3844 = vmatpush1.msra.mxu0 0.0
  %3845 = vmatprep.subr.mxu0 0.0
  %3846 = vmatpush1.msra.mxu0 0.0
  %3847 = vmatprep.subr.mxu0 0.0
  %3848 = vmatpush1.msra.mxu0 0.0
  %3849 = vmatprep.subr.mxu0 0.0
  %3850 = vmatpush1.msra.mxu0 0.0
  %3851 = vmatprep.subr.mxu0 0.0
  %3852 = vmatpush1.msra.mxu0 0.0
  %3853 = vmatprep.subr.mxu0 0.0
  %3854 = vmatpush1.msra.mxu0 0.0
  %3855 = vmatprep.subr.mxu0 0.0
  %3856 = vmatpush1.msra.mxu0 0.0
  %3857 = vmatprep.subr.mxu0 0.0
  %3858 = vmatpush1.msra.mxu0 0.0
  %3859 = vmatprep.subr.mxu0 0.0
  %3860 = vmatpush1.msra.mxu0 0.0
  %3861 = vmatprep.subr.mxu0 0.0
  %3862 = vmatpush1.msra.mxu0 0.0
  %3863 = vmatprep.subr.mxu0 0.0
  %3864 = vmatpush1.msra.mxu0 0.0
  %3865 = vmatprep.subr.mxu0 0.0
  %3866 = vmatpush1.msra.mxu0 0.0
  %3867 = vmatprep.subr.mxu0 0.0
  %3868 = vmatpush1.msra.mxu0 0.0
  %3869 = vmatprep.subr.mxu0 0.0
  %3870 = vmatpush1.msra.mxu0 0.0
  %3871 = vmatprep.subr.mxu0 0.0
  %3872 = vmatpush1.msra.mxu0 0.0
  %3873 = vmatprep.subr.mxu0 0.0
  %3874 = vmatpush1.msra.mxu0 0.0
  %3875 = vmatprep.subr.mxu0 0.0
  %3876 = vmatpush1.msra.mxu0 0.0
  %3877 = vmatprep.subr.mxu0 0.0
  %3878 = vmatpush1.msra.mxu0 0.0
  %3879 = vmatprep.subr.mxu0 0.0
  %3880 = vmatpush1.msra.mxu0 0.0
  %3881 = vmatprep.subr.mxu0 0.0
  %3882 = vmatpush1.msra.mxu0 0.0
  %3883 = vmatprep.mubr.f32.mxu0 0.0
  %3884 = vmatmul.mubr.f32.gmra.mrb[0].mxu0 %v3817
  %v3885 = vpop.f32.mrb[0].mxu0
  %v3886 = vadd.f32 0.0, %v3885
  %v3887 = vpop.f32.mrb[0].mxu0
  %v3888 = vadd.f32 0.0, %v3887
  %3889 = vdwg.mxu0
  %3890 = vmatprep.subr.mxu0 %v3807
  %3891 = vmatpush1.msra.mxu0 %v3806
  %3892 = vmatprep.subr.mxu0 0.0
  %3893 = vmatpush1.msra.mxu0 0.0
  %3894 = vmatprep.subr.mxu0 0.0
  %3895 = vmatpush1.msra.mxu0 0.0
  %3896 = vmatprep.subr.mxu0 0.0
  %3897 = vmatpush1.msra.mxu0 0.0
  %3898 = vmatprep.subr.mxu0 0.0
  %3899 = vmatpush1.msra.mxu0 0.0
  %3900 = vmatprep.subr.mxu0 0.0
  %3901 = vmatpush1.msra.mxu0 0.0
  %3902 = vmatprep.subr.mxu0 0.0
  %3903 = vmatpush1.msra.mxu0 0.0
  %3904 = vmatprep.subr.mxu0 0.0
  %3905 = vmatpush1.msra.mxu0 0.0
  %3906 = vmatprep.subr.mxu0 0.0
  %3907 = vmatpush1.msra.mxu0 0.0
  %3908 = vmatprep.subr.mxu0 0.0
  %3909 = vmatpush1.msra.mxu0 0.0
  %3910 = vmatprep.subr.mxu0 0.0
  %3911 = vmatpush1.msra.mxu0 0.0
  %3912 = vmatprep.subr.mxu0 0.0
  %3913 = vmatpush1.msra.mxu0 0.0
  %3914 = vmatprep.subr.mxu0 0.0
  %3915 = vmatpush1.msra.mxu0 0.0
  %3916 = vmatprep.subr.mxu0 0.0
  %3917 = vmatpush1.msra.mxu0 0.0
  %3918 = vmatprep.subr.mxu0 0.0
  %3919 = vmatpush1.msra.mxu0 0.0
  %3920 = vmatprep.subr.mxu0 0.0
  %3921 = vmatpush1.msra.mxu0 0.0
  %3922 = vmatprep.subr.mxu0 0.0
  %3923 = vmatpush1.msra.mxu0 0.0
  %3924 = vmatprep.subr.mxu0 0.0
  %3925 = vmatpush1.msra.mxu0 0.0
  %3926 = vmatprep.subr.mxu0 0.0
  %3927 = vmatpush1.msra.mxu0 0.0
  %3928 = vmatprep.subr.mxu0 0.0
  %3929 = vmatpush1.msra.mxu0 0.0
  %3930 = vmatprep.subr.mxu0 0.0
  %3931 = vmatpush1.msra.mxu0 0.0
  %3932 = vmatprep.subr.mxu0 0.0
  %3933 = vmatpush1.msra.mxu0 0.0
  %3934 = vmatprep.subr.mxu0 0.0
  %3935 = vmatpush1.msra.mxu0 0.0
  %3936 = vmatprep.subr.mxu0 0.0
  %3937 = vmatpush1.msra.mxu0 0.0
  %3938 = vmatprep.subr.mxu0 0.0
  %3939 = vmatpush1.msra.mxu0 0.0
  %3940 = vmatprep.subr.mxu0 0.0
  %3941 = vmatpush1.msra.mxu0 0.0
  %3942 = vmatprep.subr.mxu0 0.0
  %3943 = vmatpush1.msra.mxu0 0.0
  %3944 = vmatprep.subr.mxu0 0.0
  %3945 = vmatpush1.msra.mxu0 0.0
  %3946 = vmatprep.subr.mxu0 0.0
  %3947 = vmatpush1.msra.mxu0 0.0
  %3948 = vmatprep.subr.mxu0 0.0
  %3949 = vmatpush1.msra.mxu0 0.0
  %3950 = vmatprep.subr.mxu0 0.0
  %3951 = vmatpush1.msra.mxu0 0.0
  %3952 = vmatprep.subr.mxu0 0.0
  %3953 = vmatpush1.msra.mxu0 0.0
  %3954 = vmatprep.mubr.f32.mxu0 0.0
  %3955 = vmatmul.mubr.f32.gmra.mrb[0].mxu0 %v3817
  %v3956 = vpop.f32.mrb[0].mxu0
  %v3957 = vadd.f32 0.0, %v3956
  %v3958 = vpop.f32.mrb[0].mxu0
  %v3959 = vadd.f32 0.0, %v3958
  %3960 = vdwg.mxu0
  %3961 = vmatprep.subr.mxu0 %v3809
  %3962 = vmatpush1.msra.mxu0 %v3808
  %3963 = vmatprep.subr.mxu0 0.0
  %3964 = vmatpush1.msra.mxu0 0.0
  %3965 = vmatprep.subr.mxu0 0.0
  %3966 = vmatpush1.msra.mxu0 0.0
  %3967 = vmatprep.subr.mxu0 0.0
  %3968 = vmatpush1.msra.mxu0 0.0
  %3969 = vmatprep.subr.mxu0 0.0
  %3970 = vmatpush1.msra.mxu0 0.0
  %3971 = vmatprep.subr.mxu0 0.0
  %3972 = vmatpush1.msra.mxu0 0.0
  %3973 = vmatprep.subr.mxu0 0.0
  %3974 = vmatpush1.msra.mxu0 0.0
  %3975 = vmatprep.subr.mxu0 0.0
  %3976 = vmatpush1.msra.mxu0 0.0
  %3977 = vmatprep.subr.mxu0 0.0
  %3978 = vmatpush1.msra.mxu0 0.0
  %3979 = vmatprep.subr.mxu0 0.0
  %3980 = vmatpush1.msra.mxu0 0.0
  %3981 = vmatprep.subr.mxu0 0.0
  %3982 = vmatpush1.msra.mxu0 0.0
  %3983 = vmatprep.subr.mxu0 0.0
  %3984 = vmatpush1.msra.mxu0 0.0
  %3985 = vmatprep.subr.mxu0 0.0
  %3986 = vmatpush1.msra.mxu0 0.0
  %3987 = vmatprep.subr.mxu0 0.0
  %3988 = vmatpush1.msra.mxu0 0.0
  %3989 = vmatprep.subr.mxu0 0.0
  %3990 = vmatpush1.msra.mxu0 0.0
  %3991 = vmatprep.subr.mxu0 0.0
  %3992 = vmatpush1.msra.mxu0 0.0
  %3993 = vmatprep.subr.mxu0 0.0
  %3994 = vmatpush1.msra.mxu0 0.0
  %3995 = vmatprep.subr.mxu0 0.0
  %3996 = vmatpush1.msra.mxu0 0.0
  %3997 = vmatprep.subr.mxu0 0.0
  %3998 = vmatpush1.msra.mxu0 0.0
  %3999 = vmatprep.subr.mxu0 0.0
  %4000 = vmatpush1.msra.mxu0 0.0
  %4001 = vmatprep.subr.mxu0 0.0
  %4002 = vmatpush1.msra.mxu0 0.0
  %4003 = vmatprep.subr.mxu0 0.0
  %4004 = vmatpush1.msra.mxu0 0.0
  %4005 = vmatprep.subr.mxu0 0.0
  %4006 = vmatpush1.msra.mxu0 0.0
  %4007 = vmatprep.subr.mxu0 0.0
  %4008 = vmatpush1.msra.mxu0 0.0
  %4009 = vmatprep.subr.mxu0 0.0
  %4010 = vmatpush1.msra.mxu0 0.0
  %4011 = vmatprep.subr.mxu0 0.0
  %4012 = vmatpush1.msra.mxu0 0.0
  %4013 = vmatprep.subr.mxu0 0.0
  %4014 = vmatpush1.msra.mxu0 0.0
  %4015 = vmatprep.subr.mxu0 0.0
  %4016 = vmatpush1.msra.mxu0 0.0
  %4017 = vmatprep.subr.mxu0 0.0
  %4018 = vmatpush1.msra.mxu0 0.0
  %4019 = vmatprep.subr.mxu0 0.0
  %4020 = vmatpush1.msra.mxu0 0.0
  %4021 = vmatprep.subr.mxu0 0.0
  %4022 = vmatpush1.msra.mxu0 0.0
  %4023 = vmatprep.subr.mxu0 0.0
  %4024 = vmatpush1.msra.mxu0 0.0
  %4025 = vmatprep.mubr.f32.mxu0 0.0
  %4026 = vmatmul.mubr.f32.gmra.mrb[0].mxu0 %v3817
  %v4027 = vpop.f32.mrb[0].mxu0
  %v4028 = vadd.f32 0.0, %v4027
  %v4029 = vpop.f32.mrb[0].mxu0
  %v4030 = vadd.f32 0.0, %v4029
  %4031 = vdwg.mxu0
  %v4032 = vadd.f32 %v3783, %v3886
  %v4033 = vadd.f32 %v3784, %v3888
  %v4034 = vadd.f32 %v3785, %v3957
  %v4035 = vadd.f32 %v3786, %v3959
  %v4036 = vadd.f32 %v3787, %v4028
  %v4037 = vadd.f32 %v3788, %v4030
  %v4038 = vld [vmem:[%s4 + $0x20] sm:$0xff]
  %4039 = vrot.lane.b32.xlu0 %v3068, 109
  %v4040 = vpop.permute.xlu0 %4039
  %4041 = vrot.lane.b32.xlu0 %v3069, 109
  %v4042 = vpop.permute.xlu0 %4041
  %4043 = vrot.lane.b32.xlu0 %v3070, 109
  %v4044 = vpop.permute.xlu0 %4043
  %4045 = vrot.lane.b32.xlu0 %v3071, 109
  %v4046 = vpop.permute.xlu0 %4045
  %4047 = vrot.lane.b32.xlu0 %v3072, 109
  %v4048 = vpop.permute.xlu0 %4047
  %4049 = vrot.lane.b32.xlu0 %v3073, 109
  %v4050 = vpop.permute.xlu0 %4049
  %4051 = vrot.lane.b32.xlu0 %v3074, 109
  %v4052 = vpop.permute.xlu0 %4051
  %v4053 = vsel %vm1329, %v4040, %v4042
  %v4054 = vsel %vm1329, %v4042, %v4044
  %v4055 = vsel %vm1329, %v4044, %v4046
  %v4056 = vsel %vm1329, %v4046, %v4048
  %v4057 = vsel %vm1329, %v4048, %v4050
  %v4058 = vsel %vm1329, %v4050, %v4052
  %v4066 = vsel %vm89, %v4038, 0
  %4068 = vmatprep.subr.mxu0 %v4054
  %4069 = vmatpush1.msra.mxu0 %v4053
  %4070 = vmatprep.subr.mxu0 0.0
  %4071 = vmatpush1.msra.mxu0 0.0
  %4072 = vmatprep.subr.mxu0 0.0
  %4073 = vmatpush1.msra.mxu0 0.0
  %4074 = vmatprep.subr.mxu0 0.0
  %4075 = vmatpush1.msra.mxu0 0.0
  %4076 = vmatprep.subr.mxu0 0.0
  %4077 = vmatpush1.msra.mxu0 0.0
  %4078 = vmatprep.subr.mxu0 0.0
  %4079 = vmatpush1.msra.mxu0 0.0
  %4080 = vmatprep.subr.mxu0 0.0
  %4081 = vmatpush1.msra.mxu0 0.0
  %4082 = vmatprep.subr.mxu0 0.0
  %4083 = vmatpush1.msra.mxu0 0.0
  %4084 = vmatprep.subr.mxu0 0.0
  %4085 = vmatpush1.msra.mxu0 0.0
  %4086 = vmatprep.subr.mxu0 0.0
  %4087 = vmatpush1.msra.mxu0 0.0
  %4088 = vmatprep.subr.mxu0 0.0
  %4089 = vmatpush1.msra.mxu0 0.0
  %4090 = vmatprep.subr.mxu0 0.0
  %4091 = vmatpush1.msra.mxu0 0.0
  %4092 = vmatprep.subr.mxu0 0.0
  %4093 = vmatpush1.msra.mxu0 0.0
  %4094 = vmatprep.subr.mxu0 0.0
  %4095 = vmatpush1.msra.mxu0 0.0
  %4096 = vmatprep.subr.mxu0 0.0
  %4097 = vmatpush1.msra.mxu0 0.0
  %4098 = vmatprep.subr.mxu0 0.0
  %4099 = vmatpush1.msra.mxu0 0.0
  %4100 = vmatprep.subr.mxu0 0.0
  %4101 = vmatpush1.msra.mxu0 0.0
  %4102 = vmatprep.subr.mxu0 0.0
  %4103 = vmatpush1.msra.mxu0 0.0
  %4104 = vmatprep.subr.mxu0 0.0
  %4105 = vmatpush1.msra.mxu0 0.0
  %4106 = vmatprep.subr.mxu0 0.0
  %4107 = vmatpush1.msra.mxu0 0.0
  %4108 = vmatprep.subr.mxu0 0.0
  %4109 = vmatpush1.msra.mxu0 0.0
  %4110 = vmatprep.subr.mxu0 0.0
  %4111 = vmatpush1.msra.mxu0 0.0
  %4112 = vmatprep.subr.mxu0 0.0
  %4113 = vmatpush1.msra.mxu0 0.0
  %4114 = vmatprep.subr.mxu0 0.0
  %4115 = vmatpush1.msra.mxu0 0.0
  %4116 = vmatprep.subr.mxu0 0.0
  %4117 = vmatpush1.msra.mxu0 0.0
  %4118 = vmatprep.subr.mxu0 0.0
  %4119 = vmatpush1.msra.mxu0 0.0
  %4120 = vmatprep.subr.mxu0 0.0
  %4121 = vmatpush1.msra.mxu0 0.0
  %4122 = vmatprep.subr.mxu0 0.0
  %4123 = vmatpush1.msra.mxu0 0.0
  %4124 = vmatprep.subr.mxu0 0.0
  %4125 = vmatpush1.msra.mxu0 0.0
  %4126 = vmatprep.subr.mxu0 0.0
  %4127 = vmatpush1.msra.mxu0 0.0
  %4128 = vmatprep.subr.mxu0 0.0
  %4129 = vmatpush1.msra.mxu0 0.0
  %4130 = vmatprep.subr.mxu0 0.0
  %4131 = vmatpush1.msra.mxu0 0.0
  %4132 = vmatprep.mubr.f32.mxu0 0.0
  %4133 = vmatmul.mubr.f32.gmra.mrb[0].mxu0 %v4066
  %v4134 = vpop.f32.mrb[0].mxu0
  %v4135 = vadd.f32 0.0, %v4134
  %v4136 = vpop.f32.mrb[0].mxu0
  %v4137 = vadd.f32 0.0, %v4136
  %4138 = vdwg.mxu0
  %4139 = vmatprep.subr.mxu0 %v4056
  %4140 = vmatpush1.msra.mxu0 %v4055
  %4141 = vmatprep.subr.mxu0 0.0
  %4142 = vmatpush1.msra.mxu0 0.0
  %4143 = vmatprep.subr.mxu0 0.0
  %4144 = vmatpush1.msra.mxu0 0.0
  %4145 = vmatprep.subr.mxu0 0.0
  %4146 = vmatpush1.msra.mxu0 0.0
  %4147 = vmatprep.subr.mxu0 0.0
  %4148 = vmatpush1.msra.mxu0 0.0
  %4149 = vmatprep.subr.mxu0 0.0
  %4150 = vmatpush1.msra.mxu0 0.0
  %4151 = vmatprep.subr.mxu0 0.0
  %4152 = vmatpush1.msra.mxu0 0.0
  %4153 = vmatprep.subr.mxu0 0.0
  %4154 = vmatpush1.msra.mxu0 0.0
  %4155 = vmatprep.subr.mxu0 0.0
  %4156 = vmatpush1.msra.mxu0 0.0
  %4157 = vmatprep.subr.mxu0 0.0
  %4158 = vmatpush1.msra.mxu0 0.0
  %4159 = vmatprep.subr.mxu0 0.0
  %4160 = vmatpush1.msra.mxu0 0.0
  %4161 = vmatprep.subr.mxu0 0.0
  %4162 = vmatpush1.msra.mxu0 0.0
  %4163 = vmatprep.subr.mxu0 0.0
  %4164 = vmatpush1.msra.mxu0 0.0
  %4165 = vmatprep.subr.mxu0 0.0
  %4166 = vmatpush1.msra.mxu0 0.0
  %4167 = vmatprep.subr.mxu0 0.0
  %4168 = vmatpush1.msra.mxu0 0.0
  %4169 = vmatprep.subr.mxu0 0.0
  %4170 = vmatpush1.msra.mxu0 0.0
  %4171 = vmatprep.subr.mxu0 0.0
  %4172 = vmatpush1.msra.mxu0 0.0
  %4173 = vmatprep.subr.mxu0 0.0
  %4174 = vmatpush1.msra.mxu0 0.0
  %4175 = vmatprep.subr.mxu0 0.0
  %4176 = vmatpush1.msra.mxu0 0.0
  %4177 = vmatprep.subr.mxu0 0.0
  %4178 = vmatpush1.msra.mxu0 0.0
  %4179 = vmatprep.subr.mxu0 0.0
  %4180 = vmatpush1.msra.mxu0 0.0
  %4181 = vmatprep.subr.mxu0 0.0
  %4182 = vmatpush1.msra.mxu0 0.0
  %4183 = vmatprep.subr.mxu0 0.0
  %4184 = vmatpush1.msra.mxu0 0.0
  %4185 = vmatprep.subr.mxu0 0.0
  %4186 = vmatpush1.msra.mxu0 0.0
  %4187 = vmatprep.subr.mxu0 0.0
  %4188 = vmatpush1.msra.mxu0 0.0
  %4189 = vmatprep.subr.mxu0 0.0
  %4190 = vmatpush1.msra.mxu0 0.0
  %4191 = vmatprep.subr.mxu0 0.0
  %4192 = vmatpush1.msra.mxu0 0.0
  %4193 = vmatprep.subr.mxu0 0.0
  %4194 = vmatpush1.msra.mxu0 0.0
  %4195 = vmatprep.subr.mxu0 0.0
  %4196 = vmatpush1.msra.mxu0 0.0
  %4197 = vmatprep.subr.mxu0 0.0
  %4198 = vmatpush1.msra.mxu0 0.0
  %4199 = vmatprep.subr.mxu0 0.0
  %4200 = vmatpush1.msra.mxu0 0.0
  %4201 = vmatprep.subr.mxu0 0.0
  %4202 = vmatpush1.msra.mxu0 0.0
  %4203 = vmatprep.mubr.f32.mxu0 0.0
  %4204 = vmatmul.mubr.f32.gmra.mrb[0].mxu0 %v4066
  %v4205 = vpop.f32.mrb[0].mxu0
  %v4206 = vadd.f32 0.0, %v4205
  %v4207 = vpop.f32.mrb[0].mxu0
  %v4208 = vadd.f32 0.0, %v4207
  %4209 = vdwg.mxu0
  %4210 = vmatprep.subr.mxu0 %v4058
  %4211 = vmatpush1.msra.mxu0 %v4057
  %4212 = vmatprep.subr.mxu0 0.0
  %4213 = vmatpush1.msra.mxu0 0.0
  %4214 = vmatprep.subr.mxu0 0.0
  %4215 = vmatpush1.msra.mxu0 0.0
  %4216 = vmatprep.subr.mxu0 0.0
  %4217 = vmatpush1.msra.mxu0 0.0
  %4218 = vmatprep.subr.mxu0 0.0
  %4219 = vmatpush1.msra.mxu0 0.0
  %4220 = vmatprep.subr.mxu0 0.0
  %4221 = vmatpush1.msra.mxu0 0.0
  %4222 = vmatprep.subr.mxu0 0.0
  %4223 = vmatpush1.msra.mxu0 0.0
  %4224 = vmatprep.subr.mxu0 0.0
  %4225 = vmatpush1.msra.mxu0 0.0
  %4226 = vmatprep.subr.mxu0 0.0
  %4227 = vmatpush1.msra.mxu0 0.0
  %4228 = vmatprep.subr.mxu0 0.0
  %4229 = vmatpush1.msra.mxu0 0.0
  %4230 = vmatprep.subr.mxu0 0.0
  %4231 = vmatpush1.msra.mxu0 0.0
  %4232 = vmatprep.subr.mxu0 0.0
  %4233 = vmatpush1.msra.mxu0 0.0
  %4234 = vmatprep.subr.mxu0 0.0
  %4235 = vmatpush1.msra.mxu0 0.0
  %4236 = vmatprep.subr.mxu0 0.0
  %4237 = vmatpush1.msra.mxu0 0.0
  %4238 = vmatprep.subr.mxu0 0.0
  %4239 = vmatpush1.msra.mxu0 0.0
  %4240 = vmatprep.subr.mxu0 0.0
  %4241 = vmatpush1.msra.mxu0 0.0
  %4242 = vmatprep.subr.mxu0 0.0
  %4243 = vmatpush1.msra.mxu0 0.0
  %4244 = vmatprep.subr.mxu0 0.0
  %4245 = vmatpush1.msra.mxu0 0.0
  %4246 = vmatprep.subr.mxu0 0.0
  %4247 = vmatpush1.msra.mxu0 0.0
  %4248 = vmatprep.subr.mxu0 0.0
  %4249 = vmatpush1.msra.mxu0 0.0
  %4250 = vmatprep.subr.mxu0 0.0
  %4251 = vmatpush1.msra.mxu0 0.0
  %4252 = vmatprep.subr.mxu0 0.0
  %4253 = vmatpush1.msra.mxu0 0.0
  %4254 = vmatprep.subr.mxu0 0.0
  %4255 = vmatpush1.msra.mxu0 0.0
  %4256 = vmatprep.subr.mxu0 0.0
  %4257 = vmatpush1.msra.mxu0 0.0
  %4258 = vmatprep.subr.mxu0 0.0
  %4259 = vmatpush1.msra.mxu0 0.0
  %4260 = vmatprep.subr.mxu0 0.0
  %4261 = vmatpush1.msra.mxu0 0.0
  %4262 = vmatprep.subr.mxu0 0.0
  %4263 = vmatpush1.msra.mxu0 0.0
  %4264 = vmatprep.subr.mxu0 0.0
  %4265 = vmatpush1.msra.mxu0 0.0
  %4266 = vmatprep.subr.mxu0 0.0
  %4267 = vmatpush1.msra.mxu0 0.0
  %4268 = vmatprep.subr.mxu0 0.0
  %4269 = vmatpush1.msra.mxu0 0.0
  %4270 = vmatprep.subr.mxu0 0.0
  %4271 = vmatpush1.msra.mxu0 0.0
  %4272 = vmatprep.subr.mxu0 0.0
  %4273 = vmatpush1.msra.mxu0 0.0
  %4274 = vmatprep.mubr.f32.mxu0 0.0
  %4275 = vmatmul.mubr.f32.gmra.mrb[0].mxu0 %v4066
  %v4276 = vpop.f32.mrb[0].mxu0
  %v4277 = vadd.f32 0.0, %v4276
  %v4278 = vpop.f32.mrb[0].mxu0
  %v4279 = vadd.f32 0.0, %v4278
  %4280 = vdwg.mxu0
  %v4281 = vadd.f32 %v4032, %v4135
  %v4282 = vadd.f32 %v4033, %v4137
  %v4283 = vadd.f32 %v4034, %v4206
  %v4284 = vadd.f32 %v4035, %v4208
  %v4285 = vadd.f32 %v4036, %v4277
  %v4286 = vadd.f32 %v4037, %v4279
  %v4287 = vld [vmem:[%s4 + $0x28] sm:$0xff]
  %4288 = vrot.lane.b32.xlu0 %v3068, 108
  %v4289 = vpop.permute.xlu0 %4288
  %4290 = vrot.lane.b32.xlu0 %v3069, 108
  %v4291 = vpop.permute.xlu0 %4290
  %4292 = vrot.lane.b32.xlu0 %v3070, 108
  %v4293 = vpop.permute.xlu0 %4292
  %4294 = vrot.lane.b32.xlu0 %v3071, 108
  %v4295 = vpop.permute.xlu0 %4294
  %4296 = vrot.lane.b32.xlu0 %v3072, 108
  %v4297 = vpop.permute.xlu0 %4296
  %4298 = vrot.lane.b32.xlu0 %v3073, 108
  %v4299 = vpop.permute.xlu0 %4298
  %4300 = vrot.lane.b32.xlu0 %v3074, 108
  %v4301 = vpop.permute.xlu0 %4300
  %v4302 = vsel %vm1654, %v4289, %v4291
  %v4303 = vsel %vm1654, %v4291, %v4293
  %v4304 = vsel %vm1654, %v4293, %v4295
  %v4305 = vsel %vm1654, %v4295, %v4297
  %v4306 = vsel %vm1654, %v4297, %v4299
  %v4307 = vsel %vm1654, %v4299, %v4301
  %v4315 = vsel %vm89, %v4287, 0
  %4317 = vmatprep.subr.mxu0 %v4303
  %4318 = vmatpush1.msra.mxu0 %v4302
  %4319 = vmatprep.subr.mxu0 0.0
  %4320 = vmatpush1.msra.mxu0 0.0
  %4321 = vmatprep.subr.mxu0 0.0
  %4322 = vmatpush1.msra.mxu0 0.0
  %4323 = vmatprep.subr.mxu0 0.0
  %4324 = vmatpush1.msra.mxu0 0.0
  %4325 = vmatprep.subr.mxu0 0.0
  %4326 = vmatpush1.msra.mxu0 0.0
  %4327 = vmatprep.subr.mxu0 0.0
  %4328 = vmatpush1.msra.mxu0 0.0
  %4329 = vmatprep.subr.mxu0 0.0
  %4330 = vmatpush1.msra.mxu0 0.0
  %4331 = vmatprep.subr.mxu0 0.0
  %4332 = vmatpush1.msra.mxu0 0.0
  %4333 = vmatprep.subr.mxu0 0.0
  %4334 = vmatpush1.msra.mxu0 0.0
  %4335 = vmatprep.subr.mxu0 0.0
  %4336 = vmatpush1.msra.mxu0 0.0
  %4337 = vmatprep.subr.mxu0 0.0
  %4338 = vmatpush1.msra.mxu0 0.0
  %4339 = vmatprep.subr.mxu0 0.0
  %4340 = vmatpush1.msra.mxu0 0.0
  %4341 = vmatprep.subr.mxu0 0.0
  %4342 = vmatpush1.msra.mxu0 0.0
  %4343 = vmatprep.subr.mxu0 0.0
  %4344 = vmatpush1.msra.mxu0 0.0
  %4345 = vmatprep.subr.mxu0 0.0
  %4346 = vmatpush1.msra.mxu0 0.0
  %4347 = vmatprep.subr.mxu0 0.0
  %4348 = vmatpush1.msra.mxu0 0.0
  %4349 = vmatprep.subr.mxu0 0.0
  %4350 = vmatpush1.msra.mxu0 0.0
  %4351 = vmatprep.subr.mxu0 0.0
  %4352 = vmatpush1.msra.mxu0 0.0
  %4353 = vmatprep.subr.mxu0 0.0
  %4354 = vmatpush1.msra.mxu0 0.0
  %4355 = vmatprep.subr.mxu0 0.0
  %4356 = vmatpush1.msra.mxu0 0.0
  %4357 = vmatprep.subr.mxu0 0.0
  %4358 = vmatpush1.msra.mxu0 0.0
  %4359 = vmatprep.subr.mxu0 0.0
  %4360 = vmatpush1.msra.mxu0 0.0
  %4361 = vmatprep.subr.mxu0 0.0
  %4362 = vmatpush1.msra.mxu0 0.0
  %4363 = vmatprep.subr.mxu0 0.0
  %4364 = vmatpush1.msra.mxu0 0.0
  %4365 = vmatprep.subr.mxu0 0.0
  %4366 = vmatpush1.msra.mxu0 0.0
  %4367 = vmatprep.subr.mxu0 0.0
  %4368 = vmatpush1.msra.mxu0 0.0
  %4369 = vmatprep.subr.mxu0 0.0
  %4370 = vmatpush1.msra.mxu0 0.0
  %4371 = vmatprep.subr.mxu0 0.0
  %4372 = vmatpush1.msra.mxu0 0.0
  %4373 = vmatprep.subr.mxu0 0.0
  %4374 = vmatpush1.msra.mxu0 0.0
  %4375 = vmatprep.subr.mxu0 0.0
  %4376 = vmatpush1.msra.mxu0 0.0
  %4377 = vmatprep.subr.mxu0 0.0
  %4378 = vmatpush1.msra.mxu0 0.0
  %4379 = vmatprep.subr.mxu0 0.0
  %4380 = vmatpush1.msra.mxu0 0.0
  %4381 = vmatprep.mubr.f32.mxu0 0.0
  %4382 = vmatmul.mubr.f32.gmra.mrb[0].mxu0 %v4315
  %v4383 = vpop.f32.mrb[0].mxu0
  %v4384 = vadd.f32 0.0, %v4383
  %v4385 = vpop.f32.mrb[0].mxu0
  %v4386 = vadd.f32 0.0, %v4385
  %4387 = vdwg.mxu0
  %4388 = vmatprep.subr.mxu0 %v4305
  %4389 = vmatpush1.msra.mxu0 %v4304
  %4390 = vmatprep.subr.mxu0 0.0
  %4391 = vmatpush1.msra.mxu0 0.0
  %4392 = vmatprep.subr.mxu0 0.0
  %4393 = vmatpush1.msra.mxu0 0.0
  %4394 = vmatprep.subr.mxu0 0.0
  %4395 = vmatpush1.msra.mxu0 0.0
  %4396 = vmatprep.subr.mxu0 0.0
  %4397 = vmatpush1.msra.mxu0 0.0
  %4398 = vmatprep.subr.mxu0 0.0
  %4399 = vmatpush1.msra.mxu0 0.0
  %4400 = vmatprep.subr.mxu0 0.0
  %4401 = vmatpush1.msra.mxu0 0.0
  %4402 = vmatprep.subr.mxu0 0.0
  %4403 = vmatpush1.msra.mxu0 0.0
  %4404 = vmatprep.subr.mxu0 0.0
  %4405 = vmatpush1.msra.mxu0 0.0
  %4406 = vmatprep.subr.mxu0 0.0
  %4407 = vmatpush1.msra.mxu0 0.0
  %4408 = vmatprep.subr.mxu0 0.0
  %4409 = vmatpush1.msra.mxu0 0.0
  %4410 = vmatprep.subr.mxu0 0.0
  %4411 = vmatpush1.msra.mxu0 0.0
  %4412 = vmatprep.subr.mxu0 0.0
  %4413 = vmatpush1.msra.mxu0 0.0
  %4414 = vmatprep.subr.mxu0 0.0
  %4415 = vmatpush1.msra.mxu0 0.0
  %4416 = vmatprep.subr.mxu0 0.0
  %4417 = vmatpush1.msra.mxu0 0.0
  %4418 = vmatprep.subr.mxu0 0.0
  %4419 = vmatpush1.msra.mxu0 0.0
  %4420 = vmatprep.subr.mxu0 0.0
  %4421 = vmatpush1.msra.mxu0 0.0
  %4422 = vmatprep.subr.mxu0 0.0
  %4423 = vmatpush1.msra.mxu0 0.0
  %4424 = vmatprep.subr.mxu0 0.0
  %4425 = vmatpush1.msra.mxu0 0.0
  %4426 = vmatprep.subr.mxu0 0.0
  %4427 = vmatpush1.msra.mxu0 0.0
  %4428 = vmatprep.subr.mxu0 0.0
  %4429 = vmatpush1.msra.mxu0 0.0
  %4430 = vmatprep.subr.mxu0 0.0
  %4431 = vmatpush1.msra.mxu0 0.0
  %4432 = vmatprep.subr.mxu0 0.0
  %4433 = vmatpush1.msra.mxu0 0.0
  %4434 = vmatprep.subr.mxu0 0.0
  %4435 = vmatpush1.msra.mxu0 0.0
  %4436 = vmatprep.subr.mxu0 0.0
  %4437 = vmatpush1.msra.mxu0 0.0
  %4438 = vmatprep.subr.mxu0 0.0
  %4439 = vmatpush1.msra.mxu0 0.0
  %4440 = vmatprep.subr.mxu0 0.0
  %4441 = vmatpush1.msra.mxu0 0.0
  %4442 = vmatprep.subr.mxu0 0.0
  %4443 = vmatpush1.msra.mxu0 0.0
  %4444 = vmatprep.subr.mxu0 0.0
  %4445 = vmatpush1.msra.mxu0 0.0
  %4446 = vmatprep.subr.mxu0 0.0
  %4447 = vmatpush1.msra.mxu0 0.0
  %4448 = vmatprep.subr.mxu0 0.0
  %4449 = vmatpush1.msra.mxu0 0.0
  %4450 = vmatprep.subr.mxu0 0.0
  %4451 = vmatpush1.msra.mxu0 0.0
  %4452 = vmatprep.mubr.f32.mxu0 0.0
  %4453 = vmatmul.mubr.f32.gmra.mrb[0].mxu0 %v4315
  %v4454 = vpop.f32.mrb[0].mxu0
  %v4455 = vadd.f32 0.0, %v4454
  %v4456 = vpop.f32.mrb[0].mxu0
  %v4457 = vadd.f32 0.0, %v4456
  %4458 = vdwg.mxu0
  %4459 = vmatprep.subr.mxu0 %v4307
  %4460 = vmatpush1.msra.mxu0 %v4306
  %4461 = vmatprep.subr.mxu0 0.0
  %4462 = vmatpush1.msra.mxu0 0.0
  %4463 = vmatprep.subr.mxu0 0.0
  %4464 = vmatpush1.msra.mxu0 0.0
  %4465 = vmatprep.subr.mxu0 0.0
  %4466 = vmatpush1.msra.mxu0 0.0
  %4467 = vmatprep.subr.mxu0 0.0
  %4468 = vmatpush1.msra.mxu0 0.0
  %4469 = vmatprep.subr.mxu0 0.0
  %4470 = vmatpush1.msra.mxu0 0.0
  %4471 = vmatprep.subr.mxu0 0.0
  %4472 = vmatpush1.msra.mxu0 0.0
  %4473 = vmatprep.subr.mxu0 0.0
  %4474 = vmatpush1.msra.mxu0 0.0
  %4475 = vmatprep.subr.mxu0 0.0
  %4476 = vmatpush1.msra.mxu0 0.0
  %4477 = vmatprep.subr.mxu0 0.0
  %4478 = vmatpush1.msra.mxu0 0.0
  %4479 = vmatprep.subr.mxu0 0.0
  %4480 = vmatpush1.msra.mxu0 0.0
  %4481 = vmatprep.subr.mxu0 0.0
  %4482 = vmatpush1.msra.mxu0 0.0
  %4483 = vmatprep.subr.mxu0 0.0
  %4484 = vmatpush1.msra.mxu0 0.0
  %4485 = vmatprep.subr.mxu0 0.0
  %4486 = vmatpush1.msra.mxu0 0.0
  %4487 = vmatprep.subr.mxu0 0.0
  %4488 = vmatpush1.msra.mxu0 0.0
  %4489 = vmatprep.subr.mxu0 0.0
  %4490 = vmatpush1.msra.mxu0 0.0
  %4491 = vmatprep.subr.mxu0 0.0
  %4492 = vmatpush1.msra.mxu0 0.0
  %4493 = vmatprep.subr.mxu0 0.0
  %4494 = vmatpush1.msra.mxu0 0.0
  %4495 = vmatprep.subr.mxu0 0.0
  %4496 = vmatpush1.msra.mxu0 0.0
  %4497 = vmatprep.subr.mxu0 0.0
  %4498 = vmatpush1.msra.mxu0 0.0
  %4499 = vmatprep.subr.mxu0 0.0
  %4500 = vmatpush1.msra.mxu0 0.0
  %4501 = vmatprep.subr.mxu0 0.0
  %4502 = vmatpush1.msra.mxu0 0.0
  %4503 = vmatprep.subr.mxu0 0.0
  %4504 = vmatpush1.msra.mxu0 0.0
  %4505 = vmatprep.subr.mxu0 0.0
  %4506 = vmatpush1.msra.mxu0 0.0
  %4507 = vmatprep.subr.mxu0 0.0
  %4508 = vmatpush1.msra.mxu0 0.0
  %4509 = vmatprep.subr.mxu0 0.0
  %4510 = vmatpush1.msra.mxu0 0.0
  %4511 = vmatprep.subr.mxu0 0.0
  %4512 = vmatpush1.msra.mxu0 0.0
  %4513 = vmatprep.subr.mxu0 0.0
  %4514 = vmatpush1.msra.mxu0 0.0
  %4515 = vmatprep.subr.mxu0 0.0
  %4516 = vmatpush1.msra.mxu0 0.0
  %4517 = vmatprep.subr.mxu0 0.0
  %4518 = vmatpush1.msra.mxu0 0.0
  %4519 = vmatprep.subr.mxu0 0.0
  %4520 = vmatpush1.msra.mxu0 0.0
  %4521 = vmatprep.subr.mxu0 0.0
  %4522 = vmatpush1.msra.mxu0 0.0
  %4523 = vmatprep.mubr.f32.mxu0 0.0
  %4524 = vmatmul.mubr.f32.gmra.mrb[0].mxu0 %v4315
  %v4525 = vpop.f32.mrb[0].mxu0
  %v4526 = vadd.f32 0.0, %v4525
  %v4527 = vpop.f32.mrb[0].mxu0
  %v4528 = vadd.f32 0.0, %v4527
  %4529 = vdwg.mxu0
  %v4530 = vadd.f32 %v4281, %v4384
  %v4531 = vadd.f32 %v4282, %v4386
  %v4532 = vadd.f32 %v4283, %v4455
  %v4533 = vadd.f32 %v4284, %v4457
  %v4534 = vadd.f32 %v4285, %v4526
  %v4535 = vadd.f32 %v4286, %v4528
  %v4536 = vld [vmem:[%s4 + $0x30] sm:$0xff]
  %4537 = vrot.lane.b32.xlu0 %v3068, 92
  %v4538 = vpop.permute.xlu0 %4537
  %4539 = vrot.lane.b32.xlu0 %v3069, 92
  %v4540 = vpop.permute.xlu0 %4539
  %4541 = vrot.lane.b32.xlu0 %v3070, 92
  %v4542 = vpop.permute.xlu0 %4541
  %4543 = vrot.lane.b32.xlu0 %v3071, 92
  %v4544 = vpop.permute.xlu0 %4543
  %4545 = vrot.lane.b32.xlu0 %v3072, 92
  %v4546 = vpop.permute.xlu0 %4545
  %4547 = vrot.lane.b32.xlu0 %v3073, 92
  %v4548 = vpop.permute.xlu0 %4547
  %4549 = vrot.lane.b32.xlu0 %v3074, 92
  %v4550 = vpop.permute.xlu0 %4549
  %v4551 = vsel %vm1979, %v4538, %v4540
  %v4552 = vsel %vm1979, %v4540, %v4542
  %v4553 = vsel %vm1979, %v4542, %v4544
  %v4554 = vsel %vm1979, %v4544, %v4546
  %v4555 = vsel %vm1979, %v4546, %v4548
  %v4556 = vsel %vm1979, %v4548, %v4550
  %v4564 = vsel %vm89, %v4536, 0
  %4566 = vmatprep.subr.mxu0 %v4552
  %4567 = vmatpush1.msra.mxu0 %v4551
  %4568 = vmatprep.subr.mxu0 0.0
  %4569 = vmatpush1.msra.mxu0 0.0
  %4570 = vmatprep.subr.mxu0 0.0
  %4571 = vmatpush1.msra.mxu0 0.0
  %4572 = vmatprep.subr.mxu0 0.0
  %4573 = vmatpush1.msra.mxu0 0.0
  %4574 = vmatprep.subr.mxu0 0.0
  %4575 = vmatpush1.msra.mxu0 0.0
  %4576 = vmatprep.subr.mxu0 0.0
  %4577 = vmatpush1.msra.mxu0 0.0
  %4578 = vmatprep.subr.mxu0 0.0
  %4579 = vmatpush1.msra.mxu0 0.0
  %4580 = vmatprep.subr.mxu0 0.0
  %4581 = vmatpush1.msra.mxu0 0.0
  %4582 = vmatprep.subr.mxu0 0.0
  %4583 = vmatpush1.msra.mxu0 0.0
  %4584 = vmatprep.subr.mxu0 0.0
  %4585 = vmatpush1.msra.mxu0 0.0
  %4586 = vmatprep.subr.mxu0 0.0
  %4587 = vmatpush1.msra.mxu0 0.0
  %4588 = vmatprep.subr.mxu0 0.0
  %4589 = vmatpush1.msra.mxu0 0.0
  %4590 = vmatprep.subr.mxu0 0.0
  %4591 = vmatpush1.msra.mxu0 0.0
  %4592 = vmatprep.subr.mxu0 0.0
  %4593 = vmatpush1.msra.mxu0 0.0
  %4594 = vmatprep.subr.mxu0 0.0
  %4595 = vmatpush1.msra.mxu0 0.0
  %4596 = vmatprep.subr.mxu0 0.0
  %4597 = vmatpush1.msra.mxu0 0.0
  %4598 = vmatprep.subr.mxu0 0.0
  %4599 = vmatpush1.msra.mxu0 0.0
  %4600 = vmatprep.subr.mxu0 0.0
  %4601 = vmatpush1.msra.mxu0 0.0
  %4602 = vmatprep.subr.mxu0 0.0
  %4603 = vmatpush1.msra.mxu0 0.0
  %4604 = vmatprep.subr.mxu0 0.0
  %4605 = vmatpush1.msra.mxu0 0.0
  %4606 = vmatprep.subr.mxu0 0.0
  %4607 = vmatpush1.msra.mxu0 0.0
  %4608 = vmatprep.subr.mxu0 0.0
  %4609 = vmatpush1.msra.mxu0 0.0
  %4610 = vmatprep.subr.mxu0 0.0
  %4611 = vmatpush1.msra.mxu0 0.0
  %4612 = vmatprep.subr.mxu0 0.0
  %4613 = vmatpush1.msra.mxu0 0.0
  %4614 = vmatprep.subr.mxu0 0.0
  %4615 = vmatpush1.msra.mxu0 0.0
  %4616 = vmatprep.subr.mxu0 0.0
  %4617 = vmatpush1.msra.mxu0 0.0
  %4618 = vmatprep.subr.mxu0 0.0
  %4619 = vmatpush1.msra.mxu0 0.0
  %4620 = vmatprep.subr.mxu0 0.0
  %4621 = vmatpush1.msra.mxu0 0.0
  %4622 = vmatprep.subr.mxu0 0.0
  %4623 = vmatpush1.msra.mxu0 0.0
  %4624 = vmatprep.subr.mxu0 0.0
  %4625 = vmatpush1.msra.mxu0 0.0
  %4626 = vmatprep.subr.mxu0 0.0
  %4627 = vmatpush1.msra.mxu0 0.0
  %4628 = vmatprep.subr.mxu0 0.0
  %4629 = vmatpush1.msra.mxu0 0.0
  %4630 = vmatprep.mubr.f32.mxu0 0.0
  %4631 = vmatmul.mubr.f32.gmra.mrb[0].mxu0 %v4564
  %v4632 = vpop.f32.mrb[0].mxu0
  %v4633 = vadd.f32 0.0, %v4632
  %v4634 = vpop.f32.mrb[0].mxu0
  %v4635 = vadd.f32 0.0, %v4634
  %4636 = vdwg.mxu0
  %4637 = vmatprep.subr.mxu0 %v4554
  %4638 = vmatpush1.msra.mxu0 %v4553
  %4639 = vmatprep.subr.mxu0 0.0
  %4640 = vmatpush1.msra.mxu0 0.0
  %4641 = vmatprep.subr.mxu0 0.0
  %4642 = vmatpush1.msra.mxu0 0.0
  %4643 = vmatprep.subr.mxu0 0.0
  %4644 = vmatpush1.msra.mxu0 0.0
  %4645 = vmatprep.subr.mxu0 0.0
  %4646 = vmatpush1.msra.mxu0 0.0
  %4647 = vmatprep.subr.mxu0 0.0
  %4648 = vmatpush1.msra.mxu0 0.0
  %4649 = vmatprep.subr.mxu0 0.0
  %4650 = vmatpush1.msra.mxu0 0.0
  %4651 = vmatprep.subr.mxu0 0.0
  %4652 = vmatpush1.msra.mxu0 0.0
  %4653 = vmatprep.subr.mxu0 0.0
  %4654 = vmatpush1.msra.mxu0 0.0
  %4655 = vmatprep.subr.mxu0 0.0
  %4656 = vmatpush1.msra.mxu0 0.0
  %4657 = vmatprep.subr.mxu0 0.0
  %4658 = vmatpush1.msra.mxu0 0.0
  %4659 = vmatprep.subr.mxu0 0.0
  %4660 = vmatpush1.msra.mxu0 0.0
  %4661 = vmatprep.subr.mxu0 0.0
  %4662 = vmatpush1.msra.mxu0 0.0
  %4663 = vmatprep.subr.mxu0 0.0
  %4664 = vmatpush1.msra.mxu0 0.0
  %4665 = vmatprep.subr.mxu0 0.0
  %4666 = vmatpush1.msra.mxu0 0.0
  %4667 = vmatprep.subr.mxu0 0.0
  %4668 = vmatpush1.msra.mxu0 0.0
  %4669 = vmatprep.subr.mxu0 0.0
  %4670 = vmatpush1.msra.mxu0 0.0
  %4671 = vmatprep.subr.mxu0 0.0
  %4672 = vmatpush1.msra.mxu0 0.0
  %4673 = vmatprep.subr.mxu0 0.0
  %4674 = vmatpush1.msra.mxu0 0.0
  %4675 = vmatprep.subr.mxu0 0.0
  %4676 = vmatpush1.msra.mxu0 0.0
  %4677 = vmatprep.subr.mxu0 0.0
  %4678 = vmatpush1.msra.mxu0 0.0
  %4679 = vmatprep.subr.mxu0 0.0
  %4680 = vmatpush1.msra.mxu0 0.0
  %4681 = vmatprep.subr.mxu0 0.0
  %4682 = vmatpush1.msra.mxu0 0.0
  %4683 = vmatprep.subr.mxu0 0.0
  %4684 = vmatpush1.msra.mxu0 0.0
  %4685 = vmatprep.subr.mxu0 0.0
  %4686 = vmatpush1.msra.mxu0 0.0
  %4687 = vmatprep.subr.mxu0 0.0
  %4688 = vmatpush1.msra.mxu0 0.0
  %4689 = vmatprep.subr.mxu0 0.0
  %4690 = vmatpush1.msra.mxu0 0.0
  %4691 = vmatprep.subr.mxu0 0.0
  %4692 = vmatpush1.msra.mxu0 0.0
  %4693 = vmatprep.subr.mxu0 0.0
  %4694 = vmatpush1.msra.mxu0 0.0
  %4695 = vmatprep.subr.mxu0 0.0
  %4696 = vmatpush1.msra.mxu0 0.0
  %4697 = vmatprep.subr.mxu0 0.0
  %4698 = vmatpush1.msra.mxu0 0.0
  %4699 = vmatprep.subr.mxu0 0.0
  %4700 = vmatpush1.msra.mxu0 0.0
  %4701 = vmatprep.mubr.f32.mxu0 0.0
  %4702 = vmatmul.mubr.f32.gmra.mrb[0].mxu0 %v4564
  %v4703 = vpop.f32.mrb[0].mxu0
  %v4704 = vadd.f32 0.0, %v4703
  %v4705 = vpop.f32.mrb[0].mxu0
  %v4706 = vadd.f32 0.0, %v4705
  %4707 = vdwg.mxu0
  %4708 = vmatprep.subr.mxu0 %v4556
  %4709 = vmatpush1.msra.mxu0 %v4555
  %4710 = vmatprep.subr.mxu0 0.0
  %4711 = vmatpush1.msra.mxu0 0.0
  %4712 = vmatprep.subr.mxu0 0.0
  %4713 = vmatpush1.msra.mxu0 0.0
  %4714 = vmatprep.subr.mxu0 0.0
  %4715 = vmatpush1.msra.mxu0 0.0
  %4716 = vmatprep.subr.mxu0 0.0
  %4717 = vmatpush1.msra.mxu0 0.0
  %4718 = vmatprep.subr.mxu0 0.0
  %4719 = vmatpush1.msra.mxu0 0.0
  %4720 = vmatprep.subr.mxu0 0.0
  %4721 = vmatpush1.msra.mxu0 0.0
  %4722 = vmatprep.subr.mxu0 0.0
  %4723 = vmatpush1.msra.mxu0 0.0
  %4724 = vmatprep.subr.mxu0 0.0
  %4725 = vmatpush1.msra.mxu0 0.0
  %4726 = vmatprep.subr.mxu0 0.0
  %4727 = vmatpush1.msra.mxu0 0.0
  %4728 = vmatprep.subr.mxu0 0.0
  %4729 = vmatpush1.msra.mxu0 0.0
  %4730 = vmatprep.subr.mxu0 0.0
  %4731 = vmatpush1.msra.mxu0 0.0
  %4732 = vmatprep.subr.mxu0 0.0
  %4733 = vmatpush1.msra.mxu0 0.0
  %4734 = vmatprep.subr.mxu0 0.0
  %4735 = vmatpush1.msra.mxu0 0.0
  %4736 = vmatprep.subr.mxu0 0.0
  %4737 = vmatpush1.msra.mxu0 0.0
  %4738 = vmatprep.subr.mxu0 0.0
  %4739 = vmatpush1.msra.mxu0 0.0
  %4740 = vmatprep.subr.mxu0 0.0
  %4741 = vmatpush1.msra.mxu0 0.0
  %4742 = vmatprep.subr.mxu0 0.0
  %4743 = vmatpush1.msra.mxu0 0.0
  %4744 = vmatprep.subr.mxu0 0.0
  %4745 = vmatpush1.msra.mxu0 0.0
  %4746 = vmatprep.subr.mxu0 0.0
  %4747 = vmatpush1.msra.mxu0 0.0
  %4748 = vmatprep.subr.mxu0 0.0
  %4749 = vmatpush1.msra.mxu0 0.0
  %4750 = vmatprep.subr.mxu0 0.0
  %4751 = vmatpush1.msra.mxu0 0.0
  %4752 = vmatprep.subr.mxu0 0.0
  %4753 = vmatpush1.msra.mxu0 0.0
  %4754 = vmatprep.subr.mxu0 0.0
  %4755 = vmatpush1.msra.mxu0 0.0
  %4756 = vmatprep.subr.mxu0 0.0
  %4757 = vmatpush1.msra.mxu0 0.0
  %4758 = vmatprep.subr.mxu0 0.0
  %4759 = vmatpush1.msra.mxu0 0.0
  %4760 = vmatprep.subr.mxu0 0.0
  %4761 = vmatpush1.msra.mxu0 0.0
  %4762 = vmatprep.subr.mxu0 0.0
  %4763 = vmatpush1.msra.mxu0 0.0
  %4764 = vmatprep.subr.mxu0 0.0
  %4765 = vmatpush1.msra.mxu0 0.0
  %4766 = vmatprep.subr.mxu0 0.0
  %4767 = vmatpush1.msra.mxu0 0.0
  %4768 = vmatprep.subr.mxu0 0.0
  %4769 = vmatpush1.msra.mxu0 0.0
  %4770 = vmatprep.subr.mxu0 0.0
  %4771 = vmatpush1.msra.mxu0 0.0
  %4772 = vmatprep.mubr.f32.mxu0 0.0
  %4773 = vmatmul.mubr.f32.gmra.mrb[0].mxu0 %v4564
  %v4774 = vpop.f32.mrb[0].mxu0
  %v4775 = vadd.f32 0.0, %v4774
  %v4776 = vpop.f32.mrb[0].mxu0
  %v4777 = vadd.f32 0.0, %v4776
  %4778 = vdwg.mxu0
  %v4779 = vadd.f32 %v4530, %v4633
  %v4780 = vadd.f32 %v4531, %v4635
  %v4781 = vadd.f32 %v4532, %v4704
  %v4782 = vadd.f32 %v4533, %v4706
  %v4783 = vadd.f32 %v4534, %v4775
  %v4784 = vadd.f32 %v4535, %v4777
  %v4785 = vld [vmem:[%s4 + $0x38] sm:$0xff]
  %4786 = vrot.lane.b32.xlu0 %v3068, 91
  %v4787 = vpop.permute.xlu0 %4786
  %4788 = vrot.lane.b32.xlu0 %v3069, 91
  %v4789 = vpop.permute.xlu0 %4788
  %4790 = vrot.lane.b32.xlu0 %v3070, 91
  %v4791 = vpop.permute.xlu0 %4790
  %4792 = vrot.lane.b32.xlu0 %v3071, 91
  %v4793 = vpop.permute.xlu0 %4792
  %4794 = vrot.lane.b32.xlu0 %v3072, 91
  %v4795 = vpop.permute.xlu0 %4794
  %4796 = vrot.lane.b32.xlu0 %v3073, 91
  %v4797 = vpop.permute.xlu0 %4796
  %4798 = vrot.lane.b32.xlu0 %v3074, 91
  %v4799 = vpop.permute.xlu0 %4798
  %v4800 = vsel %vm2304, %v4787, %v4789
  %v4801 = vsel %vm2304, %v4789, %v4791
  %v4802 = vsel %vm2304, %v4791, %v4793
  %v4803 = vsel %vm2304, %v4793, %v4795
  %v4804 = vsel %vm2304, %v4795, %v4797
  %v4805 = vsel %vm2304, %v4797, %v4799
  %v4813 = vsel %vm89, %v4785, 0
  %4815 = vmatprep.subr.mxu0 %v4801
  %4816 = vmatpush1.msra.mxu0 %v4800
  %4817 = vmatprep.subr.mxu0 0.0
  %4818 = vmatpush1.msra.mxu0 0.0
  %4819 = vmatprep.subr.mxu0 0.0
  %4820 = vmatpush1.msra.mxu0 0.0
  %4821 = vmatprep.subr.mxu0 0.0
  %4822 = vmatpush1.msra.mxu0 0.0
  %4823 = vmatprep.subr.mxu0 0.0
  %4824 = vmatpush1.msra.mxu0 0.0
  %4825 = vmatprep.subr.mxu0 0.0
  %4826 = vmatpush1.msra.mxu0 0.0
  %4827 = vmatprep.subr.mxu0 0.0
  %4828 = vmatpush1.msra.mxu0 0.0
  %4829 = vmatprep.subr.mxu0 0.0
  %4830 = vmatpush1.msra.mxu0 0.0
  %4831 = vmatprep.subr.mxu0 0.0
  %4832 = vmatpush1.msra.mxu0 0.0
  %4833 = vmatprep.subr.mxu0 0.0
  %4834 = vmatpush1.msra.mxu0 0.0
  %4835 = vmatprep.subr.mxu0 0.0
  %4836 = vmatpush1.msra.mxu0 0.0
  %4837 = vmatprep.subr.mxu0 0.0
  %4838 = vmatpush1.msra.mxu0 0.0
  %4839 = vmatprep.subr.mxu0 0.0
  %4840 = vmatpush1.msra.mxu0 0.0
  %4841 = vmatprep.subr.mxu0 0.0
  %4842 = vmatpush1.msra.mxu0 0.0
  %4843 = vmatprep.subr.mxu0 0.0
  %4844 = vmatpush1.msra.mxu0 0.0
  %4845 = vmatprep.subr.mxu0 0.0
  %4846 = vmatpush1.msra.mxu0 0.0
  %4847 = vmatprep.subr.mxu0 0.0
  %4848 = vmatpush1.msra.mxu0 0.0
  %4849 = vmatprep.subr.mxu0 0.0
  %4850 = vmatpush1.msra.mxu0 0.0
  %4851 = vmatprep.subr.mxu0 0.0
  %4852 = vmatpush1.msra.mxu0 0.0
  %4853 = vmatprep.subr.mxu0 0.0
  %4854 = vmatpush1.msra.mxu0 0.0
  %4855 = vmatprep.subr.mxu0 0.0
  %4856 = vmatpush1.msra.mxu0 0.0
  %4857 = vmatprep.subr.mxu0 0.0
  %4858 = vmatpush1.msra.mxu0 0.0
  %4859 = vmatprep.subr.mxu0 0.0
  %4860 = vmatpush1.msra.mxu0 0.0
  %4861 = vmatprep.subr.mxu0 0.0
  %4862 = vmatpush1.msra.mxu0 0.0
  %4863 = vmatprep.subr.mxu0 0.0
  %4864 = vmatpush1.msra.mxu0 0.0
  %4865 = vmatprep.subr.mxu0 0.0
  %4866 = vmatpush1.msra.mxu0 0.0
  %4867 = vmatprep.subr.mxu0 0.0
  %4868 = vmatpush1.msra.mxu0 0.0
  %4869 = vmatprep.subr.mxu0 0.0
  %4870 = vmatpush1.msra.mxu0 0.0
  %4871 = vmatprep.subr.mxu0 0.0
  %4872 = vmatpush1.msra.mxu0 0.0
  %4873 = vmatprep.subr.mxu0 0.0
  %4874 = vmatpush1.msra.mxu0 0.0
  %4875 = vmatprep.subr.mxu0 0.0
  %4876 = vmatpush1.msra.mxu0 0.0
  %4877 = vmatprep.subr.mxu0 0.0
  %4878 = vmatpush1.msra.mxu0 0.0
  %4879 = vmatprep.mubr.f32.mxu0 0.0
  %4880 = vmatmul.mubr.f32.gmra.mrb[0].mxu0 %v4813
  %v4881 = vpop.f32.mrb[0].mxu0
  %v4882 = vadd.f32 0.0, %v4881
  %v4883 = vpop.f32.mrb[0].mxu0
  %v4884 = vadd.f32 0.0, %v4883
  %4885 = vdwg.mxu0
  %4886 = vmatprep.subr.mxu0 %v4803
  %4887 = vmatpush1.msra.mxu0 %v4802
  %4888 = vmatprep.subr.mxu0 0.0
  %4889 = vmatpush1.msra.mxu0 0.0
  %4890 = vmatprep.subr.mxu0 0.0
  %4891 = vmatpush1.msra.mxu0 0.0
  %4892 = vmatprep.subr.mxu0 0.0
  %4893 = vmatpush1.msra.mxu0 0.0
  %4894 = vmatprep.subr.mxu0 0.0
  %4895 = vmatpush1.msra.mxu0 0.0
  %4896 = vmatprep.subr.mxu0 0.0
  %4897 = vmatpush1.msra.mxu0 0.0
  %4898 = vmatprep.subr.mxu0 0.0
  %4899 = vmatpush1.msra.mxu0 0.0
  %4900 = vmatprep.subr.mxu0 0.0
  %4901 = vmatpush1.msra.mxu0 0.0
  %4902 = vmatprep.subr.mxu0 0.0
  %4903 = vmatpush1.msra.mxu0 0.0
  %4904 = vmatprep.subr.mxu0 0.0
  %4905 = vmatpush1.msra.mxu0 0.0
  %4906 = vmatprep.subr.mxu0 0.0
  %4907 = vmatpush1.msra.mxu0 0.0
  %4908 = vmatprep.subr.mxu0 0.0
  %4909 = vmatpush1.msra.mxu0 0.0
  %4910 = vmatprep.subr.mxu0 0.0
  %4911 = vmatpush1.msra.mxu0 0.0
  %4912 = vmatprep.subr.mxu0 0.0
  %4913 = vmatpush1.msra.mxu0 0.0
  %4914 = vmatprep.subr.mxu0 0.0
  %4915 = vmatpush1.msra.mxu0 0.0
  %4916 = vmatprep.subr.mxu0 0.0
  %4917 = vmatpush1.msra.mxu0 0.0
  %4918 = vmatprep.subr.mxu0 0.0
  %4919 = vmatpush1.msra.mxu0 0.0
  %4920 = vmatprep.subr.mxu0 0.0
  %4921 = vmatpush1.msra.mxu0 0.0
  %4922 = vmatprep.subr.mxu0 0.0
  %4923 = vmatpush1.msra.mxu0 0.0
  %4924 = vmatprep.subr.mxu0 0.0
  %4925 = vmatpush1.msra.mxu0 0.0
  %4926 = vmatprep.subr.mxu0 0.0
  %4927 = vmatpush1.msra.mxu0 0.0
  %4928 = vmatprep.subr.mxu0 0.0
  %4929 = vmatpush1.msra.mxu0 0.0
  %4930 = vmatprep.subr.mxu0 0.0
  %4931 = vmatpush1.msra.mxu0 0.0
  %4932 = vmatprep.subr.mxu0 0.0
  %4933 = vmatpush1.msra.mxu0 0.0
  %4934 = vmatprep.subr.mxu0 0.0
  %4935 = vmatpush1.msra.mxu0 0.0
  %4936 = vmatprep.subr.mxu0 0.0
  %4937 = vmatpush1.msra.mxu0 0.0
  %4938 = vmatprep.subr.mxu0 0.0
  %4939 = vmatpush1.msra.mxu0 0.0
  %4940 = vmatprep.subr.mxu0 0.0
  %4941 = vmatpush1.msra.mxu0 0.0
  %4942 = vmatprep.subr.mxu0 0.0
  %4943 = vmatpush1.msra.mxu0 0.0
  %4944 = vmatprep.subr.mxu0 0.0
  %4945 = vmatpush1.msra.mxu0 0.0
  %4946 = vmatprep.subr.mxu0 0.0
  %4947 = vmatpush1.msra.mxu0 0.0
  %4948 = vmatprep.subr.mxu0 0.0
  %4949 = vmatpush1.msra.mxu0 0.0
  %4950 = vmatprep.mubr.f32.mxu0 0.0
  %4951 = vmatmul.mubr.f32.gmra.mrb[0].mxu0 %v4813
  %v4952 = vpop.f32.mrb[0].mxu0
  %v4953 = vadd.f32 0.0, %v4952
  %v4954 = vpop.f32.mrb[0].mxu0
  %v4955 = vadd.f32 0.0, %v4954
  %4956 = vdwg.mxu0
  %4957 = vmatprep.subr.mxu0 %v4805
  %4958 = vmatpush1.msra.mxu0 %v4804
  %4959 = vmatprep.subr.mxu0 0.0
  %4960 = vmatpush1.msra.mxu0 0.0
  %4961 = vmatprep.subr.mxu0 0.0
  %4962 = vmatpush1.msra.mxu0 0.0
  %4963 = vmatprep.subr.mxu0 0.0
  %4964 = vmatpush1.msra.mxu0 0.0
  %4965 = vmatprep.subr.mxu0 0.0
  %4966 = vmatpush1.msra.mxu0 0.0
  %4967 = vmatprep.subr.mxu0 0.0
  %4968 = vmatpush1.msra.mxu0 0.0
  %4969 = vmatprep.subr.mxu0 0.0
  %4970 = vmatpush1.msra.mxu0 0.0
  %4971 = vmatprep.subr.mxu0 0.0
  %4972 = vmatpush1.msra.mxu0 0.0
  %4973 = vmatprep.subr.mxu0 0.0
  %4974 = vmatpush1.msra.mxu0 0.0
  %4975 = vmatprep.subr.mxu0 0.0
  %4976 = vmatpush1.msra.mxu0 0.0
  %4977 = vmatprep.subr.mxu0 0.0
  %4978 = vmatpush1.msra.mxu0 0.0
  %4979 = vmatprep.subr.mxu0 0.0
  %4980 = vmatpush1.msra.mxu0 0.0
  %4981 = vmatprep.subr.mxu0 0.0
  %4982 = vmatpush1.msra.mxu0 0.0
  %4983 = vmatprep.subr.mxu0 0.0
  %4984 = vmatpush1.msra.mxu0 0.0
  %4985 = vmatprep.subr.mxu0 0.0
  %4986 = vmatpush1.msra.mxu0 0.0
  %4987 = vmatprep.subr.mxu0 0.0
  %4988 = vmatpush1.msra.mxu0 0.0
  %4989 = vmatprep.subr.mxu0 0.0
  %4990 = vmatpush1.msra.mxu0 0.0
  %4991 = vmatprep.subr.mxu0 0.0
  %4992 = vmatpush1.msra.mxu0 0.0
  %4993 = vmatprep.subr.mxu0 0.0
  %4994 = vmatpush1.msra.mxu0 0.0
  %4995 = vmatprep.subr.mxu0 0.0
  %4996 = vmatpush1.msra.mxu0 0.0
  %4997 = vmatprep.subr.mxu0 0.0
  %4998 = vmatpush1.msra.mxu0 0.0
  %4999 = vmatprep.subr.mxu0 0.0
  %5000 = vmatpush1.msra.mxu0 0.0
  %5001 = vmatprep.subr.mxu0 0.0
  %5002 = vmatpush1.msra.mxu0 0.0
  %5003 = vmatprep.subr.mxu0 0.0
  %5004 = vmatpush1.msra.mxu0 0.0
  %5005 = vmatprep.subr.mxu0 0.0
  %5006 = vmatpush1.msra.mxu0 0.0
  %5007 = vmatprep.subr.mxu0 0.0
  %5008 = vmatpush1.msra.mxu0 0.0
  %5009 = vmatprep.subr.mxu0 0.0
  %5010 = vmatpush1.msra.mxu0 0.0
  %5011 = vmatprep.subr.mxu0 0.0
  %5012 = vmatpush1.msra.mxu0 0.0
  %5013 = vmatprep.subr.mxu0 0.0
  %5014 = vmatpush1.msra.mxu0 0.0
  %5015 = vmatprep.subr.mxu0 0.0
  %5016 = vmatpush1.msra.mxu0 0.0
  %5017 = vmatprep.subr.mxu0 0.0
  %5018 = vmatpush1.msra.mxu0 0.0
  %5019 = vmatprep.subr.mxu0 0.0
  %5020 = vmatpush1.msra.mxu0 0.0
  %5021 = vmatprep.mubr.f32.mxu0 0.0
  %5022 = vmatmul.mubr.f32.gmra.mrb[0].mxu0 %v4813
  %v5023 = vpop.f32.mrb[0].mxu0
  %v5024 = vadd.f32 0.0, %v5023
  %v5025 = vpop.f32.mrb[0].mxu0
  %v5026 = vadd.f32 0.0, %v5025
  %5027 = vdwg.mxu0
  %v5028 = vadd.f32 %v4779, %v4882
  %v5029 = vadd.f32 %v4780, %v4884
  %v5030 = vadd.f32 %v4781, %v4953
  %v5031 = vadd.f32 %v4782, %v4955
  %v5032 = vadd.f32 %v4783, %v5024
  %v5033 = vadd.f32 %v4784, %v5026
  %v5034 = vld [vmem:[%s4 + $0x40] sm:$0xff]
  %5035 = vrot.lane.b32.xlu0 %v3068, 90
  %v5036 = vpop.permute.xlu0 %5035
  %5037 = vrot.lane.b32.xlu0 %v3069, 90
  %v5038 = vpop.permute.xlu0 %5037
  %5039 = vrot.lane.b32.xlu0 %v3070, 90
  %v5040 = vpop.permute.xlu0 %5039
  %5041 = vrot.lane.b32.xlu0 %v3071, 90
  %v5042 = vpop.permute.xlu0 %5041
  %5043 = vrot.lane.b32.xlu0 %v3072, 90
  %v5044 = vpop.permute.xlu0 %5043
  %5045 = vrot.lane.b32.xlu0 %v3073, 90
  %v5046 = vpop.permute.xlu0 %5045
  %5047 = vrot.lane.b32.xlu0 %v3074, 90
  %v5048 = vpop.permute.xlu0 %5047
  %v5049 = vsel %vm2629, %v5036, %v5038
  %v5050 = vsel %vm2629, %v5038, %v5040
  %v5051 = vsel %vm2629, %v5040, %v5042
  %v5052 = vsel %vm2629, %v5042, %v5044
  %v5053 = vsel %vm2629, %v5044, %v5046
  %v5054 = vsel %vm2629, %v5046, %v5048
  %v5062 = vsel %vm89, %v5034, 0
  %5064 = vmatprep.subr.mxu0 %v5050
  %5065 = vmatpush1.msra.mxu0 %v5049
  %5066 = vmatprep.subr.mxu0 0.0
  %5067 = vmatpush1.msra.mxu0 0.0
  %5068 = vmatprep.subr.mxu0 0.0
  %5069 = vmatpush1.msra.mxu0 0.0
  %5070 = vmatprep.subr.mxu0 0.0
  %5071 = vmatpush1.msra.mxu0 0.0
  %5072 = vmatprep.subr.mxu0 0.0
  %5073 = vmatpush1.msra.mxu0 0.0
  %5074 = vmatprep.subr.mxu0 0.0
  %5075 = vmatpush1.msra.mxu0 0.0
  %5076 = vmatprep.subr.mxu0 0.0
  %5077 = vmatpush1.msra.mxu0 0.0
  %5078 = vmatprep.subr.mxu0 0.0
  %5079 = vmatpush1.msra.mxu0 0.0
  %5080 = vmatprep.subr.mxu0 0.0
  %5081 = vmatpush1.msra.mxu0 0.0
  %5082 = vmatprep.subr.mxu0 0.0
  %5083 = vmatpush1.msra.mxu0 0.0
  %5084 = vmatprep.subr.mxu0 0.0
  %5085 = vmatpush1.msra.mxu0 0.0
  %5086 = vmatprep.subr.mxu0 0.0
  %5087 = vmatpush1.msra.mxu0 0.0
  %5088 = vmatprep.subr.mxu0 0.0
  %5089 = vmatpush1.msra.mxu0 0.0
  %5090 = vmatprep.subr.mxu0 0.0
  %5091 = vmatpush1.msra.mxu0 0.0
  %5092 = vmatprep.subr.mxu0 0.0
  %5093 = vmatpush1.msra.mxu0 0.0
  %5094 = vmatprep.subr.mxu0 0.0
  %5095 = vmatpush1.msra.mxu0 0.0
  %5096 = vmatprep.subr.mxu0 0.0
  %5097 = vmatpush1.msra.mxu0 0.0
  %5098 = vmatprep.subr.mxu0 0.0
  %5099 = vmatpush1.msra.mxu0 0.0
  %5100 = vmatprep.subr.mxu0 0.0
  %5101 = vmatpush1.msra.mxu0 0.0
  %5102 = vmatprep.subr.mxu0 0.0
  %5103 = vmatpush1.msra.mxu0 0.0
  %5104 = vmatprep.subr.mxu0 0.0
  %5105 = vmatpush1.msra.mxu0 0.0
  %5106 = vmatprep.subr.mxu0 0.0
  %5107 = vmatpush1.msra.mxu0 0.0
  %5108 = vmatprep.subr.mxu0 0.0
  %5109 = vmatpush1.msra.mxu0 0.0
  %5110 = vmatprep.subr.mxu0 0.0
  %5111 = vmatpush1.msra.mxu0 0.0
  %5112 = vmatprep.subr.mxu0 0.0
  %5113 = vmatpush1.msra.mxu0 0.0
  %5114 = vmatprep.subr.mxu0 0.0
  %5115 = vmatpush1.msra.mxu0 0.0
  %5116 = vmatprep.subr.mxu0 0.0
  %5117 = vmatpush1.msra.mxu0 0.0
  %5118 = vmatprep.subr.mxu0 0.0
  %5119 = vmatpush1.msra.mxu0 0.0
  %5120 = vmatprep.subr.mxu0 0.0
  %5121 = vmatpush1.msra.mxu0 0.0
  %5122 = vmatprep.subr.mxu0 0.0
  %5123 = vmatpush1.msra.mxu0 0.0
  %5124 = vmatprep.subr.mxu0 0.0
  %5125 = vmatpush1.msra.mxu0 0.0
  %5126 = vmatprep.subr.mxu0 0.0
  %5127 = vmatpush1.msra.mxu0 0.0
  %5128 = vmatprep.mubr.f32.mxu0 0.0
  %5129 = vmatmul.mubr.f32.gmra.mrb[0].mxu0 %v5062
  %v5130 = vpop.f32.mrb[0].mxu0
  %v5131 = vadd.f32 0.0, %v5130
  %v5132 = vpop.f32.mrb[0].mxu0
  %v5133 = vadd.f32 0.0, %v5132
  %5134 = vdwg.mxu0
  %5135 = vmatprep.subr.mxu0 %v5052
  %5136 = vmatpush1.msra.mxu0 %v5051
  %5137 = vmatprep.subr.mxu0 0.0
  %5138 = vmatpush1.msra.mxu0 0.0
  %5139 = vmatprep.subr.mxu0 0.0
  %5140 = vmatpush1.msra.mxu0 0.0
  %5141 = vmatprep.subr.mxu0 0.0
  %5142 = vmatpush1.msra.mxu0 0.0
  %5143 = vmatprep.subr.mxu0 0.0
  %5144 = vmatpush1.msra.mxu0 0.0
  %5145 = vmatprep.subr.mxu0 0.0
  %5146 = vmatpush1.msra.mxu0 0.0
  %5147 = vmatprep.subr.mxu0 0.0
  %5148 = vmatpush1.msra.mxu0 0.0
  %5149 = vmatprep.subr.mxu0 0.0
  %5150 = vmatpush1.msra.mxu0 0.0
  %5151 = vmatprep.subr.mxu0 0.0
  %5152 = vmatpush1.msra.mxu0 0.0
  %5153 = vmatprep.subr.mxu0 0.0
  %5154 = vmatpush1.msra.mxu0 0.0
  %5155 = vmatprep.subr.mxu0 0.0
  %5156 = vmatpush1.msra.mxu0 0.0
  %5157 = vmatprep.subr.mxu0 0.0
  %5158 = vmatpush1.msra.mxu0 0.0
  %5159 = vmatprep.subr.mxu0 0.0
  %5160 = vmatpush1.msra.mxu0 0.0
  %5161 = vmatprep.subr.mxu0 0.0
  %5162 = vmatpush1.msra.mxu0 0.0
  %5163 = vmatprep.subr.mxu0 0.0
  %5164 = vmatpush1.msra.mxu0 0.0
  %5165 = vmatprep.subr.mxu0 0.0
  %5166 = vmatpush1.msra.mxu0 0.0
  %5167 = vmatprep.subr.mxu0 0.0
  %5168 = vmatpush1.msra.mxu0 0.0
  %5169 = vmatprep.subr.mxu0 0.0
  %5170 = vmatpush1.msra.mxu0 0.0
  %5171 = vmatprep.subr.mxu0 0.0
  %5172 = vmatpush1.msra.mxu0 0.0
  %5173 = vmatprep.subr.mxu0 0.0
  %5174 = vmatpush1.msra.mxu0 0.0
  %5175 = vmatprep.subr.mxu0 0.0
  %5176 = vmatpush1.msra.mxu0 0.0
  %5177 = vmatprep.subr.mxu0 0.0
  %5178 = vmatpush1.msra.mxu0 0.0
  %5179 = vmatprep.subr.mxu0 0.0
  %5180 = vmatpush1.msra.mxu0 0.0
  %5181 = vmatprep.subr.mxu0 0.0
  %5182 = vmatpush1.msra.mxu0 0.0
  %5183 = vmatprep.subr.mxu0 0.0
  %5184 = vmatpush1.msra.mxu0 0.0
  %5185 = vmatprep.subr.mxu0 0.0
  %5186 = vmatpush1.msra.mxu0 0.0
  %5187 = vmatprep.subr.mxu0 0.0
  %5188 = vmatpush1.msra.mxu0 0.0
  %5189 = vmatprep.subr.mxu0 0.0
  %5190 = vmatpush1.msra.mxu0 0.0
  %5191 = vmatprep.subr.mxu0 0.0
  %5192 = vmatpush1.msra.mxu0 0.0
  %5193 = vmatprep.subr.mxu0 0.0
  %5194 = vmatpush1.msra.mxu0 0.0
  %5195 = vmatprep.subr.mxu0 0.0
  %5196 = vmatpush1.msra.mxu0 0.0
  %5197 = vmatprep.subr.mxu0 0.0
  %5198 = vmatpush1.msra.mxu0 0.0
  %5199 = vmatprep.mubr.f32.mxu0 0.0
  %5200 = vmatmul.mubr.f32.gmra.mrb[0].mxu0 %v5062
  %v5201 = vpop.f32.mrb[0].mxu0
  %v5202 = vadd.f32 0.0, %v5201
  %v5203 = vpop.f32.mrb[0].mxu0
  %v5204 = vadd.f32 0.0, %v5203
  %5205 = vdwg.mxu0
  %5206 = vmatprep.subr.mxu0 %v5054
  %5207 = vmatpush1.msra.mxu0 %v5053
  %5208 = vmatprep.subr.mxu0 0.0
  %5209 = vmatpush1.msra.mxu0 0.0
  %5210 = vmatprep.subr.mxu0 0.0
  %5211 = vmatpush1.msra.mxu0 0.0
  %5212 = vmatprep.subr.mxu0 0.0
  %5213 = vmatpush1.msra.mxu0 0.0
  %5214 = vmatprep.subr.mxu0 0.0
  %5215 = vmatpush1.msra.mxu0 0.0
  %5216 = vmatprep.subr.mxu0 0.0
  %5217 = vmatpush1.msra.mxu0 0.0
  %5218 = vmatprep.subr.mxu0 0.0
  %5219 = vmatpush1.msra.mxu0 0.0
  %5220 = vmatprep.subr.mxu0 0.0
  %5221 = vmatpush1.msra.mxu0 0.0
  %5222 = vmatprep.subr.mxu0 0.0
  %5223 = vmatpush1.msra.mxu0 0.0
  %5224 = vmatprep.subr.mxu0 0.0
  %5225 = vmatpush1.msra.mxu0 0.0
  %5226 = vmatprep.subr.mxu0 0.0
  %5227 = vmatpush1.msra.mxu0 0.0
  %5228 = vmatprep.subr.mxu0 0.0
  %5229 = vmatpush1.msra.mxu0 0.0
  %5230 = vmatprep.subr.mxu0 0.0
  %5231 = vmatpush1.msra.mxu0 0.0
  %5232 = vmatprep.subr.mxu0 0.0
  %5233 = vmatpush1.msra.mxu0 0.0
  %5234 = vmatprep.subr.mxu0 0.0
  %5235 = vmatpush1.msra.mxu0 0.0
  %5236 = vmatprep.subr.mxu0 0.0
  %5237 = vmatpush1.msra.mxu0 0.0
  %5238 = vmatprep.subr.mxu0 0.0
  %5239 = vmatpush1.msra.mxu0 0.0
  %5240 = vmatprep.subr.mxu0 0.0
  %5241 = vmatpush1.msra.mxu0 0.0
  %5242 = vmatprep.subr.mxu0 0.0
  %5243 = vmatpush1.msra.mxu0 0.0
  %5244 = vmatprep.subr.mxu0 0.0
  %5245 = vmatpush1.msra.mxu0 0.0
  %5246 = vmatprep.subr.mxu0 0.0
  %5247 = vmatpush1.msra.mxu0 0.0
  %5248 = vmatprep.subr.mxu0 0.0
  %5249 = vmatpush1.msra.mxu0 0.0
  %5250 = vmatprep.subr.mxu0 0.0
  %5251 = vmatpush1.msra.mxu0 0.0
  %5252 = vmatprep.subr.mxu0 0.0
  %5253 = vmatpush1.msra.mxu0 0.0
  %5254 = vmatprep.subr.mxu0 0.0
  %5255 = vmatpush1.msra.mxu0 0.0
  %5256 = vmatprep.subr.mxu0 0.0
  %5257 = vmatpush1.msra.mxu0 0.0
  %5258 = vmatprep.subr.mxu0 0.0
  %5259 = vmatpush1.msra.mxu0 0.0
  %5260 = vmatprep.subr.mxu0 0.0
  %5261 = vmatpush1.msra.mxu0 0.0
  %5262 = vmatprep.subr.mxu0 0.0
  %5263 = vmatpush1.msra.mxu0 0.0
  %5264 = vmatprep.subr.mxu0 0.0
  %5265 = vmatpush1.msra.mxu0 0.0
  %5266 = vmatprep.subr.mxu0 0.0
  %5267 = vmatpush1.msra.mxu0 0.0
  %5268 = vmatprep.subr.mxu0 0.0
  %5269 = vmatpush1.msra.mxu0 0.0
  %5270 = vmatprep.mubr.f32.mxu0 0.0
  %5271 = vmatmul.mubr.f32.gmra.mrb[0].mxu0 %v5062
  %v5272 = vpop.f32.mrb[0].mxu0
  %v5273 = vadd.f32 0.0, %v5272
  %v5274 = vpop.f32.mrb[0].mxu0
  %v5275 = vadd.f32 0.0, %v5274
  %5276 = vdwg.mxu0
  %v5277 = vadd.f32 %v5028, %v5131
  %v5278 = vadd.f32 %v5029, %v5133
  %v5279 = vadd.f32 %v5030, %v5202
  %v5280 = vadd.f32 %v5031, %v5204
  %v5281 = vadd.f32 %v5032, %v5273
  %v5282 = vadd.f32 %v5033, %v5275
  %v5284 = vlaneseq
  %v5285 = vshrl.u32 %v5284, 7
  %v5286 = vsub.s32 0, %v5285
  %v5287 = vrot.slane %v3059, %v5286
  %v5288 = vlaneseq
  %v5289 = vshrl.u32 %v5288, 7
  %v5290 = vsub.s32 1, %v5289
  %v5291 = vrot.slane %v3059, %v5290
  %v5292 = vlaneseq
  %v5293 = vshrl.u32 %v5292, 7
  %v5294 = vsub.s32 2, %v5293
  %v5295 = vrot.slane %v3059, %v5294
  %v5296 = vlaneseq
  %v5297 = vshrl.u32 %v5296, 7
  %v5298 = vsub.s32 3, %v5297
  %v5299 = vrot.slane %v3059, %v5298
  %v5300 = vlaneseq
  %v5301 = vshrl.u32 %v5300, 7
  %v5302 = vsub.s32 4, %v5301
  %v5303 = vrot.slane %v3059, %v5302
  %v5304 = vlaneseq
  %v5305 = vshrl.u32 %v5304, 7
  %v5306 = vsub.s32 5, %v5305
  %v5307 = vrot.slane %v3059, %v5306
  %v5314 = vmul.f32 %v5277, %v5287
  %v5315 = vmul.f32 %v5278, %v5291
  %v5316 = vmul.f32 %v5279, %v5295
  %v5317 = vmul.f32 %v5280, %v5299
  %v5318 = vmul.f32 %v5281, %v5303
  %v5319 = vmul.f32 %v5282, %v5307
  %v5320 = vadd.f32 %v5314, %v5315
  %v5321 = vadd.f32 %v5320, %v5316
  %v5322 = vadd.f32 %v5321, %v5317
  %v5323 = vadd.f32 %v5322, %v5318
  %v5324 = vadd.f32 %v5323, %v5319
  %5325 = vadd.xlane.f32.xlu0 %v5324
  %v5326 = vpop.xlane.xlu0 %5325
  %v5327 = vmul.f32 %v5314, %v5277
  %v5328 = vmul.f32 %v5315, %v5278
  %v5329 = vmul.f32 %v5316, %v5279
  %v5330 = vmul.f32 %v5317, %v5280
  %v5331 = vmul.f32 %v5318, %v5281
  %v5332 = vmul.f32 %v5319, %v5282
  %v5333 = vadd.f32 %v5327, %v5328
  %v5334 = vadd.f32 %v5333, %v5329
  %v5335 = vadd.f32 %v5334, %v5330
  %v5336 = vadd.f32 %v5335, %v5331
  %v5337 = vadd.f32 %v5336, %v5332
  %5338 = vadd.xlane.f32.xlu0 %v5337
  %v5339 = vpop.xlane.xlu0 %5338
  %v5340 = vmul.f32 %v5326, 0.001953125
  %v5341 = vmul.f32 %v5339, 0.001953125
  %v5342 = vmul.f32 %v5340, %v5340
  %v5343 = vsub.f32 %v5341, %v5342
  %v5344 = vld [vmem:[%s5] sm:$0xff]
  %v5345 = vadd.f32 %v5343, 1e-05
  %v5346 = vrsqrt.pop %v5345
  %v5347 = vmul.f32 %v5344, %v5346
  %v5348 = vld [vmem:[%s6] sm:$0xff]
  %v5349 = vmul.f32 %v5340, %v5347
  %v5350 = vsub.f32 %v5348, %v5349
  %5352 = vset.pattern.permute.xlu0 0
  %5353 = vperm.xlu0 %5352, %v5347
  %v5354 = vpop.permute.xlu0 %5353
  %v5356 = vmul.f32 %v5277, %v5354
  %v5357 = vmul.f32 %v5278, %v5354
  %v5358 = vmul.f32 %v5279, %v5354
  %v5359 = vmul.f32 %v5280, %v5354
  %v5360 = vmul.f32 %v5281, %v5354
  %v5361 = vmul.f32 %v5282, %v5354
  %5363 = vset.pattern.permute.xlu0 0
  %5364 = vperm.xlu0 %5363, %v5350
  %v5365 = vpop.permute.xlu0 %5364
  %v5367 = vadd.f32 %v5356, %v5365
  %v5368 = vadd.f32 %v5357, %v5365
  %v5369 = vadd.f32 %v5358, %v5365
  %v5370 = vadd.f32 %v5359, %v5365
  %v5371 = vadd.f32 %v5360, %v5365
  %v5372 = vadd.f32 %v5361, %v5365
  %v5373 = vld [vmem:[%s0] sm:$0xff]
  %v5374 = vld [vmem:[%s0 + $0x8] sm:$0xff]
  %v5375 = vld [vmem:[%s0 + $0x10] sm:$0xff]
  %v5376 = vld [vmem:[%s0 + $0x18] sm:$0xff]
  %v5377 = vld [vmem:[%s0 + $0x20] sm:$0xff]
  %v5378 = vld [vmem:[%s0 + $0x28] sm:$0xff]
  %v5379 = vld [vmem:[%s0 + $0x30] sm:$0xff]
  %5387 = vrot.lane.b32.xlu0 %v5373, 90
  %v5388 = vpop.permute.xlu0 %5387
  %5389 = vrot.lane.b32.xlu0 %v5374, 90
  %v5390 = vpop.permute.xlu0 %5389
  %5391 = vrot.lane.b32.xlu0 %v5375, 90
  %v5392 = vpop.permute.xlu0 %5391
  %5393 = vrot.lane.b32.xlu0 %v5376, 90
  %v5394 = vpop.permute.xlu0 %5393
  %5395 = vrot.lane.b32.xlu0 %v5377, 90
  %v5396 = vpop.permute.xlu0 %5395
  %5397 = vrot.lane.b32.xlu0 %v5378, 90
  %v5398 = vpop.permute.xlu0 %5397
  %5399 = vrot.lane.b32.xlu0 %v5379, 90
  %v5400 = vpop.permute.xlu0 %5399
  %v5401 = vsel %vm2629, %v5388, %v5390
  %v5402 = vsel %vm2629, %v5390, %v5392
  %v5403 = vsel %vm2629, %v5392, %v5394
  %v5404 = vsel %vm2629, %v5394, %v5396
  %v5405 = vsel %vm2629, %v5396, %v5398
  %v5406 = vsel %vm2629, %v5398, %v5400
  %v5413 = vadd.f32 %v5367, %v5401
  %v5414 = vadd.f32 %v5368, %v5402
  %v5415 = vadd.f32 %v5369, %v5403
  %v5416 = vadd.f32 %v5370, %v5404
  %v5417 = vadd.f32 %v5371, %v5405
  %v5418 = vadd.f32 %v5372, %v5406
  %v5419 = vmax.f32 %v5413, 0.0
  %v5420 = vmax.f32 %v5414, 0.0
  %v5421 = vmax.f32 %v5415, 0.0
  %v5422 = vmax.f32 %v5416, 0.0
  %v5423 = vmax.f32 %v5417, 0.0
  %v5424 = vmax.f32 %v5418, 0.0
  %5425 = vst [vmem:[%s9] sm:$0xff] %v5419
  %5426 = vst [vmem:[%s9 + $0x8] sm:$0xff] %v5420
  %5427 = vst [vmem:[%s9 + $0x10] sm:$0xff] %v5421
  %5428 = vst [vmem:[%s9 + $0x18] sm:$0xff] %v5422
  %5429 = vst [vmem:[%s9 + $0x20] sm:$0xff] %v5423
  %5430 = vst [vmem:[%s9 + $0x28] sm:$0xff] %v5424
  // Predicated region
  $region38: #{basic_block_forward.1} parent=0 // pred_check
    _
  $region39: #{basic_block_forward.1} parent=0 // pred_check_branch
    %5432 = sbr.rel (0) target = $region41
  $region40: #{basic_block_forward.1} parent=0 // pred_region
    _
  $region41: #{basic_block_forward.1} parent=0 // pred_fallthru
    _
  // Predicated region
  $region42: #{basic_block_forward.1} parent=0 // pred_check
    _
  $region43: #{basic_block_forward.1} parent=0 // pred_check_branch
    %5434 = sbr.rel (0) target = $region45
  $region44: #{basic_block_forward.1} parent=0 // pred_region
    _
  $region45: #{basic_block_forward.1} parent=0 // pred_fallthru
    _

</llo_original>
